<compile_context>
chip_gen: v5e
topology: v5e:2x2
jax: 0.10.0
libtpu: 0.0.40
codegen_flags: <defaults>
</compile_context>

<pallas_src>
import functools
import math

import numpy as np
import jax
import jax.numpy as jnp
from jax.experimental import pallas as pl
from jax.experimental.pallas import tpu as pltpu

BN_EPS = 1e-3          # nn.BatchNorm1d(..., eps=0.001)
LEAKY_SLOPE = 0.2      # nn.LeakyReLU(0.2)


def _stack2(a, b):
    """Stack two (1, W) rows into (2, W) without jnp.concatenate (row0=a, row1=b)."""
    w = a.shape[-1]
    ridx = jax.lax.broadcasted_iota(jnp.int32, (2, w), 0)
    return jnp.where(ridx == 0,
                     jnp.broadcast_to(a, (2, w)),
                     jnp.broadcast_to(b, (2, w)))


# ----------------------------------------------------------------------------
# Pallas kernel: whole encoder forward in one gridless invocation (all operands
# resident in VMEM, ~2.6 MB total).
# ----------------------------------------------------------------------------
def _encoder_kernel(x_ref,
                    m1_ref, gm1_ref, gmt1_ref, gb1_ref,
                    m2_ref, gm2_ref, gmt2_ref, gb2_ref,
                    m3_ref, gm3_ref, gmt3_ref, gb3_ref,
                    wfc1_ref, bfc1_ref, whead_ref, bhead_ref,
                    eps_ref,
                    out_ref,
                    *, inv_counts, z_n):
    def conv_bn_lrelu(h, m_ref, gm_ref, gmt_ref, gb_ref, inv_cnt):
        # Conv1d as bf16 Toeplitz matmul, f32 accumulate.  Conv bias omitted:
        # exactly cancelled by training-mode BatchNorm mean subtraction.
        y = jnp.dot(h.astype(jnp.bfloat16), m_ref[...],
                    preferred_element_type=jnp.float32)              # (N, C*L)

        # BatchNorm1d (training mode) stats over (batch, length) -- f32 path.
        s1 = jnp.sum(y, axis=0, keepdims=True)                       # (1, C*L)
        s2 = jnp.sum(y * y, axis=0, keepdims=True)                   # (1, C*L)
        ss = jnp.dot(_stack2(s1, s2), gm_ref[...],
                     preferred_element_type=jnp.float32)             # (2, C)
        mean_c = ss[0:1, :] * inv_cnt
        var_c = jnp.maximum(ss[1:2, :] * inv_cnt - mean_c * mean_c, 0.0)

        # Per-channel scale/shift folding BN normalization + gamma/beta affine.
        scale_c = gb_ref[0:1, :] * jax.lax.rsqrt(var_c + BN_EPS)     # gamma * rsqrt
        shift_c = gb_ref[1:2, :] - mean_c * scale_c                  # beta - mean*scale
        sf = jnp.dot(_stack2(scale_c, shift_c), gmt_ref[...],
                     preferred_element_type=jnp.float32)             # (2, C*L)
        yb = y * sf[0:1, :] + sf[1:2, :]

        # LeakyReLU(0.2) == max(x, 0.2*x) for slope < 1.
        return jnp.maximum(yb, LEAKY_SLOPE * yb)

    h = x_ref[...]
    h = conv_bn_lrelu(h, m1_ref, gm1_ref, gmt1_ref, gb1_ref, inv_counts[0])
    h = conv_bn_lrelu(h, m2_ref, gm2_ref, gmt2_ref, gb2_ref, inv_counts[1])
    h = conv_bn_lrelu(h, m3_ref, gm3_ref, gmt3_ref, gb3_ref, inv_counts[2])

    # fc1 + sigmoid (exp + approx reciprocal hit the EUP slot).
    h = jnp.dot(h.astype(jnp.bfloat16), wfc1_ref[...],
                preferred_element_type=jnp.float32) + bfc1_ref[...]
    h = pl.reciprocal(1.0 + jnp.exp(-h), approx=True)

    # Fused [fc_mean | fc_log_var] head.
    head = jnp.dot(h.astype(jnp.bfloat16), whead_ref[...],
                   preferred_element_type=jnp.float32) + bhead_ref[...]   # (N, 2*z_n)
    mean = head[:, 0:z_n]
    logvar = head[:, z_n:2 * z_n]

    # reparameterize: z = eps * exp(0.5 * log_var) + mean
    z = eps_ref[...] * jnp.exp(0.5 * logvar) + mean

    # Packed output [z | mean | log_var] -> single writeback DMA.
    out_ref[:, 0:z_n] = z
    out_ref[:, z_n:3 * z_n] = head


# ----------------------------------------------------------------------------
# Host glue: dense conv matrices, grouping matrices, parameter setup.
# ----------------------------------------------------------------------------
def conv1d_out_len(L, k, s, p):
    return (L + 2 * p - k) // s + 1


def conv1d_as_dense(w, L_in, stride, pad):
    """w: (C_out, C_in, K) -> M: (C_in*L_in, C_out*L_out) with y_flat = x_flat @ M (no bias)."""
    C_out, C_in, K = w.shape
    L_out = conv1d_out_len(L_in, K, stride, pad)
    M = np.zeros((C_in * L_in, C_out * L_out), dtype=np.float32)
    w = np.asarray(w, np.float32)
    for co in range(C_out):
        for ci in range(C_in):
            for k in range(K):
                wv = w[co, ci, k]
                for l in range(L_out):
                    j = stride * l + k - pad
                    if 0 <= j < L_in:
                        M[ci * L_in + j, co * L_out + l] += wv
    return M, L_out


def group_mat(C_out, L_out):
    return np.kron(np.eye(C_out, dtype=np.float32),
                   np.ones((L_out, 1), dtype=np.float32))


def build_params(key, C_in, L_in, z_n):
    max_f = 128
    flat = math.ceil(L_in / 4) * max_f
    ks = jax.random.split(key, 12)

    def u(k, shape, fan_in):
        b = 1.0 / math.sqrt(fan_in)
        return jax.random.uniform(k, shape, jnp.float32, -b, b)

    return {
        "w1": u(ks[0], (max_f // 4, C_in, 5), C_in * 5),
        "b1": u(ks[1], (max_f // 4,), C_in * 5),
        "w2": u(ks[2], (max_f // 2, max_f // 4, 3), (max_f // 4) * 3),
        "b2": u(ks[3], (max_f // 2,), (max_f // 4) * 3),
        "w3": u(ks[4], (max_f, max_f // 2, 3), (max_f // 2) * 3),
        "b3": u(ks[5], (max_f,), (max_f // 2) * 3),
        "wfc1": u(ks[6], (flat, 1024), flat),     # stored (in, out)
        "bfc1": u(ks[7], (1024,), flat),
        "wm": u(ks[8], (1024, z_n), 1024),
        "bm": u(ks[9], (z_n,), 1024),
        "wlv": u(ks[10], (1024, z_n), 1024),
        "blv": u(ks[11], (z_n,), 1024),
        # BatchNorm1d affine params (PyTorch default init: weight=1, bias=0).
        "g1": jnp.ones((max_f // 4,), jnp.float32),
        "be1": jnp.zeros((max_f // 4,), jnp.float32),
        "g2": jnp.ones((max_f // 2,), jnp.float32),
        "be2": jnp.zeros((max_f // 2,), jnp.float32),
        "g3": jnp.ones((max_f,), jnp.float32),
        "be3": jnp.zeros((max_f,), jnp.float32),
    }


def encoder_pallas(x, eps, P):
    N, C, L = x.shape
    z_n = P["bm"].shape[0]
    w1 = np.asarray(P["w1"]); w2 = np.asarray(P["w2"]); w3 = np.asarray(P["w3"])
    C1, C2, C3 = w1.shape[0], w2.shape[0], w3.shape[0]

    m1, L1 = conv1d_as_dense(w1, L, stride=2, pad=2)
    m2, L2 = conv1d_as_dense(w2, L1, stride=2, pad=1)
    m3, L3 = conv1d_as_dense(w3, L2, stride=1, pad=1)
    gm1, gm2, gm3 = group_mat(C1, L1), group_mat(C2, L2), group_mat(C3, L3)

    def gb(g, b):
        return np.stack([np.asarray(g, np.float32), np.asarray(b, np.float32)], axis=0)

    # Fused mean|log_var head.
    whead = np.concatenate([np.asarray(P["wm"]), np.asarray(P["wlv"])], axis=1)
    bhead = np.concatenate([np.asarray(P["bm"]), np.asarray(P["blv"])])[None, :]

    f32, bf16 = jnp.float32, jnp.bfloat16
    operands = [
        jnp.asarray(np.asarray(x, np.float32).reshape(N, C * L), f32),
        jnp.asarray(m1, bf16), jnp.asarray(gm1, f32), jnp.asarray(gm1.T.copy(), f32),
        jnp.asarray(gb(P["g1"], P["be1"]), f32),
        jnp.asarray(m2, bf16), jnp.asarray(gm2, f32), jnp.asarray(gm2.T.copy(), f32),
        jnp.asarray(gb(P["g2"], P["be2"]), f32),
        jnp.asarray(m3, bf16), jnp.asarray(gm3, f32), jnp.asarray(gm3.T.copy(), f32),
        jnp.asarray(gb(P["g3"], P["be3"]), f32),
        jnp.asarray(np.asarray(P["wfc1"]), bf16),
        jnp.asarray(np.asarray(P["bfc1"])[None, :], f32),
        jnp.asarray(whead, bf16), jnp.asarray(bhead, f32),
        jnp.asarray(eps, f32),
    ]

    kernel = functools.partial(
        _encoder_kernel,
        inv_counts=(1.0 / (N * L1), 1.0 / (N * L2), 1.0 / (N * L3)),
        z_n=z_n)

    vmem = pl.BlockSpec(memory_space=pltpu.MemorySpace.VMEM)
    packed = pl.pallas_call(
        kernel,
        out_shape=jax.ShapeDtypeStruct((N, 3 * z_n), jnp.float32),
        in_specs=[vmem] * len(operands),
        out_specs=vmem,
    )(*operands)

    z = packed[:, :z_n]
    mean = packed[:, z_n:2 * z_n]
    logvar = packed[:, 2 * z_n:]
    return z, mean, logvar


# ----------------------------------------------------------------------------
# Pure-JAX reference for correctness checking (full f32, conv bias included).
# ----------------------------------------------------------------------------
def encoder_reference(x, eps, P):
    def block(h, w, b, g, be, stride, pad):
        y = jax.lax.conv_general_dilated(
            h, w, (stride,), [(pad, pad)],
            dimension_numbers=("NCH", "OIH", "NCH")) + b[None, :, None]
        mu = jnp.mean(y, axis=(0, 2), keepdims=True)
        var = jnp.mean((y - mu) ** 2, axis=(0, 2), keepdims=True)
        y = (y - mu) / jnp.sqrt(var + BN_EPS)
        y = y * g[None, :, None] + be[None, :, None]
        return jnp.where(y > 0, y, LEAKY_SLOPE * y)

    h = block(x, P["w1"], P["b1"], P["g1"], P["be1"], 2, 2)
    h = block(h, P["w2"], P["b2"], P["g2"], P["be2"], 2, 1)
    h = block(h, P["w3"], P["b3"], P["g3"], P["be3"], 1, 1)
    h = h.reshape(h.shape[0], -1)
    h = jax.nn.sigmoid(h @ P["wfc1"] + P["bfc1"])
    mean = h @ P["wm"] + P["bm"]
    logvar = h @ P["wlv"] + P["blv"]
    z = eps * jnp.exp(0.5 * logvar) + mean
    return z, mean, logvar


if __name__ == "__main__":
    N, C, L, z_n = 2, 4, 16, 8   # input_shape = (data_dim, channel_dim=4, input_dim=16)
    key = jax.random.PRNGKey(0)
    kx, keps, kp = jax.random.split(key, 3)

    P = build_params(kp, C, L, z_n)
    x = jax.random.normal(kx, (N, C, L), jnp.float32)
    eps = jax.random.normal(keps, (N, z_n), jnp.float32)

    z, mean, logvar = encoder_pallas(x, eps, P)
    jax.block_until_ready((z, mean, logvar))

    z_r, m_r, lv_r = encoder_reference(x, eps, P)
    for got, want in ((z, z_r), (mean, m_r), (logvar, lv_r)):
        np.testing.assert_allclose(np.asarray(got), np.asarray(want),
                                   rtol=5e-2, atol=5e-2)

    print("KERNEL_OK")
</pallas_src>

<mosaic_0001>
module attributes {stable_mosaic.version = 11 : i64} {
  func.func @_encoder_kernel(%arg0: memref<2x64xf32, #tpu.memory_space<vmem>>, %arg1: memref<64x256xbf16, #tpu.memory_space<vmem>>, %arg2: memref<256x32xf32, #tpu.memory_space<vmem>>, %arg3: memref<32x256xf32, #tpu.memory_space<vmem>>, %arg4: memref<2x32xf32, #tpu.memory_space<vmem>>, %arg5: memref<256x256xbf16, #tpu.memory_space<vmem>>, %arg6: memref<256x64xf32, #tpu.memory_space<vmem>>, %arg7: memref<64x256xf32, #tpu.memory_space<vmem>>, %arg8: memref<2x64xf32, #tpu.memory_space<vmem>>, %arg9: memref<256x512xbf16, #tpu.memory_space<vmem>>, %arg10: memref<512x128xf32, #tpu.memory_space<vmem>>, %arg11: memref<128x512xf32, #tpu.memory_space<vmem>>, %arg12: memref<2x128xf32, #tpu.memory_space<vmem>>, %arg13: memref<512x1024xbf16, #tpu.memory_space<vmem>>, %arg14: memref<1x1024xf32, #tpu.memory_space<vmem>>, %arg15: memref<1024x16xbf16, #tpu.memory_space<vmem>>, %arg16: memref<1x16xf32, #tpu.memory_space<vmem>>, %arg17: memref<2x8xf32, #tpu.memory_space<vmem>>, %arg18: memref<2x24xf32, #tpu.memory_space<vmem>>) attributes {dimension_semantics = [], scalar_prefetch = 0 : i64, scratch_operands = 0 : i64, tpu.core_type = #tpu.core_type<tc>} {
    %c0 = arith.constant 0 : index
    %c0_0 = arith.constant 0 : index
    %0 = vector.load %arg0[%c0, %c0_0] : memref<2x64xf32, #tpu.memory_space<vmem>>, vector<2x64xf32>
    %1 = arith.truncf %0 : vector<2x64xf32> to vector<2x64xbf16>
    %c0_1 = arith.constant 0 : index
    %c0_2 = arith.constant 0 : index
    %2 = vector.load %arg1[%c0_1, %c0_2] : memref<64x256xbf16, #tpu.memory_space<vmem>>, vector<64x256xbf16>
    %cst = arith.constant dense<0.000000e+00> : vector<2x256xf32>
    %3 = tpu.matmul %1, %2, %cst {dimension_numbers = #tpu.dot_dimension_numbers<[1], [0], [0], [1], [0, 0, 1, 1], [], []>} : vector<2x64xbf16>, vector<64x256xbf16>, vector<2x256xf32> -> vector<2x256xf32>
    %cst_3 = arith.constant dense<0.000000e+00> : vector<256xf32>
    %4 = vector.multi_reduction <add>, %3, %cst_3 [0] : vector<2x256xf32> to vector<256xf32>
    %5 = vector.shape_cast %4 : vector<256xf32> to vector<1x256xf32>
    %6 = arith.mulf %3, %3 : vector<2x256xf32>
    %cst_4 = arith.constant dense<0.000000e+00> : vector<256xf32>
    %7 = vector.multi_reduction <add>, %6, %cst_4 [0] : vector<2x256xf32> to vector<256xf32>
    %8 = vector.shape_cast %7 : vector<256xf32> to vector<1x256xf32>
    %9 = tpu.iota {dimensions = array<i32: 0>} : vector<2x256xi32>
    %c0_i32 = arith.constant 0 : i32
    %10 = vector.broadcast %c0_i32 : i32 to vector<2x256xi32>
    %11 = arith.cmpi eq, %9, %10 : vector<2x256xi32>
    %12 = vector.shape_cast %5 : vector<1x256xf32> to vector<1x256xf32>
    %13 = vector.broadcast %12 : vector<1x256xf32> to vector<2x256xf32>
    %14 = vector.shape_cast %8 : vector<1x256xf32> to vector<1x256xf32>
    %15 = vector.broadcast %14 : vector<1x256xf32> to vector<2x256xf32>
    %16 = arith.select %11, %13, %15 : vector<2x256xi1>, vector<2x256xf32>
    %c0_5 = arith.constant 0 : index
    %c0_6 = arith.constant 0 : index
    %17 = vector.load %arg2[%c0_5, %c0_6] : memref<256x32xf32, #tpu.memory_space<vmem>>, vector<256x32xf32>
    %cst_7 = arith.constant dense<0.000000e+00> : vector<2x32xf32>
    %18 = tpu.matmul %16, %17, %cst_7 {dimension_numbers = #tpu.dot_dimension_numbers<[1], [0], [0], [1], [0, 0, 1, 1], [], []>} : vector<2x256xf32>, vector<256x32xf32>, vector<2x32xf32> -> vector<2x32xf32>
    %19 = vector.extract_strided_slice %18 {offsets = [0, 0], sizes = [1, 32], strides = [1, 1]} : vector<2x32xf32> to vector<1x32xf32>
    %cst_8 = arith.constant 6.250000e-02 : f32
    %20 = vector.broadcast %cst_8 : f32 to vector<1x32xf32>
    %21 = arith.mulf %19, %20 : vector<1x32xf32>
    %22 = vector.extract_strided_slice %18 {offsets = [1, 0], sizes = [1, 32], strides = [1, 1]} : vector<2x32xf32> to vector<1x32xf32>
    %cst_9 = arith.constant 6.250000e-02 : f32
    %23 = vector.broadcast %cst_9 : f32 to vector<1x32xf32>
    %24 = arith.mulf %22, %23 : vector<1x32xf32>
    %25 = arith.mulf %21, %21 : vector<1x32xf32>
    %26 = arith.subf %24, %25 : vector<1x32xf32>
    %cst_10 = arith.constant 0.000000e+00 : f32
    %27 = vector.broadcast %cst_10 : f32 to vector<1x32xf32>
    %28 = arith.maximumf %26, %27 : vector<1x32xf32>
    %c0_11 = arith.constant 0 : index
    %c0_12 = arith.constant 0 : index
    %29 = vector.load %arg4[%c0_11, %c0_12] : memref<2x32xf32, #tpu.memory_space<vmem>>, vector<1x32xf32>
    %cst_13 = arith.constant 1.000000e-03 : f32
    %30 = vector.broadcast %cst_13 : f32 to vector<1x32xf32>
    %31 = arith.addf %28, %30 : vector<1x32xf32>
    %32 = math.rsqrt %31 : vector<1x32xf32>
    %33 = arith.mulf %29, %32 : vector<1x32xf32>
    %c1 = arith.constant 1 : index
    %c0_14 = arith.constant 0 : index
    %34 = vector.load %arg4[%c1, %c0_14] : memref<2x32xf32, #tpu.memory_space<vmem>>, vector<1x32xf32>
    %35 = arith.mulf %21, %33 : vector<1x32xf32>
    %36 = arith.subf %34, %35 : vector<1x32xf32>
    %37 = tpu.iota {dimensions = array<i32: 0>} : vector<2x32xi32>
    %c0_i32_15 = arith.constant 0 : i32
    %38 = vector.broadcast %c0_i32_15 : i32 to vector<2x32xi32>
    %39 = arith.cmpi eq, %37, %38 : vector<2x32xi32>
    %40 = vector.shape_cast %33 : vector<1x32xf32> to vector<1x32xf32>
    %41 = vector.broadcast %40 : vector<1x32xf32> to vector<2x32xf32>
    %42 = vector.shape_cast %36 : vector<1x32xf32> to vector<1x32xf32>
    %43 = vector.broadcast %42 : vector<1x32xf32> to vector<2x32xf32>
    %44 = arith.select %39, %41, %43 : vector<2x32xi1>, vector<2x32xf32>
    %c0_16 = arith.constant 0 : index
    %c0_17 = arith.constant 0 : index
    %45 = vector.load %arg3[%c0_16, %c0_17] : memref<32x256xf32, #tpu.memory_space<vmem>>, vector<32x256xf32>
    %cst_18 = arith.constant dense<0.000000e+00> : vector<2x256xf32>
    %46 = tpu.matmul %44, %45, %cst_18 {dimension_numbers = #tpu.dot_dimension_numbers<[1], [0], [0], [1], [0, 0, 1, 1], [], []>} : vector<2x32xf32>, vector<32x256xf32>, vector<2x256xf32> -> vector<2x256xf32>
    %47 = vector.extract_strided_slice %46 {offsets = [0, 0], sizes = [1, 256], strides = [1, 1]} : vector<2x256xf32> to vector<1x256xf32>
    %48 = vector.broadcast %47 : vector<1x256xf32> to vector<2x256xf32>
    %49 = arith.mulf %3, %48 : vector<2x256xf32>
    %50 = vector.extract_strided_slice %46 {offsets = [1, 0], sizes = [1, 256], strides = [1, 1]} : vector<2x256xf32> to vector<1x256xf32>
    %51 = vector.broadcast %50 : vector<1x256xf32> to vector<2x256xf32>
    %52 = arith.addf %49, %51 : vector<2x256xf32>
    %cst_19 = arith.constant 2.000000e-01 : f32
    %53 = vector.broadcast %cst_19 : f32 to vector<2x256xf32>
    %54 = arith.mulf %53, %52 : vector<2x256xf32>
    %55 = arith.maximumf %52, %54 : vector<2x256xf32>
    %56 = arith.truncf %55 : vector<2x256xf32> to vector<2x256xbf16>
    %c0_20 = arith.constant 0 : index
    %c0_21 = arith.constant 0 : index
    %57 = vector.load %arg5[%c0_20, %c0_21] : memref<256x256xbf16, #tpu.memory_space<vmem>>, vector<256x256xbf16>
    %cst_22 = arith.constant dense<0.000000e+00> : vector<2x256xf32>
    %58 = tpu.matmul %56, %57, %cst_22 {dimension_numbers = #tpu.dot_dimension_numbers<[1], [0], [0], [1], [0, 0, 1, 1], [], []>} : vector<2x256xbf16>, vector<256x256xbf16>, vector<2x256xf32> -> vector<2x256xf32>
    %cst_23 = arith.constant dense<0.000000e+00> : vector<256xf32>
    %59 = vector.multi_reduction <add>, %58, %cst_23 [0] : vector<2x256xf32> to vector<256xf32>
    %60 = vector.shape_cast %59 : vector<256xf32> to vector<1x256xf32>
    %61 = arith.mulf %58, %58 : vector<2x256xf32>
    %cst_24 = arith.constant dense<0.000000e+00> : vector<256xf32>
    %62 = vector.multi_reduction <add>, %61, %cst_24 [0] : vector<2x256xf32> to vector<256xf32>
    %63 = vector.shape_cast %62 : vector<256xf32> to vector<1x256xf32>
    %64 = tpu.iota {dimensions = array<i32: 0>} : vector<2x256xi32>
    %c0_i32_25 = arith.constant 0 : i32
    %65 = vector.broadcast %c0_i32_25 : i32 to vector<2x256xi32>
    %66 = arith.cmpi eq, %64, %65 : vector<2x256xi32>
    %67 = vector.shape_cast %60 : vector<1x256xf32> to vector<1x256xf32>
    %68 = vector.broadcast %67 : vector<1x256xf32> to vector<2x256xf32>
    %69 = vector.shape_cast %63 : vector<1x256xf32> to vector<1x256xf32>
    %70 = vector.broadcast %69 : vector<1x256xf32> to vector<2x256xf32>
    %71 = arith.select %66, %68, %70 : vector<2x256xi1>, vector<2x256xf32>
    %c0_26 = arith.constant 0 : index
    %c0_27 = arith.constant 0 : index
    %72 = vector.load %arg6[%c0_26, %c0_27] : memref<256x64xf32, #tpu.memory_space<vmem>>, vector<256x64xf32>
    %cst_28 = arith.constant dense<0.000000e+00> : vector<2x64xf32>
    %73 = tpu.matmul %71, %72, %cst_28 {dimension_numbers = #tpu.dot_dimension_numbers<[1], [0], [0], [1], [0, 0, 1, 1], [], []>} : vector<2x256xf32>, vector<256x64xf32>, vector<2x64xf32> -> vector<2x64xf32>
    %74 = vector.extract_strided_slice %73 {offsets = [0, 0], sizes = [1, 64], strides = [1, 1]} : vector<2x64xf32> to vector<1x64xf32>
    %cst_29 = arith.constant 1.250000e-01 : f32
    %75 = vector.broadcast %cst_29 : f32 to vector<1x64xf32>
    %76 = arith.mulf %74, %75 : vector<1x64xf32>
    %77 = vector.extract_strided_slice %73 {offsets = [1, 0], sizes = [1, 64], strides = [1, 1]} : vector<2x64xf32> to vector<1x64xf32>
    %cst_30 = arith.constant 1.250000e-01 : f32
    %78 = vector.broadcast %cst_30 : f32 to vector<1x64xf32>
    %79 = arith.mulf %77, %78 : vector<1x64xf32>
    %80 = arith.mulf %76, %76 : vector<1x64xf32>
    %81 = arith.subf %79, %80 : vector<1x64xf32>
    %cst_31 = arith.constant 0.000000e+00 : f32
    %82 = vector.broadcast %cst_31 : f32 to vector<1x64xf32>
    %83 = arith.maximumf %81, %82 : vector<1x64xf32>
    %c0_32 = arith.constant 0 : index
    %c0_33 = arith.constant 0 : index
    %84 = vector.load %arg8[%c0_32, %c0_33] : memref<2x64xf32, #tpu.memory_space<vmem>>, vector<1x64xf32>
    %cst_34 = arith.constant 1.000000e-03 : f32
    %85 = vector.broadcast %cst_34 : f32 to vector<1x64xf32>
    %86 = arith.addf %83, %85 : vector<1x64xf32>
    %87 = math.rsqrt %86 : vector<1x64xf32>
    %88 = arith.mulf %84, %87 : vector<1x64xf32>
    %c1_35 = arith.constant 1 : index
    %c0_36 = arith.constant 0 : index
    %89 = vector.load %arg8[%c1_35, %c0_36] : memref<2x64xf32, #tpu.memory_space<vmem>>, vector<1x64xf32>
    %90 = arith.mulf %76, %88 : vector<1x64xf32>
    %91 = arith.subf %89, %90 : vector<1x64xf32>
    %92 = tpu.iota {dimensions = array<i32: 0>} : vector<2x64xi32>
    %c0_i32_37 = arith.constant 0 : i32
    %93 = vector.broadcast %c0_i32_37 : i32 to vector<2x64xi32>
    %94 = arith.cmpi eq, %92, %93 : vector<2x64xi32>
    %95 = vector.shape_cast %88 : vector<1x64xf32> to vector<1x64xf32>
    %96 = vector.broadcast %95 : vector<1x64xf32> to vector<2x64xf32>
    %97 = vector.shape_cast %91 : vector<1x64xf32> to vector<1x64xf32>
    %98 = vector.broadcast %97 : vector<1x64xf32> to vector<2x64xf32>
    %99 = arith.select %94, %96, %98 : vector<2x64xi1>, vector<2x64xf32>
    %c0_38 = arith.constant 0 : index
    %c0_39 = arith.constant 0 : index
    %100 = vector.load %arg7[%c0_38, %c0_39] : memref<64x256xf32, #tpu.memory_space<vmem>>, vector<64x256xf32>
    %cst_40 = arith.constant dense<0.000000e+00> : vector<2x256xf32>
    %101 = tpu.matmul %99, %100, %cst_40 {dimension_numbers = #tpu.dot_dimension_numbers<[1], [0], [0], [1], [0, 0, 1, 1], [], []>} : vector<2x64xf32>, vector<64x256xf32>, vector<2x256xf32> -> vector<2x256xf32>
    %102 = vector.extract_strided_slice %101 {offsets = [0, 0], sizes = [1, 256], strides = [1, 1]} : vector<2x256xf32> to vector<1x256xf32>
    %103 = vector.broadcast %102 : vector<1x256xf32> to vector<2x256xf32>
    %104 = arith.mulf %58, %103 : vector<2x256xf32>
    %105 = vector.extract_strided_slice %101 {offsets = [1, 0], sizes = [1, 256], strides = [1, 1]} : vector<2x256xf32> to vector<1x256xf32>
    %106 = vector.broadcast %105 : vector<1x256xf32> to vector<2x256xf32>
    %107 = arith.addf %104, %106 : vector<2x256xf32>
    %cst_41 = arith.constant 2.000000e-01 : f32
    %108 = vector.broadcast %cst_41 : f32 to vector<2x256xf32>
    %109 = arith.mulf %108, %107 : vector<2x256xf32>
    %110 = arith.maximumf %107, %109 : vector<2x256xf32>
    %111 = arith.truncf %110 : vector<2x256xf32> to vector<2x256xbf16>
    %c0_42 = arith.constant 0 : index
    %c0_43 = arith.constant 0 : index
    %112 = vector.load %arg9[%c0_42, %c0_43] : memref<256x512xbf16, #tpu.memory_space<vmem>>, vector<256x512xbf16>
    %cst_44 = arith.constant dense<0.000000e+00> : vector<2x512xf32>
    %113 = tpu.matmul %111, %112, %cst_44 {dimension_numbers = #tpu.dot_dimension_numbers<[1], [0], [0], [1], [0, 0, 1, 1], [], []>} : vector<2x256xbf16>, vector<256x512xbf16>, vector<2x512xf32> -> vector<2x512xf32>
    %cst_45 = arith.constant dense<0.000000e+00> : vector<512xf32>
    %114 = vector.multi_reduction <add>, %113, %cst_45 [0] : vector<2x512xf32> to vector<512xf32>
    %115 = vector.shape_cast %114 : vector<512xf32> to vector<1x512xf32>
    %116 = arith.mulf %113, %113 : vector<2x512xf32>
    %cst_46 = arith.constant dense<0.000000e+00> : vector<512xf32>
    %117 = vector.multi_reduction <add>, %116, %cst_46 [0] : vector<2x512xf32> to vector<512xf32>
    %118 = vector.shape_cast %117 : vector<512xf32> to vector<1x512xf32>
    %119 = tpu.iota {dimensions = array<i32: 0>} : vector<2x512xi32>
    %c0_i32_47 = arith.constant 0 : i32
    %120 = vector.broadcast %c0_i32_47 : i32 to vector<2x512xi32>
    %121 = arith.cmpi eq, %119, %120 : vector<2x512xi32>
    %122 = vector.shape_cast %115 : vector<1x512xf32> to vector<1x512xf32>
    %123 = vector.broadcast %122 : vector<1x512xf32> to vector<2x512xf32>
    %124 = vector.shape_cast %118 : vector<1x512xf32> to vector<1x512xf32>
    %125 = vector.broadcast %124 : vector<1x512xf32> to vector<2x512xf32>
    %126 = arith.select %121, %123, %125 : vector<2x512xi1>, vector<2x512xf32>
    %c0_48 = arith.constant 0 : index
    %c0_49 = arith.constant 0 : index
    %127 = vector.load %arg10[%c0_48, %c0_49] : memref<512x128xf32, #tpu.memory_space<vmem>>, vector<512x128xf32>
    %cst_50 = arith.constant dense<0.000000e+00> : vector<2x128xf32>
    %128 = tpu.matmul %126, %127, %cst_50 {dimension_numbers = #tpu.dot_dimension_numbers<[1], [0], [0], [1], [0, 0, 1, 1], [], []>} : vector<2x512xf32>, vector<512x128xf32>, vector<2x128xf32> -> vector<2x128xf32>
    %129 = vector.extract_strided_slice %128 {offsets = [0, 0], sizes = [1, 128], strides = [1, 1]} : vector<2x128xf32> to vector<1x128xf32>
    %cst_51 = arith.constant 1.250000e-01 : f32
    %130 = vector.broadcast %cst_51 : f32 to vector<1x128xf32>
    %131 = arith.mulf %129, %130 : vector<1x128xf32>
    %132 = vector.extract_strided_slice %128 {offsets = [1, 0], sizes = [1, 128], strides = [1, 1]} : vector<2x128xf32> to vector<1x128xf32>
    %cst_52 = arith.constant 1.250000e-01 : f32
    %133 = vector.broadcast %cst_52 : f32 to vector<1x128xf32>
    %134 = arith.mulf %132, %133 : vector<1x128xf32>
    %135 = arith.mulf %131, %131 : vector<1x128xf32>
    %136 = arith.subf %134, %135 : vector<1x128xf32>
    %cst_53 = arith.constant 0.000000e+00 : f32
    %137 = vector.broadcast %cst_53 : f32 to vector<1x128xf32>
    %138 = arith.maximumf %136, %137 : vector<1x128xf32>
    %c0_54 = arith.constant 0 : index
    %c0_55 = arith.constant 0 : index
    %139 = vector.load %arg12[%c0_54, %c0_55] : memref<2x128xf32, #tpu.memory_space<vmem>>, vector<1x128xf32>
    %cst_56 = arith.constant 1.000000e-03 : f32
    %140 = vector.broadcast %cst_56 : f32 to vector<1x128xf32>
    %141 = arith.addf %138, %140 : vector<1x128xf32>
    %142 = math.rsqrt %141 : vector<1x128xf32>
    %143 = arith.mulf %139, %142 : vector<1x128xf32>
    %c1_57 = arith.constant 1 : index
    %c0_58 = arith.constant 0 : index
    %144 = vector.load %arg12[%c1_57, %c0_58] : memref<2x128xf32, #tpu.memory_space<vmem>>, vector<1x128xf32>
    %145 = arith.mulf %131, %143 : vector<1x128xf32>
    %146 = arith.subf %144, %145 : vector<1x128xf32>
    %147 = tpu.iota {dimensions = array<i32: 0>} : vector<2x128xi32>
    %c0_i32_59 = arith.constant 0 : i32
    %148 = vector.broadcast %c0_i32_59 : i32 to vector<2x128xi32>
    %149 = arith.cmpi eq, %147, %148 : vector<2x128xi32>
    %150 = vector.shape_cast %143 : vector<1x128xf32> to vector<1x128xf32>
    %151 = vector.broadcast %150 : vector<1x128xf32> to vector<2x128xf32>
    %152 = vector.shape_cast %146 : vector<1x128xf32> to vector<1x128xf32>
    %153 = vector.broadcast %152 : vector<1x128xf32> to vector<2x128xf32>
    %154 = arith.select %149, %151, %153 : vector<2x128xi1>, vector<2x128xf32>
    %c0_60 = arith.constant 0 : index
    %c0_61 = arith.constant 0 : index
    %155 = vector.load %arg11[%c0_60, %c0_61] : memref<128x512xf32, #tpu.memory_space<vmem>>, vector<128x512xf32>
    %cst_62 = arith.constant dense<0.000000e+00> : vector<2x512xf32>
    %156 = tpu.matmul %154, %155, %cst_62 {dimension_numbers = #tpu.dot_dimension_numbers<[1], [0], [0], [1], [0, 0, 1, 1], [], []>} : vector<2x128xf32>, vector<128x512xf32>, vector<2x512xf32> -> vector<2x512xf32>
    %157 = vector.extract_strided_slice %156 {offsets = [0, 0], sizes = [1, 512], strides = [1, 1]} : vector<2x512xf32> to vector<1x512xf32>
    %158 = vector.broadcast %157 : vector<1x512xf32> to vector<2x512xf32>
    %159 = arith.mulf %113, %158 : vector<2x512xf32>
    %160 = vector.extract_strided_slice %156 {offsets = [1, 0], sizes = [1, 512], strides = [1, 1]} : vector<2x512xf32> to vector<1x512xf32>
    %161 = vector.broadcast %160 : vector<1x512xf32> to vector<2x512xf32>
    %162 = arith.addf %159, %161 : vector<2x512xf32>
    %cst_63 = arith.constant 2.000000e-01 : f32
    %163 = vector.broadcast %cst_63 : f32 to vector<2x512xf32>
    %164 = arith.mulf %163, %162 : vector<2x512xf32>
    %165 = arith.maximumf %162, %164 : vector<2x512xf32>
    %166 = arith.truncf %165 : vector<2x512xf32> to vector<2x512xbf16>
    %c0_64 = arith.constant 0 : index
    %c0_65 = arith.constant 0 : index
    %167 = vector.load %arg13[%c0_64, %c0_65] : memref<512x1024xbf16, #tpu.memory_space<vmem>>, vector<512x1024xbf16>
    %cst_66 = arith.constant dense<0.000000e+00> : vector<2x1024xf32>
    %168 = tpu.matmul %166, %167, %cst_66 {dimension_numbers = #tpu.dot_dimension_numbers<[1], [0], [0], [1], [0, 0, 1, 1], [], []>} : vector<2x512xbf16>, vector<512x1024xbf16>, vector<2x1024xf32> -> vector<2x1024xf32>
    %c0_67 = arith.constant 0 : index
    %c0_68 = arith.constant 0 : index
    %169 = vector.load %arg14[%c0_67, %c0_68] : memref<1x1024xf32, #tpu.memory_space<vmem>>, vector<1x1024xf32>
    %170 = vector.broadcast %169 : vector<1x1024xf32> to vector<2x1024xf32>
    %171 = arith.addf %168, %170 : vector<2x1024xf32>
    %cst_69 = arith.constant 0.000000e+00 : f32
    %172 = vector.broadcast %cst_69 : f32 to vector<2x1024xf32>
    %173 = arith.subf %172, %171 : vector<2x1024xf32>
    %174 = math.exp %173 : vector<2x1024xf32>
    %cst_70 = arith.constant 1.000000e+00 : f32
    %175 = vector.broadcast %cst_70 : f32 to vector<2x1024xf32>
    %176 = arith.addf %175, %174 : vector<2x1024xf32>
    %177 = tpu.reciprocal %176 {approx = true} : vector<2x1024xf32> -> vector<2x1024xf32>
    %178 = arith.truncf %177 : vector<2x1024xf32> to vector<2x1024xbf16>
    %c0_71 = arith.constant 0 : index
    %c0_72 = arith.constant 0 : index
    %179 = vector.load %arg15[%c0_71, %c0_72] : memref<1024x16xbf16, #tpu.memory_space<vmem>>, vector<1024x16xbf16>
    %cst_73 = arith.constant dense<0.000000e+00> : vector<2x16xf32>
    %180 = tpu.matmul %178, %179, %cst_73 {dimension_numbers = #tpu.dot_dimension_numbers<[1], [0], [0], [1], [0, 0, 1, 1], [], []>} : vector<2x1024xbf16>, vector<1024x16xbf16>, vector<2x16xf32> -> vector<2x16xf32>
    %c0_74 = arith.constant 0 : index
    %c0_75 = arith.constant 0 : index
    %181 = vector.load %arg16[%c0_74, %c0_75] : memref<1x16xf32, #tpu.memory_space<vmem>>, vector<1x16xf32>
    %182 = vector.broadcast %181 : vector<1x16xf32> to vector<2x16xf32>
    %183 = arith.addf %180, %182 : vector<2x16xf32>
    %184 = vector.extract_strided_slice %183 {offsets = [0, 0], sizes = [2, 8], strides = [1, 1]} : vector<2x16xf32> to vector<2x8xf32>
    %185 = vector.extract_strided_slice %183 {offsets = [0, 8], sizes = [2, 8], strides = [1, 1]} : vector<2x16xf32> to vector<2x8xf32>
    %c0_76 = arith.constant 0 : index
    %c0_77 = arith.constant 0 : index
    %186 = vector.load %arg17[%c0_76, %c0_77] : memref<2x8xf32, #tpu.memory_space<vmem>>, vector<2x8xf32>
    %cst_78 = arith.constant 5.000000e-01 : f32
    %187 = vector.broadcast %cst_78 : f32 to vector<2x8xf32>
    %188 = arith.mulf %187, %185 : vector<2x8xf32>
    %189 = math.exp %188 : vector<2x8xf32>
    %190 = arith.mulf %186, %189 : vector<2x8xf32>
    %191 = arith.addf %190, %184 : vector<2x8xf32>
    %c0_79 = arith.constant 0 : index
    %c0_80 = arith.constant 0 : index
    %192 = vector.load %arg18[%c0_79, %c0_80] : memref<2x24xf32, #tpu.memory_space<vmem>>, vector<2x8xf32>
    tpu.vector_store %arg18[%c0_79, %c0_80], %191 {strides = array<i32>} : memref<2x24xf32, #tpu.memory_space<vmem>>, vector<2x8xf32>,
    %c0_81 = arith.constant 0 : index
    %c8 = arith.constant 8 : index
    %193 = vector.load %arg18[%c0_81, %c8] : memref<2x24xf32, #tpu.memory_space<vmem>>, vector<2x16xf32>
    tpu.vector_store %arg18[%c0_81, %c8], %183 {strides = array<i32>} : memref<2x24xf32, #tpu.memory_space<vmem>>, vector<2x16xf32>,
    return
  }
}

</mosaic_0001>

<llo_original>
// kernel: tpu_custom_call.1
$region0: #{tpu_custom_call.1}
  #allocation0 [shape = 'u32[]', space=smem, size = 0x4, offset = 0x4, fixed_abs, tag = 'smem constant byte address 0x4 - core index']
  #allocation1 [shape = 'u32[72,128]{1,0:T(1,128)}', space=vmem, size = 0x9000, scoped, tag = 'internal scratch']
  %s0 = inlined_call_operand.hbm [shape: f32[2,64], index: 0, kind: input, shape index: {}]
  %s1 = inlined_call_operand.vmem [shape: bf16[64,256], index: 1, kind: input, shape index: {}]
  %s2 = inlined_call_operand.vmem [shape: f32[256,32], index: 2, kind: input, shape index: {}]
  %s3 = inlined_call_operand.hbm [shape: f32[32,256], index: 3, kind: input, shape index: {}]
  %s4 = inlined_call_operand.hbm [shape: f32[2,32], index: 4, kind: input, shape index: {}]
  %s5 = inlined_call_operand.hbm [shape: bf16[256,256], index: 5, kind: input, shape index: {}]
  %s6 = inlined_call_operand.vmem [shape: f32[256,64], index: 6, kind: input, shape index: {}]
  %s7 = inlined_call_operand.hbm [shape: f32[64,256], index: 7, kind: input, shape index: {}]
  %s8 = inlined_call_operand.hbm [shape: f32[2,64], index: 8, kind: input, shape index: {}]
  %s9 = inlined_call_operand.vmem [shape: bf16[256,512], index: 9, kind: input, shape index: {}]
  %s10 = inlined_call_operand.vmem [shape: f32[512,128], index: 10, kind: input, shape index: {}]
  %s11 = inlined_call_operand.hbm [shape: f32[128,512], index: 11, kind: input, shape index: {}]
  %s12 = inlined_call_operand.hbm [shape: f32[2,128], index: 12, kind: input, shape index: {}]
  %s13 = inlined_call_operand.hbm [shape: bf16[512,1024], index: 13, kind: input, shape index: {}]
  %s14 = inlined_call_operand.vmem [shape: f32[1,1024], index: 14, kind: input, shape index: {}]
  %s15 = inlined_call_operand.vmem [shape: bf16[1024,16], index: 15, kind: input, shape index: {}]
  %s16 = inlined_call_operand.vmem [shape: f32[1,16], index: 16, kind: input, shape index: {}]
  %s17 = inlined_call_operand.vmem [shape: f32[2,8], index: 17, kind: input, shape index: {}]
  %s18 = inlined_call_operand.hbm [shape: f32[2,24], index: 18, kind: output, shape index: {}]
  %s19 = sld [smem:[#allocation0]]
  $region118: #{tpu_custom_call.1} parent=0
    _
  %s21 = ssub.s32 1, %s19
  %s22 = scalar_select 0, %s21, %s19
  $region1: #{tpu_custom_call.1} parent=0
    #allocation2 [shape = 'u8[1024]{0}', space=vmem, size = 0x400, scoped, tag = 'input window, operand 0, single buffered']
    #allocation3 [shape = 's32[1]{0}', space=sflag, size = 0x4, scoped, tag = 'scoped memory for tpu_custom_call.1']
    #allocation4 [shape = 's32[1]{0}', space=sflag, size = 0x4, scoped, tag = 'scoped memory for tpu_custom_call.1']
    #allocation5 [shape = 'u8[32768]{0}', space=vmem, size = 0x8000, scoped, tag = 'input window, operand 3, single buffered']
    #allocation6 [shape = 's32[1]{0}', space=sflag, size = 0x4, scoped, tag = 'scoped memory for tpu_custom_call.1']
    #allocation7 [shape = 'u8[1024]{0}', space=vmem, size = 0x400, scoped, tag = 'input window, operand 4, single buffered']
    #allocation8 [shape = 'u8[131072]{0}', space=vmem, size = 0x20000, scoped, tag = 'input window, operand 5, single buffered']
    #allocation9 [shape = 's32[1]{0}', space=sflag, size = 0x4, scoped, tag = 'scoped memory for tpu_custom_call.1']
    #allocation10 [shape = 'u8[65536]{0}', space=vmem, size = 0x10000, scoped, tag = 'input window, operand 7, single buffered']
    #allocation11 [shape = 'u8[1024]{0}', space=vmem, size = 0x400, scoped, tag = 'input window, operand 8, single buffered']
    #allocation12 [shape = 's32[1]{0}', space=sflag, size = 0x4, scoped, tag = 'scoped memory for tpu_custom_call.1']
    #allocation13 [shape = 'u8[262144]{0}', space=vmem, size = 0x40000, scoped, tag = 'input window, operand 11, single buffered']
    #allocation14 [shape = 'u8[1024]{0}', space=vmem, size = 0x400, scoped, tag = 'input window, operand 12, single buffered']
    #allocation15 [shape = 's32[1]{0}', space=sflag, size = 0x4, scoped, tag = 'scoped memory for tpu_custom_call.1']
    #allocation16 [shape = 'u8[1048576]{0}', space=vmem, size = 0x100000, scoped, tag = 'input window, operand 13, single buffered']
    #allocation17 [shape = 'u8[1024]{0}', space=vmem, size = 0x400, scoped, tag = 'output window, operand 0, single buffered']
    %23 = vsyncpa [#allocation3], 0
    %24 = vsyncpa [#allocation6], 0
    %25 = vsyncpa [#allocation9], 0
    %26 = vsyncpa [#allocation12], 0
    %27 = vsyncpa [#allocation15], 0
    %28 = vsyncpa [#allocation4], 0
    // Predicated region
    $region2: #{tpu_custom_call.1} parent=1 // pred_check
      _
    $region3: #{tpu_custom_call.1} parent=1 // pred_check_branch
      %30 = sbr.rel (0) target = $region5
    $region4: #{tpu_custom_call.1} parent=1 // pred_region
      %32 = vsyncadd [#allocation3], 0
      %s34 = sshll.u32 %s0, 4
      %s35 = int_to_ptr.hbm [resolvable:$true] %s34
      %s36 = sshll.u32 [#allocation2], 4
      %s37 = int_to_ptr.vmem [resolvable:$true] %s36
      %39 = dma.hbm_to_vmem [thread:$0]  %s35, 32, %s37, [#allocation3]
    $region5: #{tpu_custom_call.1} parent=1 // pred_fallthru
      _
    // Predicated region
    $region6: #{tpu_custom_call.1} parent=1 // pred_check
      _
    $region7: #{tpu_custom_call.1} parent=1 // pred_check_branch
      %41 = sbr.rel (0) target = $region9
    $region8: #{tpu_custom_call.1} parent=1 // pred_region
      _
    $region9: #{tpu_custom_call.1} parent=1 // pred_fallthru
      _
    // Predicated region
    $region10: #{tpu_custom_call.1} parent=1 // pred_check
      _
    $region11: #{tpu_custom_call.1} parent=1 // pred_check_branch
      %43 = sbr.rel (0) target = $region13
    $region12: #{tpu_custom_call.1} parent=1 // pred_region
      _
    $region13: #{tpu_custom_call.1} parent=1 // pred_fallthru
      _
    // Predicated region
    $region14: #{tpu_custom_call.1} parent=1 // pred_check
      _
    $region15: #{tpu_custom_call.1} parent=1 // pred_check_branch
      %45 = sbr.rel (0) target = $region17
    $region16: #{tpu_custom_call.1} parent=1 // pred_region
      %47 = vsyncadd [#allocation6], 0
      %s48 = sshll.u32 %s3, 4
      %s49 = int_to_ptr.hbm [resolvable:$true] %s48
      %s50 = sshll.u32 [#allocation5], 4
      %s51 = int_to_ptr.vmem [resolvable:$true] %s50
      %56 = dma.hbm_to_vmem [thread:$0]  %s49, 1024, %s51, [#allocation6], 256, 256, 16
    $region17: #{tpu_custom_call.1} parent=1 // pred_fallthru
      _
    // Predicated region
    $region18: #{tpu_custom_call.1} parent=1 // pred_check
      _
    $region19: #{tpu_custom_call.1} parent=1 // pred_check_branch
      %58 = sbr.rel (0) target = $region21
    $region20: #{tpu_custom_call.1} parent=1 // pred_region
      %60 = vsyncadd [#allocation6], 0
      %s62 = sshll.u32 %s4, 4
      %s63 = int_to_ptr.hbm [resolvable:$true] %s62
      %s64 = sshll.u32 [#allocation7], 4
      %s65 = int_to_ptr.vmem [resolvable:$true] %s64
      %67 = dma.hbm_to_vmem [thread:$0]  %s63, 32, %s65, [#allocation6]
    $region21: #{tpu_custom_call.1} parent=1 // pred_fallthru
      _
    // Predicated region
    $region22: #{tpu_custom_call.1} parent=1 // pred_check
      _
    $region23: #{tpu_custom_call.1} parent=1 // pred_check_branch
      %69 = sbr.rel (0) target = $region25
    $region24: #{tpu_custom_call.1} parent=1 // pred_region
      %71 = vsyncadd [#allocation9], 0
      %s72 = sshll.u32 %s5, 4
      %s73 = int_to_ptr.hbm [resolvable:$true] %s72
      %s74 = sshll.u32 [#allocation8], 4
      %s75 = int_to_ptr.vmem [resolvable:$true] %s74
      %80 = dma.hbm_to_vmem [thread:$0]  %s73, 4096, %s75, [#allocation9], 128, 128, 8
    $region25: #{tpu_custom_call.1} parent=1 // pred_fallthru
      _
    // Predicated region
    $region26: #{tpu_custom_call.1} parent=1 // pred_check
      _
    $region27: #{tpu_custom_call.1} parent=1 // pred_check_branch
      %82 = sbr.rel (0) target = $region29
    $region28: #{tpu_custom_call.1} parent=1 // pred_region
      _
    $region29: #{tpu_custom_call.1} parent=1 // pred_fallthru
      _
    // Predicated region
    $region30: #{tpu_custom_call.1} parent=1 // pred_check
      _
    $region31: #{tpu_custom_call.1} parent=1 // pred_check_branch
      %84 = sbr.rel (0) target = $region33
    $region32: #{tpu_custom_call.1} parent=1 // pred_region
      %86 = vsyncadd [#allocation9], 0
      %s87 = sshll.u32 %s7, 4
      %s88 = int_to_ptr.hbm [resolvable:$true] %s87
      %s89 = sshll.u32 [#allocation10], 4
      %s90 = int_to_ptr.vmem [resolvable:$true] %s89
      %95 = dma.hbm_to_vmem [thread:$0]  %s88, 2048, %s90, [#allocation9], 256, 256, 16
    $region33: #{tpu_custom_call.1} parent=1 // pred_fallthru
      _
    // Predicated region
    $region34: #{tpu_custom_call.1} parent=1 // pred_check
      _
    $region35: #{tpu_custom_call.1} parent=1 // pred_check_branch
      %97 = sbr.rel (0) target = $region37
    $region36: #{tpu_custom_call.1} parent=1 // pred_region
      %99 = vsyncadd [#allocation12], 0
      %s101 = sshll.u32 %s8, 4
      %s102 = int_to_ptr.hbm [resolvable:$true] %s101
      %s103 = sshll.u32 [#allocation11], 4
      %s104 = int_to_ptr.vmem [resolvable:$true] %s103
      %106 = dma.hbm_to_vmem [thread:$0]  %s102, 32, %s104, [#allocation12]
    $region37: #{tpu_custom_call.1} parent=1 // pred_fallthru
      _
    // Predicated region
    $region38: #{tpu_custom_call.1} parent=1 // pred_check
      _
    $region39: #{tpu_custom_call.1} parent=1 // pred_check_branch
      %108 = sbr.rel (0) target = $region41
    $region40: #{tpu_custom_call.1} parent=1 // pred_region
      _
    $region41: #{tpu_custom_call.1} parent=1 // pred_fallthru
      _
    // Predicated region
    $region42: #{tpu_custom_call.1} parent=1 // pred_check
      _
    $region43: #{tpu_custom_call.1} parent=1 // pred_check_branch
      %110 = sbr.rel (0) target = $region45
    $region44: #{tpu_custom_call.1} parent=1 // pred_region
      _
    $region45: #{tpu_custom_call.1} parent=1 // pred_fallthru
      _
    // Predicated region
    $region46: #{tpu_custom_call.1} parent=1 // pred_check
      _
    $region47: #{tpu_custom_call.1} parent=1 // pred_check_branch
      %112 = sbr.rel (0) target = $region49
    $region48: #{tpu_custom_call.1} parent=1 // pred_region
      %114 = vsyncadd [#allocation12], 0
      %s115 = sshll.u32 %s11, 4
      %s116 = int_to_ptr.hbm [resolvable:$true] %s115
      %s117 = sshll.u32 [#allocation13], 4
      %s118 = int_to_ptr.vmem [resolvable:$true] %s117
      %123 = dma.hbm_to_vmem [thread:$0]  %s116, 8192, %s118, [#allocation12], 512, 512, 32
    $region49: #{tpu_custom_call.1} parent=1 // pred_fallthru
      _
    // Predicated region
    $region50: #{tpu_custom_call.1} parent=1 // pred_check
      _
    $region51: #{tpu_custom_call.1} parent=1 // pred_check_branch
      %125 = sbr.rel (0) target = $region53
    $region52: #{tpu_custom_call.1} parent=1 // pred_region
      %127 = vsyncadd [#allocation15], 0
      %s129 = sshll.u32 %s12, 4
      %s130 = int_to_ptr.hbm [resolvable:$true] %s129
      %s131 = sshll.u32 [#allocation14], 4
      %s132 = int_to_ptr.vmem [resolvable:$true] %s131
      %134 = dma.hbm_to_vmem [thread:$0]  %s130, 32, %s132, [#allocation15]
    $region53: #{tpu_custom_call.1} parent=1 // pred_fallthru
      _
    // Predicated region
    $region54: #{tpu_custom_call.1} parent=1 // pred_check
      _
    $region55: #{tpu_custom_call.1} parent=1 // pred_check_branch
      %136 = sbr.rel (0) target = $region57
    $region56: #{tpu_custom_call.1} parent=1 // pred_region
      %138 = vsyncadd [#allocation15], 0
      %s139 = sshll.u32 %s13, 4
      %s140 = int_to_ptr.hbm [resolvable:$true] %s139
      %s141 = sshll.u32 [#allocation16], 4
      %s142 = int_to_ptr.vmem [resolvable:$true] %s141
      %147 = dma.hbm_to_vmem [thread:$0]  %s140, 32768, %s142, [#allocation15], 512, 512, 32
    $region57: #{tpu_custom_call.1} parent=1 // pred_fallthru
      _
    // Predicated region
    $region58: #{tpu_custom_call.1} parent=1 // pred_check
      _
    $region59: #{tpu_custom_call.1} parent=1 // pred_check_branch
      %149 = sbr.rel (0) target = $region61
    $region60: #{tpu_custom_call.1} parent=1 // pred_region
      _
    $region61: #{tpu_custom_call.1} parent=1 // pred_fallthru
      _
    // Predicated region
    $region62: #{tpu_custom_call.1} parent=1 // pred_check
      _
    $region63: #{tpu_custom_call.1} parent=1 // pred_check_branch
      %151 = sbr.rel (0) target = $region65
    $region64: #{tpu_custom_call.1} parent=1 // pred_region
      _
    $region65: #{tpu_custom_call.1} parent=1 // pred_fallthru
      _
    // Predicated region
    $region66: #{tpu_custom_call.1} parent=1 // pred_check
      _
    $region67: #{tpu_custom_call.1} parent=1 // pred_check_branch
      %153 = sbr.rel (0) target = $region69
    $region68: #{tpu_custom_call.1} parent=1 // pred_region
      _
    $region69: #{tpu_custom_call.1} parent=1 // pred_fallthru
      _
    // Predicated region
    $region70: #{tpu_custom_call.1} parent=1 // pred_check
      _
    $region71: #{tpu_custom_call.1} parent=1 // pred_check_branch
      %155 = sbr.rel (0) target = $region73
    $region72: #{tpu_custom_call.1} parent=1 // pred_region
      _
    $region73: #{tpu_custom_call.1} parent=1 // pred_fallthru
      _
    // Predicated region
    $region74: #{tpu_custom_call.1} parent=1 // pred_check
      _
    $region75: #{tpu_custom_call.1} parent=1 // pred_check_branch
      %157 = sbr.rel (0) target = $region77
    $region76: #{tpu_custom_call.1} parent=1 // pred_region
      %159 = dma.done [#allocation3], 32
    $region77: #{tpu_custom_call.1} parent=1 // pred_fallthru
      _
    // Predicated region
    $region78: #{tpu_custom_call.1} parent=1 // pred_check
      _
    $region79: #{tpu_custom_call.1} parent=1 // pred_check_branch
      %161 = sbr.rel (0) target = $region81
    $region80: #{tpu_custom_call.1} parent=1 // pred_region
      %163 = dma.done [#allocation6], 1024
    $region81: #{tpu_custom_call.1} parent=1 // pred_fallthru
      _
    // Predicated region
    $region82: #{tpu_custom_call.1} parent=1 // pred_check
      _
    $region83: #{tpu_custom_call.1} parent=1 // pred_check_branch
      %165 = sbr.rel (0) target = $region85
    $region84: #{tpu_custom_call.1} parent=1 // pred_region
      %167 = dma.done [#allocation6], 32
    $region85: #{tpu_custom_call.1} parent=1 // pred_fallthru
      _
    // Predicated region
    $region86: #{tpu_custom_call.1} parent=1 // pred_check
      _
    $region87: #{tpu_custom_call.1} parent=1 // pred_check_branch
      %169 = sbr.rel (0) target = $region89
    $region88: #{tpu_custom_call.1} parent=1 // pred_region
      %171 = dma.done [#allocation9], 4096
    $region89: #{tpu_custom_call.1} parent=1 // pred_fallthru
      _
    // Predicated region
    $region90: #{tpu_custom_call.1} parent=1 // pred_check
      _
    $region91: #{tpu_custom_call.1} parent=1 // pred_check_branch
      %173 = sbr.rel (0) target = $region93
    $region92: #{tpu_custom_call.1} parent=1 // pred_region
      %175 = dma.done [#allocation9], 2048
    $region93: #{tpu_custom_call.1} parent=1 // pred_fallthru
      _
    // Predicated region
    $region94: #{tpu_custom_call.1} parent=1 // pred_check
      _
    $region95: #{tpu_custom_call.1} parent=1 // pred_check_branch
      %177 = sbr.rel (0) target = $region97
    $region96: #{tpu_custom_call.1} parent=1 // pred_region
      %179 = dma.done [#allocation12], 32
    $region97: #{tpu_custom_call.1} parent=1 // pred_fallthru
      _
    // Predicated region
    $region98: #{tpu_custom_call.1} parent=1 // pred_check
      _
    $region99: #{tpu_custom_call.1} parent=1 // pred_check_branch
      %181 = sbr.rel (0) target = $region101
    $region100: #{tpu_custom_call.1} parent=1 // pred_region
      %183 = dma.done [#allocation12], 8192
    $region101: #{tpu_custom_call.1} parent=1 // pred_fallthru
      _
    // Predicated region
    $region102: #{tpu_custom_call.1} parent=1 // pred_check
      _
    $region103: #{tpu_custom_call.1} parent=1 // pred_check_branch
      %185 = sbr.rel (0) target = $region105
    $region104: #{tpu_custom_call.1} parent=1 // pred_region
      %187 = dma.done [#allocation15], 32
    $region105: #{tpu_custom_call.1} parent=1 // pred_fallthru
      _
    // Predicated region
    $region106: #{tpu_custom_call.1} parent=1 // pred_check
      _
    $region107: #{tpu_custom_call.1} parent=1 // pred_check_branch
      %189 = sbr.rel (0) target = $region109
    $region108: #{tpu_custom_call.1} parent=1 // pred_region
      %191 = dma.done [#allocation15], 32768
    $region109: #{tpu_custom_call.1} parent=1 // pred_fallthru
      _
    %v193 = vld [vmem:[#allocation2] sm:$0x3]
    %v194 = vpack.c.bf16 %v193, %v193
    %v195 = vld [vmem:[%s1] sm:$0xff]
    %v196 = vld [vmem:[%s1 + $0x8] sm:$0xff]
    %v197 = vld [vmem:[%s1 + $0x10] sm:$0xff]
    %v198 = vld [vmem:[%s1 + $0x18] sm:$0xff]
    %v199 = vld [vmem:[%s1 + $0x20] sm:$0xff]
    %v200 = vld [vmem:[%s1 + $0x28] sm:$0xff]
    %v201 = vld [vmem:[%s1 + $0x30] sm:$0xff]
    %v202 = vld [vmem:[%s1 + $0x38] sm:$0xff]
    %v211 = vunpack.c.l.b16 %v195
    %v212 = vunpack.c.h.b16 %v195
    %v213 = vunpack.c.l.b16 %v196
    %v214 = vunpack.c.h.b16 %v196
    %v215 = vunpack.c.l.b16 %v197
    %v216 = vunpack.c.h.b16 %v197
    %v217 = vunpack.c.l.b16 %v198
    %v218 = vunpack.c.h.b16 %v198
    %v219 = vunpack.c.l.b16 %v199
    %v220 = vunpack.c.h.b16 %v199
    %v221 = vunpack.c.l.b16 %v200
    %v222 = vunpack.c.h.b16 %v200
    %v223 = vunpack.c.l.b16 %v201
    %v224 = vunpack.c.h.b16 %v201
    %v225 = vunpack.c.l.b16 %v202
    %v226 = vunpack.c.h.b16 %v202
    %v227 = vpack.c.b16 %v213, %v211
    %v228 = vpack.c.b16 %v214, %v212
    %v229 = vpack.c.b16 %v217, %v215
    %v230 = vpack.c.b16 %v218, %v216
    %v231 = vpack.c.b16 %v221, %v219
    %v232 = vpack.c.b16 %v222, %v220
    %v233 = vpack.c.b16 %v225, %v223
    %v234 = vpack.c.b16 %v226, %v224
    %vm243 = vcmask 523264
    %v245 = vsel %vm243, %v194, 0
    %247 = vmatpush.bf16.msra.mxu0 0
    %248 = vmatpush.bf16.msra.mxu0 0
    %249 = vmatpush.bf16.msra.mxu0 0
    %250 = vmatpush.bf16.msra.mxu0 0
    %251 = vmatpush.bf16.msra.mxu0 %v233
    %252 = vmatpush.bf16.msra.mxu0 %v231
    %253 = vmatpush.bf16.msra.mxu0 %v229
    %254 = vmatpush.bf16.msra.mxu0 %v227
    %255 = vmatmul.bf16.gmra.mxu0 %v245
    %v256 = vpop.f32.mrf.mxu0
    %v257 = vadd.f32 0.0, %v256
    %v258 = vpop.f32.mrf.mxu0
    %259 = vdwg.mxu0
    %260 = vmatpush.bf16.msra.mxu0 0
    %261 = vmatpush.bf16.msra.mxu0 0
    %262 = vmatpush.bf16.msra.mxu0 0
    %263 = vmatpush.bf16.msra.mxu0 0
    %264 = vmatpush.bf16.msra.mxu0 %v234
    %265 = vmatpush.bf16.msra.mxu0 %v232
    %266 = vmatpush.bf16.msra.mxu0 %v230
    %267 = vmatpush.bf16.msra.mxu0 %v228
    %268 = vmatmul.bf16.gmra.mxu0 %v245
    %v269 = vpop.f32.mrf.mxu0
    %v270 = vadd.f32 0.0, %v269
    %v271 = vpop.f32.mrf.mxu0
    %272 = vdwg.mxu0
    %vm273 = vcmask 1041408
    %v274 = vsel %vm273, %v257, 0.0
    %v275 = vrot.slane %v274, 4
    %v276 = vadd.f32 %v274, %v275
    %v277 = vrot.slane %v276, 2
    %v278 = vadd.f32 %v276, %v277
    %v279 = vrot.slane %v278, 1
    %v280 = vadd.f32 %v278, %v279
    %v281 = vsel %vm273, %v270, 0.0
    %v282 = vrot.slane %v281, 4
    %v283 = vadd.f32 %v281, %v282
    %v284 = vrot.slane %v283, 2
    %v285 = vadd.f32 %v283, %v284
    %v286 = vrot.slane %v285, 1
    %v287 = vadd.f32 %v285, %v286
    %v288 = vmul.f32 %v257, %v257
    %v289 = vmul.f32 %v270, %v270
    %v290 = vsel %vm273, %v288, 0.0
    %v291 = vrot.slane %v290, 4
    %v292 = vadd.f32 %v290, %v291
    %v293 = vrot.slane %v292, 2
    %v294 = vadd.f32 %v292, %v293
    %v295 = vrot.slane %v294, 1
    %v296 = vadd.f32 %v294, %v295
    %v297 = vsel %vm273, %v289, 0.0
    %v298 = vrot.slane %v297, 4
    %v299 = vadd.f32 %v297, %v298
    %v300 = vrot.slane %v299, 2
    %v301 = vadd.f32 %v299, %v300
    %v302 = vrot.slane %v301, 1
    %v303 = vadd.f32 %v301, %v302
    %v304 = vlaneseq
    %v305 = vshrl.u32 %v304, 7
    %vm306 = vcmp.eq.s32.totalorder %v305, 0
    %v307 = vsel %vm306, %v280, %v296
    %v308 = vsel %vm306, %v287, %v303
    %v309 = vld [vmem:[%s2] sm:$0xff]
    %v310 = vld [vmem:[%s2 + $0x8] sm:$0xff]
    %v311 = vld [vmem:[%s2 + $0x10] sm:$0xff]
    %v312 = vld [vmem:[%s2 + $0x18] sm:$0xff]
    %v313 = vld [vmem:[%s2 + $0x20] sm:$0xff]
    %v314 = vld [vmem:[%s2 + $0x28] sm:$0xff]
    %v315 = vld [vmem:[%s2 + $0x30] sm:$0xff]
    %v316 = vld [vmem:[%s2 + $0x38] sm:$0xff]
    %v317 = vld [vmem:[%s2 + $0x40] sm:$0xff]
    %v318 = vld [vmem:[%s2 + $0x48] sm:$0xff]
    %v319 = vld [vmem:[%s2 + $0x50] sm:$0xff]
    %v320 = vld [vmem:[%s2 + $0x58] sm:$0xff]
    %v321 = vld [vmem:[%s2 + $0x60] sm:$0xff]
    %v322 = vld [vmem:[%s2 + $0x68] sm:$0xff]
    %v323 = vld [vmem:[%s2 + $0x70] sm:$0xff]
    %v324 = vld [vmem:[%s2 + $0x78] sm:$0xff]
    %v325 = vld [vmem:[%s2 + $0x80] sm:$0xff]
    %v326 = vld [vmem:[%s2 + $0x88] sm:$0xff]
    %v327 = vld [vmem:[%s2 + $0x90] sm:$0xff]
    %v328 = vld [vmem:[%s2 + $0x98] sm:$0xff]
    %v329 = vld [vmem:[%s2 + $0xa0] sm:$0xff]
    %v330 = vld [vmem:[%s2 + $0xa8] sm:$0xff]
    %v331 = vld [vmem:[%s2 + $0xb0] sm:$0xff]
    %v332 = vld [vmem:[%s2 + $0xb8] sm:$0xff]
    %v333 = vld [vmem:[%s2 + $0xc0] sm:$0xff]
    %v334 = vld [vmem:[%s2 + $0xc8] sm:$0xff]
    %v335 = vld [vmem:[%s2 + $0xd0] sm:$0xff]
    %v336 = vld [vmem:[%s2 + $0xd8] sm:$0xff]
    %v337 = vld [vmem:[%s2 + $0xe0] sm:$0xff]
    %v338 = vld [vmem:[%s2 + $0xe8] sm:$0xff]
    %v339 = vld [vmem:[%s2 + $0xf0] sm:$0xff]
    %v340 = vld [vmem:[%s2 + $0xf8] sm:$0xff]
    %341 = vmatpush.msra.mxu0 %v324
    %342 = vmatpush.msra.mxu0 %v323
    %343 = vmatpush.msra.mxu0 %v322
    %344 = vmatpush.msra.mxu0 %v321
    %345 = vmatpush.msra.mxu0 %v320
    %346 = vmatpush.msra.mxu0 %v319
    %347 = vmatpush.msra.mxu0 %v318
    %348 = vmatpush.msra.mxu0 %v317
    %349 = vmatpush.msra.mxu0 %v316
    %350 = vmatpush.msra.mxu0 %v315
    %351 = vmatpush.msra.mxu0 %v314
    %352 = vmatpush.msra.mxu0 %v313
    %353 = vmatpush.msra.mxu0 %v312
    %354 = vmatpush.msra.mxu0 %v311
    %355 = vmatpush.msra.mxu0 %v310
    %356 = vmatpush.msra.mxu0 %v309
    %357 = vmatmul.f32.gmra.mxu0 %v307
    %v358 = vpop.f32.mrf.mxu0
    %v359 = vadd.f32 0.0, %v358
    %360 = vdwg.mxu0
    %361 = vmatpush.msra.mxu0 %v340
    %362 = vmatpush.msra.mxu0 %v339
    %363 = vmatpush.msra.mxu0 %v338
    %364 = vmatpush.msra.mxu0 %v337
    %365 = vmatpush.msra.mxu0 %v336
    %366 = vmatpush.msra.mxu0 %v335
    %367 = vmatpush.msra.mxu0 %v334
    %368 = vmatpush.msra.mxu0 %v333
    %369 = vmatpush.msra.mxu0 %v332
    %370 = vmatpush.msra.mxu0 %v331
    %371 = vmatpush.msra.mxu0 %v330
    %372 = vmatpush.msra.mxu0 %v329
    %373 = vmatpush.msra.mxu0 %v328
    %374 = vmatpush.msra.mxu0 %v327
    %375 = vmatpush.msra.mxu0 %v326
    %376 = vmatpush.msra.mxu0 %v325
    %377 = vmatmul.f32.gmra.mxu0 %v308
    %v378 = vpop.f32.mrf.mxu0
    %v379 = vadd.f32 %v359, %v378
    %380 = vdwg.mxu0
    %v381 = vmul.f32 %v379, 0.0625
    %v382 = vmul.f32 %v381, %v381
    %v384 = vrot.slane %v382, 7
    %v386 = vsub.f32 %v381, %v384
    %v387 = vmax.f32 %v386, 0.0
    %v388 = vld [vmem:[#allocation7] sm:$0x1]
    %v389 = vadd.f32 %v387, 0.001
    %v390 = vrsqrt.pop %v389
    %v391 = vmul.f32 %v390, %v389
    %v392 = vmul.f32 %v391, %v390
    %v393 = vmul.f32 0.5, %v392
    %v394 = vsub.f32 1.5, %v393
    %v395 = vmul.f32 %v390, %v394
    %vm396 = vweird.f32 %v389
    %vm397 = vweird.f32 %v390
    %vm398 = vmor %vm396, %vm397
    %v399 = vsel %vm398, %v390, %v395
    %v401 = vrot.slane %v399, 1
    %v403 = vmul.f32 %v388, %v401
    %v404 = vld [vmem:[#allocation7 + $0x1] sm:$0x1]
    %v405 = vmul.f32 %v381, %v403
    %v406 = vsub.f32 %v404, %v405
    %v407 = vperm.slane %v403, 0
    %v408 = vperm.slane %v406, 0
    %v409 = vsel %vm306, %v407, %v408
    %v410 = vld [vmem:[#allocation5] sm:$0xff]
    %v411 = vld [vmem:[#allocation5 + $0x8] sm:$0xff]
    %v412 = vld [vmem:[#allocation5 + $0x10] sm:$0xff]
    %v413 = vld [vmem:[#allocation5 + $0x18] sm:$0xff]
    %v414 = vld [vmem:[#allocation5 + $0x20] sm:$0xff]
    %v415 = vld [vmem:[#allocation5 + $0x28] sm:$0xff]
    %v416 = vld [vmem:[#allocation5 + $0x30] sm:$0xff]
    %v417 = vld [vmem:[#allocation5 + $0x38] sm:$0xff]
    %vm418 = vcmask 261120
    %v420 = vsel %vm418, %v409, 0
    %422 = vmatpush.msra.mxu0 0.0
    %423 = vmatpush.msra.mxu0 0.0
    %424 = vmatpush.msra.mxu0 0.0
    %425 = vmatpush.msra.mxu0 0.0
    %426 = vmatpush.msra.mxu0 0.0
    %427 = vmatpush.msra.mxu0 0.0
    %428 = vmatpush.msra.mxu0 0.0
    %429 = vmatpush.msra.mxu0 0.0
    %430 = vmatpush.msra.mxu0 0.0
    %431 = vmatpush.msra.mxu0 0.0
    %432 = vmatpush.msra.mxu0 0.0
    %433 = vmatpush.msra.mxu0 0.0
    %434 = vmatpush.msra.mxu0 %v416
    %435 = vmatpush.msra.mxu0 %v414
    %436 = vmatpush.msra.mxu0 %v412
    %437 = vmatpush.msra.mxu0 %v410
    %438 = vmatmul.f32.gmra.mxu0 %v420
    %v439 = vpop.f32.mrf.mxu0
    %v440 = vadd.f32 0.0, %v439
    %441 = vdwg.mxu0
    %442 = vmatpush.msra.mxu0 0.0
    %443 = vmatpush.msra.mxu0 0.0
    %444 = vmatpush.msra.mxu0 0.0
    %445 = vmatpush.msra.mxu0 0.0
    %446 = vmatpush.msra.mxu0 0.0
    %447 = vmatpush.msra.mxu0 0.0
    %448 = vmatpush.msra.mxu0 0.0
    %449 = vmatpush.msra.mxu0 0.0
    %450 = vmatpush.msra.mxu0 0.0
    %451 = vmatpush.msra.mxu0 0.0
    %452 = vmatpush.msra.mxu0 0.0
    %453 = vmatpush.msra.mxu0 0.0
    %454 = vmatpush.msra.mxu0 %v417
    %455 = vmatpush.msra.mxu0 %v415
    %456 = vmatpush.msra.mxu0 %v413
    %457 = vmatpush.msra.mxu0 %v411
    %458 = vmatmul.f32.gmra.mxu0 %v420
    %v459 = vpop.f32.mrf.mxu0
    %v460 = vadd.f32 0.0, %v459
    %461 = vdwg.mxu0
    %v462 = vperm.slane %v440, 0
    %v463 = vperm.slane %v460, 0
    %v464 = vmul.f32 %v257, %v462
    %v465 = vmul.f32 %v270, %v463
    %v466 = vperm.slane %v440, 1
    %v467 = vperm.slane %v460, 1
    %v468 = vadd.f32 %v464, %v466
    %v469 = vadd.f32 %v465, %v467
    %v470 = vmul.f32 %v468, 0.2
    %v471 = vmul.f32 %v469, 0.2
    %v472 = vmax.f32 %v468, %v470
    %v473 = vmax.f32 %v469, %v471
    %v474 = vpack.c.bf16 %v472, %v472
    %v475 = vpack.c.bf16 %v473, %v473
    %v476 = vld [vmem:[#allocation8] sm:$0xff]
    %v477 = vld [vmem:[#allocation8 + $0x8] sm:$0xff]
    %v478 = vld [vmem:[#allocation8 + $0x10] sm:$0xff]
    %v479 = vld [vmem:[#allocation8 + $0x18] sm:$0xff]
    %v480 = vld [vmem:[#allocation8 + $0x20] sm:$0xff]
    %v481 = vld [vmem:[#allocation8 + $0x28] sm:$0xff]
    %v482 = vld [vmem:[#allocation8 + $0x30] sm:$0xff]
    %v483 = vld [vmem:[#allocation8 + $0x38] sm:$0xff]
    %v484 = vld [vmem:[#allocation8 + $0x40] sm:$0xff]
    %v485 = vld [vmem:[#allocation8 + $0x48] sm:$0xff]
    %v486 = vld [vmem:[#allocation8 + $0x50] sm:$0xff]
    %v487 = vld [vmem:[#allocation8 + $0x58] sm:$0xff]
    %v488 = vld [vmem:[#allocation8 + $0x60] sm:$0xff]
    %v489 = vld [vmem:[#allocation8 + $0x68] sm:$0xff]
    %v490 = vld [vmem:[#allocation8 + $0x70] sm:$0xff]
    %v491 = vld [vmem:[#allocation8 + $0x78] sm:$0xff]
    %v492 = vld [vmem:[#allocation8 + $0x80] sm:$0xff]
    %v493 = vld [vmem:[#allocation8 + $0x88] sm:$0xff]
    %v494 = vld [vmem:[#allocation8 + $0x90] sm:$0xff]
    %v495 = vld [vmem:[#allocation8 + $0x98] sm:$0xff]
    %v496 = vld [vmem:[#allocation8 + $0xa0] sm:$0xff]
    %v497 = vld [vmem:[#allocation8 + $0xa8] sm:$0xff]
    %v498 = vld [vmem:[#allocation8 + $0xb0] sm:$0xff]
    %v499 = vld [vmem:[#allocation8 + $0xb8] sm:$0xff]
    %v500 = vld [vmem:[#allocation8 + $0xc0] sm:$0xff]
    %v501 = vld [vmem:[#allocation8 + $0xc8] sm:$0xff]
    %v502 = vld [vmem:[#allocation8 + $0xd0] sm:$0xff]
    %v503 = vld [vmem:[#allocation8 + $0xd8] sm:$0xff]
    %v504 = vld [vmem:[#allocation8 + $0xe0] sm:$0xff]
    %v505 = vld [vmem:[#allocation8 + $0xe8] sm:$0xff]
    %v506 = vld [vmem:[#allocation8 + $0xf0] sm:$0xff]
    %v507 = vld [vmem:[#allocation8 + $0xf8] sm:$0xff]
    %v540 = vunpack.c.l.b16 %v476
    %v541 = vunpack.c.h.b16 %v476
    %v542 = vunpack.c.l.b16 %v477
    %v543 = vunpack.c.h.b16 %v477
    %v544 = vunpack.c.l.b16 %v478
    %v545 = vunpack.c.h.b16 %v478
    %v546 = vunpack.c.l.b16 %v479
    %v547 = vunpack.c.h.b16 %v479
    %v548 = vunpack.c.l.b16 %v480
    %v549 = vunpack.c.h.b16 %v480
    %v550 = vunpack.c.l.b16 %v481
    %v551 = vunpack.c.h.b16 %v481
    %v552 = vunpack.c.l.b16 %v482
    %v553 = vunpack.c.h.b16 %v482
    %v554 = vunpack.c.l.b16 %v483
    %v555 = vunpack.c.h.b16 %v483
    %v556 = vunpack.c.l.b16 %v484
    %v557 = vunpack.c.h.b16 %v484
    %v558 = vunpack.c.l.b16 %v485
    %v559 = vunpack.c.h.b16 %v485
    %v560 = vunpack.c.l.b16 %v486
    %v561 = vunpack.c.h.b16 %v486
    %v562 = vunpack.c.l.b16 %v487
    %v563 = vunpack.c.h.b16 %v487
    %v564 = vunpack.c.l.b16 %v488
    %v565 = vunpack.c.h.b16 %v488
    %v566 = vunpack.c.l.b16 %v489
    %v567 = vunpack.c.h.b16 %v489
    %v568 = vunpack.c.l.b16 %v490
    %v569 = vunpack.c.h.b16 %v490
    %v570 = vunpack.c.l.b16 %v491
    %v571 = vunpack.c.h.b16 %v491
    %v572 = vunpack.c.l.b16 %v492
    %v573 = vunpack.c.h.b16 %v492
    %v574 = vunpack.c.l.b16 %v493
    %v575 = vunpack.c.h.b16 %v493
    %v576 = vunpack.c.l.b16 %v494
    %v577 = vunpack.c.h.b16 %v494
    %v578 = vunpack.c.l.b16 %v495
    %v579 = vunpack.c.h.b16 %v495
    %v580 = vunpack.c.l.b16 %v496
    %v581 = vunpack.c.h.b16 %v496
    %v582 = vunpack.c.l.b16 %v497
    %v583 = vunpack.c.h.b16 %v497
    %v584 = vunpack.c.l.b16 %v498
    %v585 = vunpack.c.h.b16 %v498
    %v586 = vunpack.c.l.b16 %v499
    %v587 = vunpack.c.h.b16 %v499
    %v588 = vunpack.c.l.b16 %v500
    %v589 = vunpack.c.h.b16 %v500
    %v590 = vunpack.c.l.b16 %v501
    %v591 = vunpack.c.h.b16 %v501
    %v592 = vunpack.c.l.b16 %v502
    %v593 = vunpack.c.h.b16 %v502
    %v594 = vunpack.c.l.b16 %v503
    %v595 = vunpack.c.h.b16 %v503
    %v596 = vunpack.c.l.b16 %v504
    %v597 = vunpack.c.h.b16 %v504
    %v598 = vunpack.c.l.b16 %v505
    %v599 = vunpack.c.h.b16 %v505
    %v600 = vunpack.c.l.b16 %v506
    %v601 = vunpack.c.h.b16 %v506
    %v602 = vunpack.c.l.b16 %v507
    %v603 = vunpack.c.h.b16 %v507
    %v604 = vpack.c.b16 %v542, %v540
    %v605 = vpack.c.b16 %v543, %v541
    %v606 = vpack.c.b16 %v546, %v544
    %v607 = vpack.c.b16 %v547, %v545
    %v608 = vpack.c.b16 %v550, %v548
    %v609 = vpack.c.b16 %v551, %v549
    %v610 = vpack.c.b16 %v554, %v552
    %v611 = vpack.c.b16 %v555, %v553
    %v612 = vpack.c.b16 %v558, %v556
    %v613 = vpack.c.b16 %v559, %v557
    %v614 = vpack.c.b16 %v562, %v560
    %v615 = vpack.c.b16 %v563, %v561
    %v616 = vpack.c.b16 %v566, %v564
    %v617 = vpack.c.b16 %v567, %v565
    %v618 = vpack.c.b16 %v570, %v568
    %v619 = vpack.c.b16 %v571, %v569
    %v620 = vpack.c.b16 %v574, %v572
    %v621 = vpack.c.b16 %v575, %v573
    %v622 = vpack.c.b16 %v578, %v576
    %v623 = vpack.c.b16 %v579, %v577
    %v624 = vpack.c.b16 %v582, %v580
    %v625 = vpack.c.b16 %v583, %v581
    %v626 = vpack.c.b16 %v586, %v584
    %v627 = vpack.c.b16 %v587, %v585
    %v628 = vpack.c.b16 %v590, %v588
    %v629 = vpack.c.b16 %v591, %v589
    %v630 = vpack.c.b16 %v594, %v592
    %v631 = vpack.c.b16 %v595, %v593
    %v632 = vpack.c.b16 %v598, %v596
    %v633 = vpack.c.b16 %v599, %v597
    %v634 = vpack.c.b16 %v602, %v600
    %v635 = vpack.c.b16 %v603, %v601
    %668 = vmatpush.bf16.msra.mxu0 %v618
    %669 = vmatpush.bf16.msra.mxu0 %v616
    %670 = vmatpush.bf16.msra.mxu0 %v614
    %671 = vmatpush.bf16.msra.mxu0 %v612
    %672 = vmatpush.bf16.msra.mxu0 %v610
    %673 = vmatpush.bf16.msra.mxu0 %v608
    %674 = vmatpush.bf16.msra.mxu0 %v606
    %675 = vmatpush.bf16.msra.mxu0 %v604
    %676 = vmatmul.bf16.gmra.mxu0 %v474
    %v677 = vpop.f32.mrf.mxu0
    %v678 = vadd.f32 0.0, %v677
    %v679 = vpop.f32.mrf.mxu0
    %680 = vdwg.mxu0
    %681 = vmatpush.bf16.msra.mxu0 %v634
    %682 = vmatpush.bf16.msra.mxu0 %v632
    %683 = vmatpush.bf16.msra.mxu0 %v630
    %684 = vmatpush.bf16.msra.mxu0 %v628
    %685 = vmatpush.bf16.msra.mxu0 %v626
    %686 = vmatpush.bf16.msra.mxu0 %v624
    %687 = vmatpush.bf16.msra.mxu0 %v622
    %688 = vmatpush.bf16.msra.mxu0 %v620
    %689 = vmatmul.bf16.gmra.mxu0 %v475
    %v690 = vpop.f32.mrf.mxu0
    %v691 = vadd.f32 %v678, %v690
    %v692 = vpop.f32.mrf.mxu0
    %693 = vdwg.mxu0
    %694 = vmatpush.bf16.msra.mxu0 %v619
    %695 = vmatpush.bf16.msra.mxu0 %v617
    %696 = vmatpush.bf16.msra.mxu0 %v615
    %697 = vmatpush.bf16.msra.mxu0 %v613
    %698 = vmatpush.bf16.msra.mxu0 %v611
    %699 = vmatpush.bf16.msra.mxu0 %v609
    %700 = vmatpush.bf16.msra.mxu0 %v607
    %701 = vmatpush.bf16.msra.mxu0 %v605
    %702 = vmatmul.bf16.gmra.mxu0 %v474
    %v703 = vpop.f32.mrf.mxu0
    %v704 = vadd.f32 0.0, %v703
    %v705 = vpop.f32.mrf.mxu0
    %706 = vdwg.mxu0
    %707 = vmatpush.bf16.msra.mxu0 %v635
    %708 = vmatpush.bf16.msra.mxu0 %v633
    %709 = vmatpush.bf16.msra.mxu0 %v631
    %710 = vmatpush.bf16.msra.mxu0 %v629
    %711 = vmatpush.bf16.msra.mxu0 %v627
    %712 = vmatpush.bf16.msra.mxu0 %v625
    %713 = vmatpush.bf16.msra.mxu0 %v623
    %714 = vmatpush.bf16.msra.mxu0 %v621
    %715 = vmatmul.bf16.gmra.mxu0 %v475
    %v716 = vpop.f32.mrf.mxu0
    %v717 = vadd.f32 %v704, %v716
    %v718 = vpop.f32.mrf.mxu0
    %719 = vdwg.mxu0
    %v720 = vsel %vm273, %v691, 0.0
    %v721 = vrot.slane %v720, 4
    %v722 = vadd.f32 %v720, %v721
    %v723 = vrot.slane %v722, 2
    %v724 = vadd.f32 %v722, %v723
    %v725 = vrot.slane %v724, 1
    %v726 = vadd.f32 %v724, %v725
    %v727 = vsel %vm273, %v717, 0.0
    %v728 = vrot.slane %v727, 4
    %v729 = vadd.f32 %v727, %v728
    %v730 = vrot.slane %v729, 2
    %v731 = vadd.f32 %v729, %v730
    %v732 = vrot.slane %v731, 1
    %v733 = vadd.f32 %v731, %v732
    %v734 = vmul.f32 %v691, %v691
    %v735 = vmul.f32 %v717, %v717
    %v736 = vsel %vm273, %v734, 0.0
    %v737 = vrot.slane %v736, 4
    %v738 = vadd.f32 %v736, %v737
    %v739 = vrot.slane %v738, 2
    %v740 = vadd.f32 %v738, %v739
    %v741 = vrot.slane %v740, 1
    %v742 = vadd.f32 %v740, %v741
    %v743 = vsel %vm273, %v735, 0.0
    %v744 = vrot.slane %v743, 4
    %v745 = vadd.f32 %v743, %v744
    %v746 = vrot.slane %v745, 2
    %v747 = vadd.f32 %v745, %v746
    %v748 = vrot.slane %v747, 1
    %v749 = vadd.f32 %v747, %v748
    %v750 = vsel %vm306, %v726, %v742
    %v751 = vsel %vm306, %v733, %v749
    %v752 = vld [vmem:[%s6] sm:$0xff]
    %v753 = vld [vmem:[%s6 + $0x8] sm:$0xff]
    %v754 = vld [vmem:[%s6 + $0x10] sm:$0xff]
    %v755 = vld [vmem:[%s6 + $0x18] sm:$0xff]
    %v756 = vld [vmem:[%s6 + $0x20] sm:$0xff]
    %v757 = vld [vmem:[%s6 + $0x28] sm:$0xff]
    %v758 = vld [vmem:[%s6 + $0x30] sm:$0xff]
    %v759 = vld [vmem:[%s6 + $0x38] sm:$0xff]
    %v760 = vld [vmem:[%s6 + $0x40] sm:$0xff]
    %v761 = vld [vmem:[%s6 + $0x48] sm:$0xff]
    %v762 = vld [vmem:[%s6 + $0x50] sm:$0xff]
    %v763 = vld [vmem:[%s6 + $0x58] sm:$0xff]
    %v764 = vld [vmem:[%s6 + $0x60] sm:$0xff]
    %v765 = vld [vmem:[%s6 + $0x68] sm:$0xff]
    %v766 = vld [vmem:[%s6 + $0x70] sm:$0xff]
    %v767 = vld [vmem:[%s6 + $0x78] sm:$0xff]
    %v768 = vld [vmem:[%s6 + $0x80] sm:$0xff]
    %v769 = vld [vmem:[%s6 + $0x88] sm:$0xff]
    %v770 = vld [vmem:[%s6 + $0x90] sm:$0xff]
    %v771 = vld [vmem:[%s6 + $0x98] sm:$0xff]
    %v772 = vld [vmem:[%s6 + $0xa0] sm:$0xff]
    %v773 = vld [vmem:[%s6 + $0xa8] sm:$0xff]
    %v774 = vld [vmem:[%s6 + $0xb0] sm:$0xff]
    %v775 = vld [vmem:[%s6 + $0xb8] sm:$0xff]
    %v776 = vld [vmem:[%s6 + $0xc0] sm:$0xff]
    %v777 = vld [vmem:[%s6 + $0xc8] sm:$0xff]
    %v778 = vld [vmem:[%s6 + $0xd0] sm:$0xff]
    %v779 = vld [vmem:[%s6 + $0xd8] sm:$0xff]
    %v780 = vld [vmem:[%s6 + $0xe0] sm:$0xff]
    %v781 = vld [vmem:[%s6 + $0xe8] sm:$0xff]
    %v782 = vld [vmem:[%s6 + $0xf0] sm:$0xff]
    %v783 = vld [vmem:[%s6 + $0xf8] sm:$0xff]
    %784 = vmatpush.msra.mxu0 %v767
    %785 = vmatpush.msra.mxu0 %v766
    %786 = vmatpush.msra.mxu0 %v765
    %787 = vmatpush.msra.mxu0 %v764
    %788 = vmatpush.msra.mxu0 %v763
    %789 = vmatpush.msra.mxu0 %v762
    %790 = vmatpush.msra.mxu0 %v761
    %791 = vmatpush.msra.mxu0 %v760
    %792 = vmatpush.msra.mxu0 %v759
    %793 = vmatpush.msra.mxu0 %v758
    %794 = vmatpush.msra.mxu0 %v757
    %795 = vmatpush.msra.mxu0 %v756
    %796 = vmatpush.msra.mxu0 %v755
    %797 = vmatpush.msra.mxu0 %v754
    %798 = vmatpush.msra.mxu0 %v753
    %799 = vmatpush.msra.mxu0 %v752
    %800 = vmatmul.f32.gmra.mxu0 %v750
    %v801 = vpop.f32.mrf.mxu0
    %v802 = vadd.f32 0.0, %v801
    %803 = vdwg.mxu0
    %804 = vmatpush.msra.mxu0 %v783
    %805 = vmatpush.msra.mxu0 %v782
    %806 = vmatpush.msra.mxu0 %v781
    %807 = vmatpush.msra.mxu0 %v780
    %808 = vmatpush.msra.mxu0 %v779
    %809 = vmatpush.msra.mxu0 %v778
    %810 = vmatpush.msra.mxu0 %v777
    %811 = vmatpush.msra.mxu0 %v776
    %812 = vmatpush.msra.mxu0 %v775
    %813 = vmatpush.msra.mxu0 %v774
    %814 = vmatpush.msra.mxu0 %v773
    %815 = vmatpush.msra.mxu0 %v772
    %816 = vmatpush.msra.mxu0 %v771
    %817 = vmatpush.msra.mxu0 %v770
    %818 = vmatpush.msra.mxu0 %v769
    %819 = vmatpush.msra.mxu0 %v768
    %820 = vmatmul.f32.gmra.mxu0 %v751
    %v821 = vpop.f32.mrf.mxu0
    %v822 = vadd.f32 %v802, %v821
    %823 = vdwg.mxu0
    %v824 = vmul.f32 %v822, 0.125
    %v825 = vmul.f32 %v824, %v824
    %v827 = vrot.slane %v825, 7
    %v829 = vsub.f32 %v824, %v827
    %v830 = vmax.f32 %v829, 0.0
    %v831 = vld [vmem:[#allocation11] sm:$0x1]
    %v832 = vadd.f32 %v830, 0.001
    %v833 = vrsqrt.pop %v832
    %v834 = vmul.f32 %v833, %v832
    %v835 = vmul.f32 %v834, %v833
    %v836 = vmul.f32 0.5, %v835
    %v837 = vsub.f32 1.5, %v836
    %v838 = vmul.f32 %v833, %v837
    %vm839 = vweird.f32 %v832
    %vm840 = vweird.f32 %v833
    %vm841 = vmor %vm839, %vm840
    %v842 = vsel %vm841, %v833, %v838
    %v844 = vrot.slane %v842, 1
    %v846 = vmul.f32 %v831, %v844
    %v847 = vld [vmem:[#allocation11 + $0x1] sm:$0x1]
    %v848 = vmul.f32 %v824, %v846
    %v849 = vsub.f32 %v847, %v848
    %v850 = vperm.slane %v846, 0
    %v851 = vperm.slane %v849, 0
    %v852 = vsel %vm306, %v850, %v851
    %v853 = vld [vmem:[#allocation10] sm:$0xff]
    %v854 = vld [vmem:[#allocation10 + $0x8] sm:$0xff]
    %v855 = vld [vmem:[#allocation10 + $0x10] sm:$0xff]
    %v856 = vld [vmem:[#allocation10 + $0x18] sm:$0xff]
    %v857 = vld [vmem:[#allocation10 + $0x20] sm:$0xff]
    %v858 = vld [vmem:[#allocation10 + $0x28] sm:$0xff]
    %v859 = vld [vmem:[#allocation10 + $0x30] sm:$0xff]
    %v860 = vld [vmem:[#allocation10 + $0x38] sm:$0xff]
    %v861 = vld [vmem:[#allocation10 + $0x40] sm:$0xff]
    %v862 = vld [vmem:[#allocation10 + $0x48] sm:$0xff]
    %v863 = vld [vmem:[#allocation10 + $0x50] sm:$0xff]
    %v864 = vld [vmem:[#allocation10 + $0x58] sm:$0xff]
    %v865 = vld [vmem:[#allocation10 + $0x60] sm:$0xff]
    %v866 = vld [vmem:[#allocation10 + $0x68] sm:$0xff]
    %v867 = vld [vmem:[#allocation10 + $0x70] sm:$0xff]
    %v868 = vld [vmem:[#allocation10 + $0x78] sm:$0xff]
    %v870 = vsel %vm243, %v852, 0
    %872 = vmatpush.msra.mxu0 0.0
    %873 = vmatpush.msra.mxu0 0.0
    %874 = vmatpush.msra.mxu0 0.0
    %875 = vmatpush.msra.mxu0 0.0
    %876 = vmatpush.msra.mxu0 0.0
    %877 = vmatpush.msra.mxu0 0.0
    %878 = vmatpush.msra.mxu0 0.0
    %879 = vmatpush.msra.mxu0 0.0
    %880 = vmatpush.msra.mxu0 %v867
    %881 = vmatpush.msra.mxu0 %v865
    %882 = vmatpush.msra.mxu0 %v863
    %883 = vmatpush.msra.mxu0 %v861
    %884 = vmatpush.msra.mxu0 %v859
    %885 = vmatpush.msra.mxu0 %v857
    %886 = vmatpush.msra.mxu0 %v855
    %887 = vmatpush.msra.mxu0 %v853
    %888 = vmatmul.f32.gmra.mxu0 %v870
    %v889 = vpop.f32.mrf.mxu0
    %v890 = vadd.f32 0.0, %v889
    %891 = vdwg.mxu0
    %892 = vmatpush.msra.mxu0 0.0
    %893 = vmatpush.msra.mxu0 0.0
    %894 = vmatpush.msra.mxu0 0.0
    %895 = vmatpush.msra.mxu0 0.0
    %896 = vmatpush.msra.mxu0 0.0
    %897 = vmatpush.msra.mxu0 0.0
    %898 = vmatpush.msra.mxu0 0.0
    %899 = vmatpush.msra.mxu0 0.0
    %900 = vmatpush.msra.mxu0 %v868
    %901 = vmatpush.msra.mxu0 %v866
    %902 = vmatpush.msra.mxu0 %v864
    %903 = vmatpush.msra.mxu0 %v862
    %904 = vmatpush.msra.mxu0 %v860
    %905 = vmatpush.msra.mxu0 %v858
    %906 = vmatpush.msra.mxu0 %v856
    %907 = vmatpush.msra.mxu0 %v854
    %908 = vmatmul.f32.gmra.mxu0 %v870
    %v909 = vpop.f32.mrf.mxu0
    %v910 = vadd.f32 0.0, %v909
    %911 = vdwg.mxu0
    %v912 = vperm.slane %v890, 0
    %v913 = vperm.slane %v910, 0
    %v914 = vmul.f32 %v691, %v912
    %v915 = vmul.f32 %v717, %v913
    %v916 = vperm.slane %v890, 1
    %v917 = vperm.slane %v910, 1
    %v918 = vadd.f32 %v914, %v916
    %v919 = vadd.f32 %v915, %v917
    %v920 = vmul.f32 %v918, 0.2
    %v921 = vmul.f32 %v919, 0.2
    %v922 = vmax.f32 %v918, %v920
    %v923 = vmax.f32 %v919, %v921
    %v924 = vpack.c.bf16 %v922, %v922
    %v925 = vpack.c.bf16 %v923, %v923
    %v926 = vld [vmem:[%s9] sm:$0xff]
    %v927 = vld [vmem:[%s9 + $0x8] sm:$0xff]
    %v928 = vld [vmem:[%s9 + $0x10] sm:$0xff]
    %v929 = vld [vmem:[%s9 + $0x18] sm:$0xff]
    %v930 = vld [vmem:[%s9 + $0x20] sm:$0xff]
    %v931 = vld [vmem:[%s9 + $0x28] sm:$0xff]
    %v932 = vld [vmem:[%s9 + $0x30] sm:$0xff]
    %v933 = vld [vmem:[%s9 + $0x38] sm:$0xff]
    %v934 = vld [vmem:[%s9 + $0x40] sm:$0xff]
    %v935 = vld [vmem:[%s9 + $0x48] sm:$0xff]
    %v936 = vld [vmem:[%s9 + $0x50] sm:$0xff]
    %v937 = vld [vmem:[%s9 + $0x58] sm:$0xff]
    %v938 = vld [vmem:[%s9 + $0x60] sm:$0xff]
    %v939 = vld [vmem:[%s9 + $0x68] sm:$0xff]
    %v940 = vld [vmem:[%s9 + $0x70] sm:$0xff]
    %v941 = vld [vmem:[%s9 + $0x78] sm:$0xff]
    %v942 = vld [vmem:[%s9 + $0x80] sm:$0xff]
    %v943 = vld [vmem:[%s9 + $0x88] sm:$0xff]
    %v944 = vld [vmem:[%s9 + $0x90] sm:$0xff]
    %v945 = vld [vmem:[%s9 + $0x98] sm:$0xff]
    %v946 = vld [vmem:[%s9 + $0xa0] sm:$0xff]
    %v947 = vld [vmem:[%s9 + $0xa8] sm:$0xff]
    %v948 = vld [vmem:[%s9 + $0xb0] sm:$0xff]
    %v949 = vld [vmem:[%s9 + $0xb8] sm:$0xff]
    %v950 = vld [vmem:[%s9 + $0xc0] sm:$0xff]
    %v951 = vld [vmem:[%s9 + $0xc8] sm:$0xff]
    %v952 = vld [vmem:[%s9 + $0xd0] sm:$0xff]
    %v953 = vld [vmem:[%s9 + $0xd8] sm:$0xff]
    %v954 = vld [vmem:[%s9 + $0xe0] sm:$0xff]
    %v955 = vld [vmem:[%s9 + $0xe8] sm:$0xff]
    %v956 = vld [vmem:[%s9 + $0xf0] sm:$0xff]
    %v957 = vld [vmem:[%s9 + $0xf8] sm:$0xff]
    %v958 = vld [vmem:[%s9 + $0x100] sm:$0xff]
    %v959 = vld [vmem:[%s9 + $0x108] sm:$0xff]
    %v960 = vld [vmem:[%s9 + $0x110] sm:$0xff]
    %v961 = vld [vmem:[%s9 + $0x118] sm:$0xff]
    %v962 = vld [vmem:[%s9 + $0x120] sm:$0xff]
    %v963 = vld [vmem:[%s9 + $0x128] sm:$0xff]
    %v964 = vld [vmem:[%s9 + $0x130] sm:$0xff]
    %v965 = vld [vmem:[%s9 + $0x138] sm:$0xff]
    %v966 = vld [vmem:[%s9 + $0x140] sm:$0xff]
    %v967 = vld [vmem:[%s9 + $0x148] sm:$0xff]
    %v968 = vld [vmem:[%s9 + $0x150] sm:$0xff]
    %v969 = vld [vmem:[%s9 + $0x158] sm:$0xff]
    %v970 = vld [vmem:[%s9 + $0x160] sm:$0xff]
    %v971 = vld [vmem:[%s9 + $0x168] sm:$0xff]
    %v972 = vld [vmem:[%s9 + $0x170] sm:$0xff]
    %v973 = vld [vmem:[%s9 + $0x178] sm:$0xff]
    %v974 = vld [vmem:[%s9 + $0x180] sm:$0xff]
    %v975 = vld [vmem:[%s9 + $0x188] sm:$0xff]
    %v976 = vld [vmem:[%s9 + $0x190] sm:$0xff]
    %v977 = vld [vmem:[%s9 + $0x198] sm:$0xff]
    %v978 = vld [vmem:[%s9 + $0x1a0] sm:$0xff]
    %v979 = vld [vmem:[%s9 + $0x1a8] sm:$0xff]
    %v980 = vld [vmem:[%s9 + $0x1b0] sm:$0xff]
    %v981 = vld [vmem:[%s9 + $0x1b8] sm:$0xff]
    %v982 = vld [vmem:[%s9 + $0x1c0] sm:$0xff]
    %v983 = vld [vmem:[%s9 + $0x1c8] sm:$0xff]
    %v984 = vld [vmem:[%s9 + $0x1d0] sm:$0xff]
    %v985 = vld [vmem:[%s9 + $0x1d8] sm:$0xff]
    %v986 = vld [vmem:[%s9 + $0x1e0] sm:$0xff]
    %v987 = vld [vmem:[%s9 + $0x1e8] sm:$0xff]
    %v988 = vld [vmem:[%s9 + $0x1f0] sm:$0xff]
    %v989 = vld [vmem:[%s9 + $0x1f8] sm:$0xff]
    %v1054 = vunpack.c.l.b16 %v926
    %v1055 = vunpack.c.h.b16 %v926
    %v1056 = vunpack.c.l.b16 %v927
    %v1057 = vunpack.c.h.b16 %v927
    %v1058 = vunpack.c.l.b16 %v928
    %v1059 = vunpack.c.h.b16 %v928
    %v1060 = vunpack.c.l.b16 %v929
    %v1061 = vunpack.c.h.b16 %v929
    %v1062 = vunpack.c.l.b16 %v930
    %v1063 = vunpack.c.h.b16 %v930
    %v1064 = vunpack.c.l.b16 %v931
    %v1065 = vunpack.c.h.b16 %v931
    %v1066 = vunpack.c.l.b16 %v932
    %v1067 = vunpack.c.h.b16 %v932
    %v1068 = vunpack.c.l.b16 %v933
    %v1069 = vunpack.c.h.b16 %v933
    %v1070 = vunpack.c.l.b16 %v934
    %v1071 = vunpack.c.h.b16 %v934
    %v1072 = vunpack.c.l.b16 %v935
    %v1073 = vunpack.c.h.b16 %v935
    %v1074 = vunpack.c.l.b16 %v936
    %v1075 = vunpack.c.h.b16 %v936
    %v1076 = vunpack.c.l.b16 %v937
    %v1077 = vunpack.c.h.b16 %v937
    %v1078 = vunpack.c.l.b16 %v938
    %v1079 = vunpack.c.h.b16 %v938
    %v1080 = vunpack.c.l.b16 %v939
    %v1081 = vunpack.c.h.b16 %v939
    %v1082 = vunpack.c.l.b16 %v940
    %v1083 = vunpack.c.h.b16 %v940
    %v1084 = vunpack.c.l.b16 %v941
    %v1085 = vunpack.c.h.b16 %v941
    %v1086 = vunpack.c.l.b16 %v942
    %v1087 = vunpack.c.h.b16 %v942
    %v1088 = vunpack.c.l.b16 %v943
    %v1089 = vunpack.c.h.b16 %v943
    %v1090 = vunpack.c.l.b16 %v944
    %v1091 = vunpack.c.h.b16 %v944
    %v1092 = vunpack.c.l.b16 %v945
    %v1093 = vunpack.c.h.b16 %v945
    %v1094 = vunpack.c.l.b16 %v946
    %v1095 = vunpack.c.h.b16 %v946
    %v1096 = vunpack.c.l.b16 %v947
    %v1097 = vunpack.c.h.b16 %v947
    %v1098 = vunpack.c.l.b16 %v948
    %v1099 = vunpack.c.h.b16 %v948
    %v1100 = vunpack.c.l.b16 %v949
    %v1101 = vunpack.c.h.b16 %v949
    %v1102 = vunpack.c.l.b16 %v950
    %v1103 = vunpack.c.h.b16 %v950
    %v1104 = vunpack.c.l.b16 %v951
    %v1105 = vunpack.c.h.b16 %v951
    %v1106 = vunpack.c.l.b16 %v952
    %v1107 = vunpack.c.h.b16 %v952
    %v1108 = vunpack.c.l.b16 %v953
    %v1109 = vunpack.c.h.b16 %v953
    %v1110 = vunpack.c.l.b16 %v954
    %v1111 = vunpack.c.h.b16 %v954
    %v1112 = vunpack.c.l.b16 %v955
    %v1113 = vunpack.c.h.b16 %v955
    %v1114 = vunpack.c.l.b16 %v956
    %v1115 = vunpack.c.h.b16 %v956
    %v1116 = vunpack.c.l.b16 %v957
    %v1117 = vunpack.c.h.b16 %v957
    %v1118 = vunpack.c.l.b16 %v958
    %v1119 = vunpack.c.h.b16 %v958
    %v1120 = vunpack.c.l.b16 %v959
    %v1121 = vunpack.c.h.b16 %v959
    %v1122 = vunpack.c.l.b16 %v960
    %v1123 = vunpack.c.h.b16 %v960
    %v1124 = vunpack.c.l.b16 %v961
    %v1125 = vunpack.c.h.b16 %v961
    %v1126 = vunpack.c.l.b16 %v962
    %v1127 = vunpack.c.h.b16 %v962
    %v1128 = vunpack.c.l.b16 %v963
    %v1129 = vunpack.c.h.b16 %v963
    %v1130 = vunpack.c.l.b16 %v964
    %v1131 = vunpack.c.h.b16 %v964
    %v1132 = vunpack.c.l.b16 %v965
    %v1133 = vunpack.c.h.b16 %v965
    %v1134 = vunpack.c.l.b16 %v966
    %v1135 = vunpack.c.h.b16 %v966
    %v1136 = vunpack.c.l.b16 %v967
    %v1137 = vunpack.c.h.b16 %v967
    %v1138 = vunpack.c.l.b16 %v968
    %v1139 = vunpack.c.h.b16 %v968
    %v1140 = vunpack.c.l.b16 %v969
    %v1141 = vunpack.c.h.b16 %v969
    %v1142 = vunpack.c.l.b16 %v970
    %v1143 = vunpack.c.h.b16 %v970
    %v1144 = vunpack.c.l.b16 %v971
    %v1145 = vunpack.c.h.b16 %v971
    %v1146 = vunpack.c.l.b16 %v972
    %v1147 = vunpack.c.h.b16 %v972
    %v1148 = vunpack.c.l.b16 %v973
    %v1149 = vunpack.c.h.b16 %v973
    %v1150 = vunpack.c.l.b16 %v974
    %v1151 = vunpack.c.h.b16 %v974
    %v1152 = vunpack.c.l.b16 %v975
    %v1153 = vunpack.c.h.b16 %v975
    %v1154 = vunpack.c.l.b16 %v976
    %v1155 = vunpack.c.h.b16 %v976
    %v1156 = vunpack.c.l.b16 %v977
    %v1157 = vunpack.c.h.b16 %v977
    %v1158 = vunpack.c.l.b16 %v978
    %v1159 = vunpack.c.h.b16 %v978
    %v1160 = vunpack.c.l.b16 %v979
    %v1161 = vunpack.c.h.b16 %v979
    %v1162 = vunpack.c.l.b16 %v980
    %v1163 = vunpack.c.h.b16 %v980
    %v1164 = vunpack.c.l.b16 %v981
    %v1165 = vunpack.c.h.b16 %v981
    %v1166 = vunpack.c.l.b16 %v982
    %v1167 = vunpack.c.h.b16 %v982
    %v1168 = vunpack.c.l.b16 %v983
    %v1169 = vunpack.c.h.b16 %v983
    %v1170 = vunpack.c.l.b16 %v984
    %v1171 = vunpack.c.h.b16 %v984
    %v1172 = vunpack.c.l.b16 %v985
    %v1173 = vunpack.c.h.b16 %v985
    %v1174 = vunpack.c.l.b16 %v986
    %v1175 = vunpack.c.h.b16 %v986
    %v1176 = vunpack.c.l.b16 %v987
    %v1177 = vunpack.c.h.b16 %v987
    %v1178 = vunpack.c.l.b16 %v988
    %v1179 = vunpack.c.h.b16 %v988
    %v1180 = vunpack.c.l.b16 %v989
    %v1181 = vunpack.c.h.b16 %v989
    %v1182 = vpack.c.b16 %v1058, %v1054
    %v1183 = vpack.c.b16 %v1059, %v1055
    %v1184 = vpack.c.b16 %v1060, %v1056
    %v1185 = vpack.c.b16 %v1061, %v1057
    %v1186 = vpack.c.b16 %v1066, %v1062
    %v1187 = vpack.c.b16 %v1067, %v1063
    %v1188 = vpack.c.b16 %v1068, %v1064
    %v1189 = vpack.c.b16 %v1069, %v1065
    %v1190 = vpack.c.b16 %v1074, %v1070
    %v1191 = vpack.c.b16 %v1075, %v1071
    %v1192 = vpack.c.b16 %v1076, %v1072
    %v1193 = vpack.c.b16 %v1077, %v1073
    %v1194 = vpack.c.b16 %v1082, %v1078
    %v1195 = vpack.c.b16 %v1083, %v1079
    %v1196 = vpack.c.b16 %v1084, %v1080
    %v1197 = vpack.c.b16 %v1085, %v1081
    %v1198 = vpack.c.b16 %v1090, %v1086
    %v1199 = vpack.c.b16 %v1091, %v1087
    %v1200 = vpack.c.b16 %v1092, %v1088
    %v1201 = vpack.c.b16 %v1093, %v1089
    %v1202 = vpack.c.b16 %v1098, %v1094
    %v1203 = vpack.c.b16 %v1099, %v1095
    %v1204 = vpack.c.b16 %v1100, %v1096
    %v1205 = vpack.c.b16 %v1101, %v1097
    %v1206 = vpack.c.b16 %v1106, %v1102
    %v1207 = vpack.c.b16 %v1107, %v1103
    %v1208 = vpack.c.b16 %v1108, %v1104
    %v1209 = vpack.c.b16 %v1109, %v1105
    %v1210 = vpack.c.b16 %v1114, %v1110
    %v1211 = vpack.c.b16 %v1115, %v1111
    %v1212 = vpack.c.b16 %v1116, %v1112
    %v1213 = vpack.c.b16 %v1117, %v1113
    %v1214 = vpack.c.b16 %v1122, %v1118
    %v1215 = vpack.c.b16 %v1123, %v1119
    %v1216 = vpack.c.b16 %v1124, %v1120
    %v1217 = vpack.c.b16 %v1125, %v1121
    %v1218 = vpack.c.b16 %v1130, %v1126
    %v1219 = vpack.c.b16 %v1131, %v1127
    %v1220 = vpack.c.b16 %v1132, %v1128
    %v1221 = vpack.c.b16 %v1133, %v1129
    %v1222 = vpack.c.b16 %v1138, %v1134
    %v1223 = vpack.c.b16 %v1139, %v1135
    %v1224 = vpack.c.b16 %v1140, %v1136
    %v1225 = vpack.c.b16 %v1141, %v1137
    %v1226 = vpack.c.b16 %v1146, %v1142
    %v1227 = vpack.c.b16 %v1147, %v1143
    %v1228 = vpack.c.b16 %v1148, %v1144
    %v1229 = vpack.c.b16 %v1149, %v1145
    %v1230 = vpack.c.b16 %v1154, %v1150
    %v1231 = vpack.c.b16 %v1155, %v1151
    %v1232 = vpack.c.b16 %v1156, %v1152
    %v1233 = vpack.c.b16 %v1157, %v1153
    %v1234 = vpack.c.b16 %v1162, %v1158
    %v1235 = vpack.c.b16 %v1163, %v1159
    %v1236 = vpack.c.b16 %v1164, %v1160
    %v1237 = vpack.c.b16 %v1165, %v1161
    %v1238 = vpack.c.b16 %v1170, %v1166
    %v1239 = vpack.c.b16 %v1171, %v1167
    %v1240 = vpack.c.b16 %v1172, %v1168
    %v1241 = vpack.c.b16 %v1173, %v1169
    %v1242 = vpack.c.b16 %v1178, %v1174
    %v1243 = vpack.c.b16 %v1179, %v1175
    %v1244 = vpack.c.b16 %v1180, %v1176
    %v1245 = vpack.c.b16 %v1181, %v1177
    %1310 = vmatpush.bf16.msra.mxu0 %v1210
    %1311 = vmatpush.bf16.msra.mxu0 %v1206
    %1312 = vmatpush.bf16.msra.mxu0 %v1202
    %1313 = vmatpush.bf16.msra.mxu0 %v1198
    %1314 = vmatpush.bf16.msra.mxu0 %v1194
    %1315 = vmatpush.bf16.msra.mxu0 %v1190
    %1316 = vmatpush.bf16.msra.mxu0 %v1186
    %1317 = vmatpush.bf16.msra.mxu0 %v1182
    %1318 = vmatmul.bf16.gmra.mxu0 %v924
    %v1319 = vpop.f32.mrf.mxu0
    %v1320 = vadd.f32 0.0, %v1319
    %v1321 = vpop.f32.mrf.mxu0
    %1322 = vdwg.mxu0
    %1323 = vmatpush.bf16.msra.mxu0 %v1242
    %1324 = vmatpush.bf16.msra.mxu0 %v1238
    %1325 = vmatpush.bf16.msra.mxu0 %v1234
    %1326 = vmatpush.bf16.msra.mxu0 %v1230
    %1327 = vmatpush.bf16.msra.mxu0 %v1226
    %1328 = vmatpush.bf16.msra.mxu0 %v1222
    %1329 = vmatpush.bf16.msra.mxu0 %v1218
    %1330 = vmatpush.bf16.msra.mxu0 %v1214
    %1331 = vmatmul.bf16.gmra.mxu0 %v925
    %v1332 = vpop.f32.mrf.mxu0
    %v1333 = vadd.f32 %v1320, %v1332
    %v1334 = vpop.f32.mrf.mxu0
    %1335 = vdwg.mxu0
    %1336 = vmatpush.bf16.msra.mxu0 %v1211
    %1337 = vmatpush.bf16.msra.mxu0 %v1207
    %1338 = vmatpush.bf16.msra.mxu0 %v1203
    %1339 = vmatpush.bf16.msra.mxu0 %v1199
    %1340 = vmatpush.bf16.msra.mxu0 %v1195
    %1341 = vmatpush.bf16.msra.mxu0 %v1191
    %1342 = vmatpush.bf16.msra.mxu0 %v1187
    %1343 = vmatpush.bf16.msra.mxu0 %v1183
    %1344 = vmatmul.bf16.gmra.mxu0 %v924
    %v1345 = vpop.f32.mrf.mxu0
    %v1346 = vadd.f32 0.0, %v1345
    %v1347 = vpop.f32.mrf.mxu0
    %1348 = vdwg.mxu0
    %1349 = vmatpush.bf16.msra.mxu0 %v1243
    %1350 = vmatpush.bf16.msra.mxu0 %v1239
    %1351 = vmatpush.bf16.msra.mxu0 %v1235
    %1352 = vmatpush.bf16.msra.mxu0 %v1231
    %1353 = vmatpush.bf16.msra.mxu0 %v1227
    %1354 = vmatpush.bf16.msra.mxu0 %v1223
    %1355 = vmatpush.bf16.msra.mxu0 %v1219
    %1356 = vmatpush.bf16.msra.mxu0 %v1215
    %1357 = vmatmul.bf16.gmra.mxu0 %v925
    %v1358 = vpop.f32.mrf.mxu0
    %v1359 = vadd.f32 %v1346, %v1358
    %v1360 = vpop.f32.mrf.mxu0
    %1361 = vdwg.mxu0
    %1362 = vmatpush.bf16.msra.mxu0 %v1212
    %1363 = vmatpush.bf16.msra.mxu0 %v1208
    %1364 = vmatpush.bf16.msra.mxu0 %v1204
    %1365 = vmatpush.bf16.msra.mxu0 %v1200
    %1366 = vmatpush.bf16.msra.mxu0 %v1196
    %1367 = vmatpush.bf16.msra.mxu0 %v1192
    %1368 = vmatpush.bf16.msra.mxu0 %v1188
    %1369 = vmatpush.bf16.msra.mxu0 %v1184
    %1370 = vmatmul.bf16.gmra.mxu0 %v924
    %v1371 = vpop.f32.mrf.mxu0
    %v1372 = vadd.f32 0.0, %v1371
    %v1373 = vpop.f32.mrf.mxu0
    %1374 = vdwg.mxu0
    %1375 = vmatpush.bf16.msra.mxu0 %v1244
    %1376 = vmatpush.bf16.msra.mxu0 %v1240
    %1377 = vmatpush.bf16.msra.mxu0 %v1236
    %1378 = vmatpush.bf16.msra.mxu0 %v1232
    %1379 = vmatpush.bf16.msra.mxu0 %v1228
    %1380 = vmatpush.bf16.msra.mxu0 %v1224
    %1381 = vmatpush.bf16.msra.mxu0 %v1220
    %1382 = vmatpush.bf16.msra.mxu0 %v1216
    %1383 = vmatmul.bf16.gmra.mxu0 %v925
    %v1384 = vpop.f32.mrf.mxu0
    %v1385 = vadd.f32 %v1372, %v1384
    %v1386 = vpop.f32.mrf.mxu0
    %1387 = vdwg.mxu0
    %1388 = vmatpush.bf16.msra.mxu0 %v1213
    %1389 = vmatpush.bf16.msra.mxu0 %v1209
    %1390 = vmatpush.bf16.msra.mxu0 %v1205
    %1391 = vmatpush.bf16.msra.mxu0 %v1201
    %1392 = vmatpush.bf16.msra.mxu0 %v1197
    %1393 = vmatpush.bf16.msra.mxu0 %v1193
    %1394 = vmatpush.bf16.msra.mxu0 %v1189
    %1395 = vmatpush.bf16.msra.mxu0 %v1185
    %1396 = vmatmul.bf16.gmra.mxu0 %v924
    %v1397 = vpop.f32.mrf.mxu0
    %v1398 = vadd.f32 0.0, %v1397
    %v1399 = vpop.f32.mrf.mxu0
    %1400 = vdwg.mxu0
    %1401 = vmatpush.bf16.msra.mxu0 %v1245
    %1402 = vmatpush.bf16.msra.mxu0 %v1241
    %1403 = vmatpush.bf16.msra.mxu0 %v1237
    %1404 = vmatpush.bf16.msra.mxu0 %v1233
    %1405 = vmatpush.bf16.msra.mxu0 %v1229
    %1406 = vmatpush.bf16.msra.mxu0 %v1225
    %1407 = vmatpush.bf16.msra.mxu0 %v1221
    %1408 = vmatpush.bf16.msra.mxu0 %v1217
    %1409 = vmatmul.bf16.gmra.mxu0 %v925
    %v1410 = vpop.f32.mrf.mxu0
    %v1411 = vadd.f32 %v1398, %v1410
    %v1412 = vpop.f32.mrf.mxu0
    %1413 = vdwg.mxu0
    %v1414 = vsel %vm273, %v1333, 0.0
    %v1415 = vrot.slane %v1414, 4
    %v1416 = vadd.f32 %v1414, %v1415
    %v1417 = vrot.slane %v1416, 2
    %v1418 = vadd.f32 %v1416, %v1417
    %v1419 = vrot.slane %v1418, 1
    %v1420 = vadd.f32 %v1418, %v1419
    %v1421 = vsel %vm273, %v1359, 0.0
    %v1422 = vrot.slane %v1421, 4
    %v1423 = vadd.f32 %v1421, %v1422
    %v1424 = vrot.slane %v1423, 2
    %v1425 = vadd.f32 %v1423, %v1424
    %v1426 = vrot.slane %v1425, 1
    %v1427 = vadd.f32 %v1425, %v1426
    %v1428 = vsel %vm273, %v1385, 0.0
    %v1429 = vrot.slane %v1428, 4
    %v1430 = vadd.f32 %v1428, %v1429
    %v1431 = vrot.slane %v1430, 2
    %v1432 = vadd.f32 %v1430, %v1431
    %v1433 = vrot.slane %v1432, 1
    %v1434 = vadd.f32 %v1432, %v1433
    %v1435 = vsel %vm273, %v1411, 0.0
    %v1436 = vrot.slane %v1435, 4
    %v1437 = vadd.f32 %v1435, %v1436
    %v1438 = vrot.slane %v1437, 2
    %v1439 = vadd.f32 %v1437, %v1438
    %v1440 = vrot.slane %v1439, 1
    %v1441 = vadd.f32 %v1439, %v1440
    %v1442 = vmul.f32 %v1333, %v1333
    %v1443 = vmul.f32 %v1359, %v1359
    %v1444 = vmul.f32 %v1385, %v1385
    %v1445 = vmul.f32 %v1411, %v1411
    %v1446 = vsel %vm273, %v1442, 0.0
    %v1447 = vrot.slane %v1446, 4
    %v1448 = vadd.f32 %v1446, %v1447
    %v1449 = vrot.slane %v1448, 2
    %v1450 = vadd.f32 %v1448, %v1449
    %v1451 = vrot.slane %v1450, 1
    %v1452 = vadd.f32 %v1450, %v1451
    %v1453 = vsel %vm273, %v1443, 0.0
    %v1454 = vrot.slane %v1453, 4
    %v1455 = vadd.f32 %v1453, %v1454
    %v1456 = vrot.slane %v1455, 2
    %v1457 = vadd.f32 %v1455, %v1456
    %v1458 = vrot.slane %v1457, 1
    %v1459 = vadd.f32 %v1457, %v1458
    %v1460 = vsel %vm273, %v1444, 0.0
    %v1461 = vrot.slane %v1460, 4
    %v1462 = vadd.f32 %v1460, %v1461
    %v1463 = vrot.slane %v1462, 2
    %v1464 = vadd.f32 %v1462, %v1463
    %v1465 = vrot.slane %v1464, 1
    %v1466 = vadd.f32 %v1464, %v1465
    %v1467 = vsel %vm273, %v1445, 0.0
    %v1468 = vrot.slane %v1467, 4
    %v1469 = vadd.f32 %v1467, %v1468
    %v1470 = vrot.slane %v1469, 2
    %v1471 = vadd.f32 %v1469, %v1470
    %v1472 = vrot.slane %v1471, 1
    %v1473 = vadd.f32 %v1471, %v1472
    %v1474 = vsel %vm306, %v1420, %v1452
    %v1475 = vsel %vm306, %v1427, %v1459
    %v1476 = vsel %vm306, %v1434, %v1466
    %v1477 = vsel %vm306, %v1441, %v1473
    %v1478 = vld [vmem:[%s10] sm:$0xff]
    %v1479 = vld [vmem:[%s10 + $0x8] sm:$0xff]
    %v1480 = vld [vmem:[%s10 + $0x10] sm:$0xff]
    %v1481 = vld [vmem:[%s10 + $0x18] sm:$0xff]
    %v1482 = vld [vmem:[%s10 + $0x20] sm:$0xff]
    %v1483 = vld [vmem:[%s10 + $0x28] sm:$0xff]
    %v1484 = vld [vmem:[%s10 + $0x30] sm:$0xff]
    %v1485 = vld [vmem:[%s10 + $0x38] sm:$0xff]
    %v1486 = vld [vmem:[%s10 + $0x40] sm:$0xff]
    %v1487 = vld [vmem:[%s10 + $0x48] sm:$0xff]
    %v1488 = vld [vmem:[%s10 + $0x50] sm:$0xff]
    %v1489 = vld [vmem:[%s10 + $0x58] sm:$0xff]
    %v1490 = vld [vmem:[%s10 + $0x60] sm:$0xff]
    %v1491 = vld [vmem:[%s10 + $0x68] sm:$0xff]
    %v1492 = vld [vmem:[%s10 + $0x70] sm:$0xff]
    %v1493 = vld [vmem:[%s10 + $0x78] sm:$0xff]
    %v1494 = vld [vmem:[%s10 + $0x80] sm:$0xff]
    %v1495 = vld [vmem:[%s10 + $0x88] sm:$0xff]
    %v1496 = vld [vmem:[%s10 + $0x90] sm:$0xff]
    %v1497 = vld [vmem:[%s10 + $0x98] sm:$0xff]
    %v1498 = vld [vmem:[%s10 + $0xa0] sm:$0xff]
    %v1499 = vld [vmem:[%s10 + $0xa8] sm:$0xff]
    %v1500 = vld [vmem:[%s10 + $0xb0] sm:$0xff]
    %v1501 = vld [vmem:[%s10 + $0xb8] sm:$0xff]
    %v1502 = vld [vmem:[%s10 + $0xc0] sm:$0xff]
    %v1503 = vld [vmem:[%s10 + $0xc8] sm:$0xff]
    %v1504 = vld [vmem:[%s10 + $0xd0] sm:$0xff]
    %v1505 = vld [vmem:[%s10 + $0xd8] sm:$0xff]
    %v1506 = vld [vmem:[%s10 + $0xe0] sm:$0xff]
    %v1507 = vld [vmem:[%s10 + $0xe8] sm:$0xff]
    %v1508 = vld [vmem:[%s10 + $0xf0] sm:$0xff]
    %v1509 = vld [vmem:[%s10 + $0xf8] sm:$0xff]
    %v1510 = vld [vmem:[%s10 + $0x100] sm:$0xff]
    %v1511 = vld [vmem:[%s10 + $0x108] sm:$0xff]
    %v1512 = vld [vmem:[%s10 + $0x110] sm:$0xff]
    %v1513 = vld [vmem:[%s10 + $0x118] sm:$0xff]
    %v1514 = vld [vmem:[%s10 + $0x120] sm:$0xff]
    %v1515 = vld [vmem:[%s10 + $0x128] sm:$0xff]
    %v1516 = vld [vmem:[%s10 + $0x130] sm:$0xff]
    %v1517 = vld [vmem:[%s10 + $0x138] sm:$0xff]
    %v1518 = vld [vmem:[%s10 + $0x140] sm:$0xff]
    %v1519 = vld [vmem:[%s10 + $0x148] sm:$0xff]
    %v1520 = vld [vmem:[%s10 + $0x150] sm:$0xff]
    %v1521 = vld [vmem:[%s10 + $0x158] sm:$0xff]
    %v1522 = vld [vmem:[%s10 + $0x160] sm:$0xff]
    %v1523 = vld [vmem:[%s10 + $0x168] sm:$0xff]
    %v1524 = vld [vmem:[%s10 + $0x170] sm:$0xff]
    %v1525 = vld [vmem:[%s10 + $0x178] sm:$0xff]
    %v1526 = vld [vmem:[%s10 + $0x180] sm:$0xff]
    %v1527 = vld [vmem:[%s10 + $0x188] sm:$0xff]
    %v1528 = vld [vmem:[%s10 + $0x190] sm:$0xff]
    %v1529 = vld [vmem:[%s10 + $0x198] sm:$0xff]
    %v1530 = vld [vmem:[%s10 + $0x1a0] sm:$0xff]
    %v1531 = vld [vmem:[%s10 + $0x1a8] sm:$0xff]
    %v1532 = vld [vmem:[%s10 + $0x1b0] sm:$0xff]
    %v1533 = vld [vmem:[%s10 + $0x1b8] sm:$0xff]
    %v1534 = vld [vmem:[%s10 + $0x1c0] sm:$0xff]
    %v1535 = vld [vmem:[%s10 + $0x1c8] sm:$0xff]
    %v1536 = vld [vmem:[%s10 + $0x1d0] sm:$0xff]
    %v1537 = vld [vmem:[%s10 + $0x1d8] sm:$0xff]
    %v1538 = vld [vmem:[%s10 + $0x1e0] sm:$0xff]
    %v1539 = vld [vmem:[%s10 + $0x1e8] sm:$0xff]
    %v1540 = vld [vmem:[%s10 + $0x1f0] sm:$0xff]
    %v1541 = vld [vmem:[%s10 + $0x1f8] sm:$0xff]
    %1542 = vmatpush.msra.mxu0 %v1493
    %1543 = vmatpush.msra.mxu0 %v1492
    %1544 = vmatpush.msra.mxu0 %v1491
    %1545 = vmatpush.msra.mxu0 %v1490
    %1546 = vmatpush.msra.mxu0 %v1489
    %1547 = vmatpush.msra.mxu0 %v1488
    %1548 = vmatpush.msra.mxu0 %v1487
    %1549 = vmatpush.msra.mxu0 %v1486
    %1550 = vmatpush.msra.mxu0 %v1485
    %1551 = vmatpush.msra.mxu0 %v1484
    %1552 = vmatpush.msra.mxu0 %v1483
    %1553 = vmatpush.msra.mxu0 %v1482
    %1554 = vmatpush.msra.mxu0 %v1481
    %1555 = vmatpush.msra.mxu0 %v1480
    %1556 = vmatpush.msra.mxu0 %v1479
    %1557 = vmatpush.msra.mxu0 %v1478
    %1558 = vmatmul.f32.gmra.mxu0 %v1474
    %v1559 = vpop.f32.mrf.mxu0
    %v1560 = vadd.f32 0.0, %v1559
    %1561 = vdwg.mxu0
    %1562 = vmatpush.msra.mxu0 %v1509
    %1563 = vmatpush.msra.mxu0 %v1508
    %1564 = vmatpush.msra.mxu0 %v1507
    %1565 = vmatpush.msra.mxu0 %v1506
    %1566 = vmatpush.msra.mxu0 %v1505
    %1567 = vmatpush.msra.mxu0 %v1504
    %1568 = vmatpush.msra.mxu0 %v1503
    %1569 = vmatpush.msra.mxu0 %v1502
    %1570 = vmatpush.msra.mxu0 %v1501
    %1571 = vmatpush.msra.mxu0 %v1500
    %1572 = vmatpush.msra.mxu0 %v1499
    %1573 = vmatpush.msra.mxu0 %v1498
    %1574 = vmatpush.msra.mxu0 %v1497
    %1575 = vmatpush.msra.mxu0 %v1496
    %1576 = vmatpush.msra.mxu0 %v1495
    %1577 = vmatpush.msra.mxu0 %v1494
    %1578 = vmatmul.f32.gmra.mxu0 %v1475
    %v1579 = vpop.f32.mrf.mxu0
    %v1580 = vadd.f32 %v1560, %v1579
    %1581 = vdwg.mxu0
    %1582 = vmatpush.msra.mxu0 %v1525
    %1583 = vmatpush.msra.mxu0 %v1524
    %1584 = vmatpush.msra.mxu0 %v1523
    %1585 = vmatpush.msra.mxu0 %v1522
    %1586 = vmatpush.msra.mxu0 %v1521
    %1587 = vmatpush.msra.mxu0 %v1520
    %1588 = vmatpush.msra.mxu0 %v1519
    %1589 = vmatpush.msra.mxu0 %v1518
    %1590 = vmatpush.msra.mxu0 %v1517
    %1591 = vmatpush.msra.mxu0 %v1516
    %1592 = vmatpush.msra.mxu0 %v1515
    %1593 = vmatpush.msra.mxu0 %v1514
    %1594 = vmatpush.msra.mxu0 %v1513
    %1595 = vmatpush.msra.mxu0 %v1512
    %1596 = vmatpush.msra.mxu0 %v1511
    %1597 = vmatpush.msra.mxu0 %v1510
    %1598 = vmatmul.f32.gmra.mxu0 %v1476
    %v1599 = vpop.f32.mrf.mxu0
    %v1600 = vadd.f32 %v1580, %v1599
    %1601 = vdwg.mxu0
    %1602 = vmatpush.msra.mxu0 %v1541
    %1603 = vmatpush.msra.mxu0 %v1540
    %1604 = vmatpush.msra.mxu0 %v1539
    %1605 = vmatpush.msra.mxu0 %v1538
    %1606 = vmatpush.msra.mxu0 %v1537
    %1607 = vmatpush.msra.mxu0 %v1536
    %1608 = vmatpush.msra.mxu0 %v1535
    %1609 = vmatpush.msra.mxu0 %v1534
    %1610 = vmatpush.msra.mxu0 %v1533
    %1611 = vmatpush.msra.mxu0 %v1532
    %1612 = vmatpush.msra.mxu0 %v1531
    %1613 = vmatpush.msra.mxu0 %v1530
    %1614 = vmatpush.msra.mxu0 %v1529
    %1615 = vmatpush.msra.mxu0 %v1528
    %1616 = vmatpush.msra.mxu0 %v1527
    %1617 = vmatpush.msra.mxu0 %v1526
    %1618 = vmatmul.f32.gmra.mxu0 %v1477
    %v1619 = vpop.f32.mrf.mxu0
    %v1620 = vadd.f32 %v1600, %v1619
    %1621 = vdwg.mxu0
    %v1622 = vmul.f32 %v1620, 0.125
    %v1623 = vmul.f32 %v1622, %v1622
    %v1625 = vrot.slane %v1623, 7
    %v1627 = vsub.f32 %v1622, %v1625
    %v1628 = vmax.f32 %v1627, 0.0
    %v1629 = vld [vmem:[#allocation14] sm:$0x1]
    %v1630 = vadd.f32 %v1628, 0.001
    %v1631 = vrsqrt.pop %v1630
    %v1632 = vmul.f32 %v1631, %v1630
    %v1633 = vmul.f32 %v1632, %v1631
    %v1634 = vmul.f32 0.5, %v1633
    %v1635 = vsub.f32 1.5, %v1634
    %v1636 = vmul.f32 %v1631, %v1635
    %vm1637 = vweird.f32 %v1630
    %vm1638 = vweird.f32 %v1631
    %vm1639 = vmor %vm1637, %vm1638
    %v1640 = vsel %vm1639, %v1631, %v1636
    %v1642 = vrot.slane %v1640, 1
    %v1644 = vmul.f32 %v1629, %v1642
    %v1645 = vld [vmem:[#allocation14 + $0x1] sm:$0x1]
    %v1646 = vmul.f32 %v1622, %v1644
    %v1647 = vsub.f32 %v1645, %v1646
    %v1648 = vperm.slane %v1644, 0
    %v1649 = vperm.slane %v1647, 0
    %v1650 = vsel %vm306, %v1648, %v1649
    %v1651 = vld [vmem:[#allocation13] sm:$0xff]
    %v1652 = vld [vmem:[#allocation13 + $0x8] sm:$0xff]
    %v1653 = vld [vmem:[#allocation13 + $0x10] sm:$0xff]
    %v1654 = vld [vmem:[#allocation13 + $0x18] sm:$0xff]
    %v1655 = vld [vmem:[#allocation13 + $0x20] sm:$0xff]
    %v1656 = vld [vmem:[#allocation13 + $0x28] sm:$0xff]
    %v1657 = vld [vmem:[#allocation13 + $0x30] sm:$0xff]
    %v1658 = vld [vmem:[#allocation13 + $0x38] sm:$0xff]
    %v1659 = vld [vmem:[#allocation13 + $0x40] sm:$0xff]
    %v1660 = vld [vmem:[#allocation13 + $0x48] sm:$0xff]
    %v1661 = vld [vmem:[#allocation13 + $0x50] sm:$0xff]
    %v1662 = vld [vmem:[#allocation13 + $0x58] sm:$0xff]
    %v1663 = vld [vmem:[#allocation13 + $0x60] sm:$0xff]
    %v1664 = vld [vmem:[#allocation13 + $0x68] sm:$0xff]
    %v1665 = vld [vmem:[#allocation13 + $0x70] sm:$0xff]
    %v1666 = vld [vmem:[#allocation13 + $0x78] sm:$0xff]
    %v1667 = vld [vmem:[#allocation13 + $0x80] sm:$0xff]
    %v1668 = vld [vmem:[#allocation13 + $0x88] sm:$0xff]
    %v1669 = vld [vmem:[#allocation13 + $0x90] sm:$0xff]
    %v1670 = vld [vmem:[#allocation13 + $0x98] sm:$0xff]
    %v1671 = vld [vmem:[#allocation13 + $0xa0] sm:$0xff]
    %v1672 = vld [vmem:[#allocation13 + $0xa8] sm:$0xff]
    %v1673 = vld [vmem:[#allocation13 + $0xb0] sm:$0xff]
    %v1674 = vld [vmem:[#allocation13 + $0xb8] sm:$0xff]
    %v1675 = vld [vmem:[#allocation13 + $0xc0] sm:$0xff]
    %v1676 = vld [vmem:[#allocation13 + $0xc8] sm:$0xff]
    %v1677 = vld [vmem:[#allocation13 + $0xd0] sm:$0xff]
    %v1678 = vld [vmem:[#allocation13 + $0xd8] sm:$0xff]
    %v1679 = vld [vmem:[#allocation13 + $0xe0] sm:$0xff]
    %v1680 = vld [vmem:[#allocation13 + $0xe8] sm:$0xff]
    %v1681 = vld [vmem:[#allocation13 + $0xf0] sm:$0xff]
    %v1682 = vld [vmem:[#allocation13 + $0xf8] sm:$0xff]
    %v1683 = vld [vmem:[#allocation13 + $0x100] sm:$0xff]
    %v1684 = vld [vmem:[#allocation13 + $0x108] sm:$0xff]
    %v1685 = vld [vmem:[#allocation13 + $0x110] sm:$0xff]
    %v1686 = vld [vmem:[#allocation13 + $0x118] sm:$0xff]
    %v1687 = vld [vmem:[#allocation13 + $0x120] sm:$0xff]
    %v1688 = vld [vmem:[#allocation13 + $0x128] sm:$0xff]
    %v1689 = vld [vmem:[#allocation13 + $0x130] sm:$0xff]
    %v1690 = vld [vmem:[#allocation13 + $0x138] sm:$0xff]
    %v1691 = vld [vmem:[#allocation13 + $0x140] sm:$0xff]
    %v1692 = vld [vmem:[#allocation13 + $0x148] sm:$0xff]
    %v1693 = vld [vmem:[#allocation13 + $0x150] sm:$0xff]
    %v1694 = vld [vmem:[#allocation13 + $0x158] sm:$0xff]
    %v1695 = vld [vmem:[#allocation13 + $0x160] sm:$0xff]
    %v1696 = vld [vmem:[#allocation13 + $0x168] sm:$0xff]
    %v1697 = vld [vmem:[#allocation13 + $0x170] sm:$0xff]
    %v1698 = vld [vmem:[#allocation13 + $0x178] sm:$0xff]
    %v1699 = vld [vmem:[#allocation13 + $0x180] sm:$0xff]
    %v1700 = vld [vmem:[#allocation13 + $0x188] sm:$0xff]
    %v1701 = vld [vmem:[#allocation13 + $0x190] sm:$0xff]
    %v1702 = vld [vmem:[#allocation13 + $0x198] sm:$0xff]
    %v1703 = vld [vmem:[#allocation13 + $0x1a0] sm:$0xff]
    %v1704 = vld [vmem:[#allocation13 + $0x1a8] sm:$0xff]
    %v1705 = vld [vmem:[#allocation13 + $0x1b0] sm:$0xff]
    %v1706 = vld [vmem:[#allocation13 + $0x1b8] sm:$0xff]
    %v1707 = vld [vmem:[#allocation13 + $0x1c0] sm:$0xff]
    %v1708 = vld [vmem:[#allocation13 + $0x1c8] sm:$0xff]
    %v1709 = vld [vmem:[#allocation13 + $0x1d0] sm:$0xff]
    %v1710 = vld [vmem:[#allocation13 + $0x1d8] sm:$0xff]
    %v1711 = vld [vmem:[#allocation13 + $0x1e0] sm:$0xff]
    %v1712 = vld [vmem:[#allocation13 + $0x1e8] sm:$0xff]
    %v1713 = vld [vmem:[#allocation13 + $0x1f0] sm:$0xff]
    %v1714 = vld [vmem:[#allocation13 + $0x1f8] sm:$0xff]
    %1715 = vmatpush.msra.mxu0 %v1711
    %1716 = vmatpush.msra.mxu0 %v1707
    %1717 = vmatpush.msra.mxu0 %v1703
    %1718 = vmatpush.msra.mxu0 %v1699
    %1719 = vmatpush.msra.mxu0 %v1695
    %1720 = vmatpush.msra.mxu0 %v1691
    %1721 = vmatpush.msra.mxu0 %v1687
    %1722 = vmatpush.msra.mxu0 %v1683
    %1723 = vmatpush.msra.mxu0 %v1679
    %1724 = vmatpush.msra.mxu0 %v1675
    %1725 = vmatpush.msra.mxu0 %v1671
    %1726 = vmatpush.msra.mxu0 %v1667
    %1727 = vmatpush.msra.mxu0 %v1663
    %1728 = vmatpush.msra.mxu0 %v1659
    %1729 = vmatpush.msra.mxu0 %v1655
    %1730 = vmatpush.msra.mxu0 %v1651
    %1731 = vmatmul.f32.gmra.mxu0 %v1650
    %v1732 = vpop.f32.mrf.mxu0
    %v1733 = vadd.f32 0.0, %v1732
    %1734 = vdwg.mxu0
    %1735 = vmatpush.msra.mxu0 %v1712
    %1736 = vmatpush.msra.mxu0 %v1708
    %1737 = vmatpush.msra.mxu0 %v1704
    %1738 = vmatpush.msra.mxu0 %v1700
    %1739 = vmatpush.msra.mxu0 %v1696
    %1740 = vmatpush.msra.mxu0 %v1692
    %1741 = vmatpush.msra.mxu0 %v1688
    %1742 = vmatpush.msra.mxu0 %v1684
    %1743 = vmatpush.msra.mxu0 %v1680
    %1744 = vmatpush.msra.mxu0 %v1676
    %1745 = vmatpush.msra.mxu0 %v1672
    %1746 = vmatpush.msra.mxu0 %v1668
    %1747 = vmatpush.msra.mxu0 %v1664
    %1748 = vmatpush.msra.mxu0 %v1660
    %1749 = vmatpush.msra.mxu0 %v1656
    %1750 = vmatpush.msra.mxu0 %v1652
    %1751 = vmatmul.f32.gmra.mxu0 %v1650
    %v1752 = vpop.f32.mrf.mxu0
    %v1753 = vadd.f32 0.0, %v1752
    %1754 = vdwg.mxu0
    %1755 = vmatpush.msra.mxu0 %v1713
    %1756 = vmatpush.msra.mxu0 %v1709
    %1757 = vmatpush.msra.mxu0 %v1705
    %1758 = vmatpush.msra.mxu0 %v1701
    %1759 = vmatpush.msra.mxu0 %v1697
    %1760 = vmatpush.msra.mxu0 %v1693
    %1761 = vmatpush.msra.mxu0 %v1689
    %1762 = vmatpush.msra.mxu0 %v1685
    %1763 = vmatpush.msra.mxu0 %v1681
    %1764 = vmatpush.msra.mxu0 %v1677
    %1765 = vmatpush.msra.mxu0 %v1673
    %1766 = vmatpush.msra.mxu0 %v1669
    %1767 = vmatpush.msra.mxu0 %v1665
    %1768 = vmatpush.msra.mxu0 %v1661
    %1769 = vmatpush.msra.mxu0 %v1657
    %1770 = vmatpush.msra.mxu0 %v1653
    %1771 = vmatmul.f32.gmra.mxu0 %v1650
    %v1772 = vpop.f32.mrf.mxu0
    %v1773 = vadd.f32 0.0, %v1772
    %1774 = vdwg.mxu0
    %1775 = vmatpush.msra.mxu0 %v1714
    %1776 = vmatpush.msra.mxu0 %v1710
    %1777 = vmatpush.msra.mxu0 %v1706
    %1778 = vmatpush.msra.mxu0 %v1702
    %1779 = vmatpush.msra.mxu0 %v1698
    %1780 = vmatpush.msra.mxu0 %v1694
    %1781 = vmatpush.msra.mxu0 %v1690
    %1782 = vmatpush.msra.mxu0 %v1686
    %1783 = vmatpush.msra.mxu0 %v1682
    %1784 = vmatpush.msra.mxu0 %v1678
    %1785 = vmatpush.msra.mxu0 %v1674
    %1786 = vmatpush.msra.mxu0 %v1670
    %1787 = vmatpush.msra.mxu0 %v1666
    %1788 = vmatpush.msra.mxu0 %v1662
    %1789 = vmatpush.msra.mxu0 %v1658
    %1790 = vmatpush.msra.mxu0 %v1654
    %1791 = vmatmul.f32.gmra.mxu0 %v1650
    %v1792 = vpop.f32.mrf.mxu0
    %v1793 = vadd.f32 0.0, %v1792
    %1794 = vdwg.mxu0
    %v1795 = vperm.slane %v1733, 0
    %v1796 = vperm.slane %v1753, 0
    %v1797 = vperm.slane %v1773, 0
    %v1798 = vperm.slane %v1793, 0
    %v1799 = vmul.f32 %v1333, %v1795
    %v1800 = vmul.f32 %v1359, %v1796
    %v1801 = vmul.f32 %v1385, %v1797
    %v1802 = vmul.f32 %v1411, %v1798
    %v1803 = vperm.slane %v1733, 1
    %v1804 = vperm.slane %v1753, 1
    %v1805 = vperm.slane %v1773, 1
    %v1806 = vperm.slane %v1793, 1
    %v1807 = vadd.f32 %v1799, %v1803
    %v1808 = vadd.f32 %v1800, %v1804
    %v1809 = vadd.f32 %v1801, %v1805
    %v1810 = vadd.f32 %v1802, %v1806
    %v1811 = vmul.f32 %v1807, 0.2
    %v1812 = vmul.f32 %v1808, 0.2
    %v1813 = vmul.f32 %v1809, 0.2
    %v1814 = vmul.f32 %v1810, 0.2
    %v1815 = vmax.f32 %v1807, %v1811
    %v1816 = vmax.f32 %v1808, %v1812
    %v1817 = vmax.f32 %v1809, %v1813
    %v1818 = vmax.f32 %v1810, %v1814
    %v1819 = vpack.c.bf16 %v1815, %v1815
    %v1820 = vpack.c.bf16 %v1816, %v1816
    %v1821 = vpack.c.bf16 %v1817, %v1817
    %v1822 = vpack.c.bf16 %v1818, %v1818
    %v1823 = vld [vmem:[#allocation16] sm:$0xff]
    %v1824 = vld [vmem:[#allocation16 + $0x8] sm:$0xff]
    %v1825 = vld [vmem:[#allocation16 + $0x10] sm:$0xff]
    %v1826 = vld [vmem:[#allocation16 + $0x18] sm:$0xff]
    %v1827 = vld [vmem:[#allocation16 + $0x20] sm:$0xff]
    %v1828 = vld [vmem:[#allocation16 + $0x28] sm:$0xff]
    %v1829 = vld [vmem:[#allocation16 + $0x30] sm:$0xff]
    %v1830 = vld [vmem:[#allocation16 + $0x38] sm:$0xff]
    %v1831 = vld [vmem:[#allocation16 + $0x40] sm:$0xff]
    %v1832 = vld [vmem:[#allocation16 + $0x48] sm:$0xff]
    %v1833 = vld [vmem:[#allocation16 + $0x50] sm:$0xff]
    %v1834 = vld [vmem:[#allocation16 + $0x58] sm:$0xff]
    %v1835 = vld [vmem:[#allocation16 + $0x60] sm:$0xff]
    %v1836 = vld [vmem:[#allocation16 + $0x68] sm:$0xff]
    %v1837 = vld [vmem:[#allocation16 + $0x70] sm:$0xff]
    %v1838 = vld [vmem:[#allocation16 + $0x78] sm:$0xff]
    %v1839 = vld [vmem:[#allocation16 + $0x80] sm:$0xff]
    %v1840 = vld [vmem:[#allocation16 + $0x88] sm:$0xff]
    %v1841 = vld [vmem:[#allocation16 + $0x90] sm:$0xff]
    %v1842 = vld [vmem:[#allocation16 + $0x98] sm:$0xff]
    %v1843 = vld [vmem:[#allocation16 + $0xa0] sm:$0xff]
    %v1844 = vld [vmem:[#allocation16 + $0xa8] sm:$0xff]
    %v1845 = vld [vmem:[#allocation16 + $0xb0] sm:$0xff]
    %v1846 = vld [vmem:[#allocation16 + $0xb8] sm:$0xff]
    %v1847 = vld [vmem:[#allocation16 + $0xc0] sm:$0xff]
    %v1848 = vld [vmem:[#allocation16 + $0xc8] sm:$0xff]
    %v1849 = vld [vmem:[#allocation16 + $0xd0] sm:$0xff]
    %v1850 = vld [vmem:[#allocation16 + $0xd8] sm:$0xff]
    %v1851 = vld [vmem:[#allocation16 + $0xe0] sm:$0xff]
    %v1852 = vld [vmem:[#allocation16 + $0xe8] sm:$0xff]
    %v1853 = vld [vmem:[#allocation16 + $0xf0] sm:$0xff]
    %v1854 = vld [vmem:[#allocation16 + $0xf8] sm:$0xff]
    %v1855 = vld [vmem:[#allocation16 + $0x100] sm:$0xff]
    %v1856 = vld [vmem:[#allocation16 + $0x108] sm:$0xff]
    %v1857 = vld [vmem:[#allocation16 + $0x110] sm:$0xff]
    %v1858 = vld [vmem:[#allocation16 + $0x118] sm:$0xff]
    %v1859 = vld [vmem:[#allocation16 + $0x120] sm:$0xff]
    %v1860 = vld [vmem:[#allocation16 + $0x128] sm:$0xff]
    %v1861 = vld [vmem:[#allocation16 + $0x130] sm:$0xff]
    %v1862 = vld [vmem:[#allocation16 + $0x138] sm:$0xff]
    %v1863 = vld [vmem:[#allocation16 + $0x140] sm:$0xff]
    %v1864 = vld [vmem:[#allocation16 + $0x148] sm:$0xff]
    %v1865 = vld [vmem:[#allocation16 + $0x150] sm:$0xff]
    %v1866 = vld [vmem:[#allocation16 + $0x158] sm:$0xff]
    %v1867 = vld [vmem:[#allocation16 + $0x160] sm:$0xff]
    %v1868 = vld [vmem:[#allocation16 + $0x168] sm:$0xff]
    %v1869 = vld [vmem:[#allocation16 + $0x170] sm:$0xff]
    %v1870 = vld [vmem:[#allocation16 + $0x178] sm:$0xff]
    %v1871 = vld [vmem:[#allocation16 + $0x180] sm:$0xff]
    %v1872 = vld [vmem:[#allocation16 + $0x188] sm:$0xff]
    %v1873 = vld [vmem:[#allocation16 + $0x190] sm:$0xff]
    %v1874 = vld [vmem:[#allocation16 + $0x198] sm:$0xff]
    %v1875 = vld [vmem:[#allocation16 + $0x1a0] sm:$0xff]
    %v1876 = vld [vmem:[#allocation16 + $0x1a8] sm:$0xff]
    %v1877 = vld [vmem:[#allocation16 + $0x1b0] sm:$0xff]
    %v1878 = vld [vmem:[#allocation16 + $0x1b8] sm:$0xff]
    %v1879 = vld [vmem:[#allocation16 + $0x1c0] sm:$0xff]
    %v1880 = vld [vmem:[#allocation16 + $0x1c8] sm:$0xff]
    %v1881 = vld [vmem:[#allocation16 + $0x1d0] sm:$0xff]
    %v1882 = vld [vmem:[#allocation16 + $0x1d8] sm:$0xff]
    %v1883 = vld [vmem:[#allocation16 + $0x1e0] sm:$0xff]
    %v1884 = vld [vmem:[#allocation16 + $0x1e8] sm:$0xff]
    %v1885 = vld [vmem:[#allocation16 + $0x1f0] sm:$0xff]
    %v1886 = vld [vmem:[#allocation16 + $0x1f8] sm:$0xff]
    %v1887 = vld [vmem:[#allocation16 + $0x200] sm:$0xff]
    %v1888 = vld [vmem:[#allocation16 + $0x208] sm:$0xff]
    %v1889 = vld [vmem:[#allocation16 + $0x210] sm:$0xff]
    %v1890 = vld [vmem:[#allocation16 + $0x218] sm:$0xff]
    %v1891 = vld [vmem:[#allocation16 + $0x220] sm:$0xff]
    %v1892 = vld [vmem:[#allocation16 + $0x228] sm:$0xff]
    %v1893 = vld [vmem:[#allocation16 + $0x230] sm:$0xff]
    %v1894 = vld [vmem:[#allocation16 + $0x238] sm:$0xff]
    %v1895 = vld [vmem:[#allocation16 + $0x240] sm:$0xff]
    %v1896 = vld [vmem:[#allocation16 + $0x248] sm:$0xff]
    %v1897 = vld [vmem:[#allocation16 + $0x250] sm:$0xff]
    %v1898 = vld [vmem:[#allocation16 + $0x258] sm:$0xff]
    %v1899 = vld [vmem:[#allocation16 + $0x260] sm:$0xff]
    %v1900 = vld [vmem:[#allocation16 + $0x268] sm:$0xff]
    %v1901 = vld [vmem:[#allocation16 + $0x270] sm:$0xff]
    %v1902 = vld [vmem:[#allocation16 + $0x278] sm:$0xff]
    %v1903 = vld [vmem:[#allocation16 + $0x280] sm:$0xff]
    %v1904 = vld [vmem:[#allocation16 + $0x288] sm:$0xff]
    %v1905 = vld [vmem:[#allocation16 + $0x290] sm:$0xff]
    %v1906 = vld [vmem:[#allocation16 + $0x298] sm:$0xff]
    %v1907 = vld [vmem:[#allocation16 + $0x2a0] sm:$0xff]
    %v1908 = vld [vmem:[#allocation16 + $0x2a8] sm:$0xff]
    %v1909 = vld [vmem:[#allocation16 + $0x2b0] sm:$0xff]
    %v1910 = vld [vmem:[#allocation16 + $0x2b8] sm:$0xff]
    %v1911 = vld [vmem:[#allocation16 + $0x2c0] sm:$0xff]
    %v1912 = vld [vmem:[#allocation16 + $0x2c8] sm:$0xff]
    %v1913 = vld [vmem:[#allocation16 + $0x2d0] sm:$0xff]
    %v1914 = vld [vmem:[#allocation16 + $0x2d8] sm:$0xff]
    %v1915 = vld [vmem:[#allocation16 + $0x2e0] sm:$0xff]
    %v1916 = vld [vmem:[#allocation16 + $0x2e8] sm:$0xff]
    %v1917 = vld [vmem:[#allocation16 + $0x2f0] sm:$0xff]
    %v1918 = vld [vmem:[#allocation16 + $0x2f8] sm:$0xff]
    %v1919 = vld [vmem:[#allocation16 + $0x300] sm:$0xff]
    %v1920 = vld [vmem:[#allocation16 + $0x308] sm:$0xff]
    %v1921 = vld [vmem:[#allocation16 + $0x310] sm:$0xff]
    %v1922 = vld [vmem:[#allocation16 + $0x318] sm:$0xff]
    %v1923 = vld [vmem:[#allocation16 + $0x320] sm:$0xff]
    %v1924 = vld [vmem:[#allocation16 + $0x328] sm:$0xff]
    %v1925 = vld [vmem:[#allocation16 + $0x330] sm:$0xff]
    %v1926 = vld [vmem:[#allocation16 + $0x338] sm:$0xff]
    %v1927 = vld [vmem:[#allocation16 + $0x340] sm:$0xff]
    %v1928 = vld [vmem:[#allocation16 + $0x348] sm:$0xff]
    %v1929 = vld [vmem:[#allocation16 + $0x350] sm:$0xff]
    %v1930 = vld [vmem:[#allocation16 + $0x358] sm:$0xff]
    %v1931 = vld [vmem:[#allocation16 + $0x360] sm:$0xff]
    %v1932 = vld [vmem:[#allocation16 + $0x368] sm:$0xff]
    %v1933 = vld [vmem:[#allocation16 + $0x370] sm:$0xff]
    %v1934 = vld [vmem:[#allocation16 + $0x378] sm:$0xff]
    %v1935 = vld [vmem:[#allocation16 + $0x380] sm:$0xff]
    %v1936 = vld [vmem:[#allocation16 + $0x388] sm:$0xff]
    %v1937 = vld [vmem:[#allocation16 + $0x390] sm:$0xff]
    %v1938 = vld [vmem:[#allocation16 + $0x398] sm:$0xff]
    %v1939 = vld [vmem:[#allocation16 + $0x3a0] sm:$0xff]
    %v1940 = vld [vmem:[#allocation16 + $0x3a8] sm:$0xff]
    %v1941 = vld [vmem:[#allocation16 + $0x3b0] sm:$0xff]
    %v1942 = vld [vmem:[#allocation16 + $0x3b8] sm:$0xff]
    %v1943 = vld [vmem:[#allocation16 + $0x3c0] sm:$0xff]
    %v1944 = vld [vmem:[#allocation16 + $0x3c8] sm:$0xff]
    %v1945 = vld [vmem:[#allocation16 + $0x3d0] sm:$0xff]
    %v1946 = vld [vmem:[#allocation16 + $0x3d8] sm:$0xff]
    %v1947 = vld [vmem:[#allocation16 + $0x3e0] sm:$0xff]
    %v1948 = vld [vmem:[#allocation16 + $0x3e8] sm:$0xff]
    %v1949 = vld [vmem:[#allocation16 + $0x3f0] sm:$0xff]
    %v1950 = vld [vmem:[#allocation16 + $0x3f8] sm:$0xff]
    %v1951 = vld [vmem:[#allocation16 + $0x400] sm:$0xff]
    %v1952 = vld [vmem:[#allocation16 + $0x408] sm:$0xff]
    %v1953 = vld [vmem:[#allocation16 + $0x410] sm:$0xff]
    %v1954 = vld [vmem:[#allocation16 + $0x418] sm:$0xff]
    %v1955 = vld [vmem:[#allocation16 + $0x420] sm:$0xff]
    %v1956 = vld [vmem:[#allocation16 + $0x428] sm:$0xff]
    %v1957 = vld [vmem:[#allocation16 + $0x430] sm:$0xff]
    %v1958 = vld [vmem:[#allocation16 + $0x438] sm:$0xff]
    %v1959 = vld [vmem:[#allocation16 + $0x440] sm:$0xff]
    %v1960 = vld [vmem:[#allocation16 + $0x448] sm:$0xff]
    %v1961 = vld [vmem:[#allocation16 + $0x450] sm:$0xff]
    %v1962 = vld [vmem:[#allocation16 + $0x458] sm:$0xff]
    %v1963 = vld [vmem:[#allocation16 + $0x460] sm:$0xff]
    %v1964 = vld [vmem:[#allocation16 + $0x468] sm:$0xff]
    %v1965 = vld [vmem:[#allocation16 + $0x470] sm:$0xff]
    %v1966 = vld [vmem:[#allocation16 + $0x478] sm:$0xff]
    %v1967 = vld [vmem:[#allocation16 + $0x480] sm:$0xff]
    %v1968 = vld [vmem:[#allocation16 + $0x488] sm:$0xff]
    %v1969 = vld [vmem:[#allocation16 + $0x490] sm:$0xff]
    %v1970 = vld [vmem:[#allocation16 + $0x498] sm:$0xff]
    %v1971 = vld [vmem:[#allocation16 + $0x4a0] sm:$0xff]
    %v1972 = vld [vmem:[#allocation16 + $0x4a8] sm:$0xff]
    %v1973 = vld [vmem:[#allocation16 + $0x4b0] sm:$0xff]
    %v1974 = vld [vmem:[#allocation16 + $0x4b8] sm:$0xff]
    %v1975 = vld [vmem:[#allocation16 + $0x4c0] sm:$0xff]
    %v1976 = vld [vmem:[#allocation16 + $0x4c8] sm:$0xff]
    %v1977 = vld [vmem:[#allocation16 + $0x4d0] sm:$0xff]
    %v1978 = vld [vmem:[#allocation16 + $0x4d8] sm:$0xff]
    %v1979 = vld [vmem:[#allocation16 + $0x4e0] sm:$0xff]
    %v1980 = vld [vmem:[#allocation16 + $0x4e8] sm:$0xff]
    %v1981 = vld [vmem:[#allocation16 + $0x4f0] sm:$0xff]
    %v1982 = vld [vmem:[#allocation16 + $0x4f8] sm:$0xff]
    %v1983 = vld [vmem:[#allocation16 + $0x500] sm:$0xff]
    %v1984 = vld [vmem:[#allocation16 + $0x508] sm:$0xff]
    %v1985 = vld [vmem:[#allocation16 + $0x510] sm:$0xff]
    %v1986 = vld [vmem:[#allocation16 + $0x518] sm:$0xff]
    %v1987 = vld [vmem:[#allocation16 + $0x520] sm:$0xff]
    %v1988 = vld [vmem:[#allocation16 + $0x528] sm:$0xff]
    %v1989 = vld [vmem:[#allocation16 + $0x530] sm:$0xff]
    %v1990 = vld [vmem:[#allocation16 + $0x538] sm:$0xff]
    %v1991 = vld [vmem:[#allocation16 + $0x540] sm:$0xff]
    %v1992 = vld [vmem:[#allocation16 + $0x548] sm:$0xff]
    %v1993 = vld [vmem:[#allocation16 + $0x550] sm:$0xff]
    %v1994 = vld [vmem:[#allocation16 + $0x558] sm:$0xff]
    %v1995 = vld [vmem:[#allocation16 + $0x560] sm:$0xff]
    %v1996 = vld [vmem:[#allocation16 + $0x568] sm:$0xff]
    %v1997 = vld [vmem:[#allocation16 + $0x570] sm:$0xff]
    %v1998 = vld [vmem:[#allocation16 + $0x578] sm:$0xff]
    %v1999 = vld [vmem:[#allocation16 + $0x580] sm:$0xff]
    %v2000 = vld [vmem:[#allocation16 + $0x588] sm:$0xff]
    %v2001 = vld [vmem:[#allocation16 + $0x590] sm:$0xff]
    %v2002 = vld [vmem:[#allocation16 + $0x598] sm:$0xff]
    %v2003 = vld [vmem:[#allocation16 + $0x5a0] sm:$0xff]
    %v2004 = vld [vmem:[#allocation16 + $0x5a8] sm:$0xff]
    %v2005 = vld [vmem:[#allocation16 + $0x5b0] sm:$0xff]
    %v2006 = vld [vmem:[#allocation16 + $0x5b8] sm:$0xff]
    %v2007 = vld [vmem:[#allocation16 + $0x5c0] sm:$0xff]
    %v2008 = vld [vmem:[#allocation16 + $0x5c8] sm:$0xff]
    %v2009 = vld [vmem:[#allocation16 + $0x5d0] sm:$0xff]
    %v2010 = vld [vmem:[#allocation16 + $0x5d8] sm:$0xff]
    %v2011 = vld [vmem:[#allocation16 + $0x5e0] sm:$0xff]
    %v2012 = vld [vmem:[#allocation16 + $0x5e8] sm:$0xff]
    %v2013 = vld [vmem:[#allocation16 + $0x5f0] sm:$0xff]
    %v2014 = vld [vmem:[#allocation16 + $0x5f8] sm:$0xff]
    %v2015 = vld [vmem:[#allocation16 + $0x600] sm:$0xff]
    %v2016 = vld [vmem:[#allocation16 + $0x608] sm:$0xff]
    %v2017 = vld [vmem:[#allocation16 + $0x610] sm:$0xff]
    %v2018 = vld [vmem:[#allocation16 + $0x618] sm:$0xff]
    %v2019 = vld [vmem:[#allocation16 + $0x620] sm:$0xff]
    %v2020 = vld [vmem:[#allocation16 + $0x628] sm:$0xff]
    %v2021 = vld [vmem:[#allocation16 + $0x630] sm:$0xff]
    %v2022 = vld [vmem:[#allocation16 + $0x638] sm:$0xff]
    %v2023 = vld [vmem:[#allocation16 + $0x640] sm:$0xff]
    %v2024 = vld [vmem:[#allocation16 + $0x648] sm:$0xff]
    %v2025 = vld [vmem:[#allocation16 + $0x650] sm:$0xff]
    %v2026 = vld [vmem:[#allocation16 + $0x658] sm:$0xff]
    %v2027 = vld [vmem:[#allocation16 + $0x660] sm:$0xff]
    %v2028 = vld [vmem:[#allocation16 + $0x668] sm:$0xff]
    %v2029 = vld [vmem:[#allocation16 + $0x670] sm:$0xff]
    %v2030 = vld [vmem:[#allocation16 + $0x678] sm:$0xff]
    %v2031 = vld [vmem:[#allocation16 + $0x680] sm:$0xff]
    %v2032 = vld [vmem:[#allocation16 + $0x688] sm:$0xff]
    %v2033 = vld [vmem:[#allocation16 + $0x690] sm:$0xff]
    %v2034 = vld [vmem:[#allocation16 + $0x698] sm:$0xff]
    %v2035 = vld [vmem:[#allocation16 + $0x6a0] sm:$0xff]
    %v2036 = vld [vmem:[#allocation16 + $0x6a8] sm:$0xff]
    %v2037 = vld [vmem:[#allocation16 + $0x6b0] sm:$0xff]
    %v2038 = vld [vmem:[#allocation16 + $0x6b8] sm:$0xff]
    %v2039 = vld [vmem:[#allocation16 + $0x6c0] sm:$0xff]
    %v2040 = vld [vmem:[#allocation16 + $0x6c8] sm:$0xff]
    %v2041 = vld [vmem:[#allocation16 + $0x6d0] sm:$0xff]
    %v2042 = vld [vmem:[#allocation16 + $0x6d8] sm:$0xff]
    %v2043 = vld [vmem:[#allocation16 + $0x6e0] sm:$0xff]
    %v2044 = vld [vmem:[#allocation16 + $0x6e8] sm:$0xff]
    %v2045 = vld [vmem:[#allocation16 + $0x6f0] sm:$0xff]
    %v2046 = vld [vmem:[#allocation16 + $0x6f8] sm:$0xff]
    %v2047 = vld [vmem:[#allocation16 + $0x700] sm:$0xff]
    %v2048 = vld [vmem:[#allocation16 + $0x708] sm:$0xff]
    %v2049 = vld [vmem:[#allocation16 + $0x710] sm:$0xff]
    %v2050 = vld [vmem:[#allocation16 + $0x718] sm:$0xff]
    %v2051 = vld [vmem:[#allocation16 + $0x720] sm:$0xff]
    %v2052 = vld [vmem:[#allocation16 + $0x728] sm:$0xff]
    %v2053 = vld [vmem:[#allocation16 + $0x730] sm:$0xff]
    %v2054 = vld [vmem:[#allocation16 + $0x738] sm:$0xff]
    %v2055 = vld [vmem:[#allocation16 + $0x740] sm:$0xff]
    %v2056 = vld [vmem:[#allocation16 + $0x748] sm:$0xff]
    %v2057 = vld [vmem:[#allocation16 + $0x750] sm:$0xff]
    %v2058 = vld [vmem:[#allocation16 + $0x758] sm:$0xff]
    %v2059 = vld [vmem:[#allocation16 + $0x760] sm:$0xff]
    %v2060 = vld [vmem:[#allocation16 + $0x768] sm:$0xff]
    %v2061 = vld [vmem:[#allocation16 + $0x770] sm:$0xff]
    %v2062 = vld [vmem:[#allocation16 + $0x778] sm:$0xff]
    %v2063 = vld [vmem:[#allocation16 + $0x780] sm:$0xff]
    %v2064 = vld [vmem:[#allocation16 + $0x788] sm:$0xff]
    %v2065 = vld [vmem:[#allocation16 + $0x790] sm:$0xff]
    %v2066 = vld [vmem:[#allocation16 + $0x798] sm:$0xff]
    %v2067 = vld [vmem:[#allocation16 + $0x7a0] sm:$0xff]
    %v2068 = vld [vmem:[#allocation16 + $0x7a8] sm:$0xff]
    %v2069 = vld [vmem:[#allocation16 + $0x7b0] sm:$0xff]
    %v2070 = vld [vmem:[#allocation16 + $0x7b8] sm:$0xff]
    %v2071 = vld [vmem:[#allocation16 + $0x7c0] sm:$0xff]
    %v2072 = vld [vmem:[#allocation16 + $0x7c8] sm:$0xff]
    %v2073 = vld [vmem:[#allocation16 + $0x7d0] sm:$0xff]
    %v2074 = vld [vmem:[#allocation16 + $0x7d8] sm:$0xff]
    %v2075 = vld [vmem:[#allocation16 + $0x7e0] sm:$0xff]
    %v2076 = vld [vmem:[#allocation16 + $0x7e8] sm:$0xff]
    %v2077 = vld [vmem:[#allocation16 + $0x7f0] sm:$0xff]
    %v2078 = vld [vmem:[#allocation16 + $0x7f8] sm:$0xff]
    %v2079 = vld [vmem:[%s14] sm:$0xff]
    %v2081 = vperm.slane %v2079, 0
    %v2082 = vperm.slane %v2079, 1
    %v2083 = vperm.slane %v2079, 2
    %v2084 = vperm.slane %v2079, 3
    %v2085 = vperm.slane %v2079, 4
    %v2086 = vperm.slane %v2079, 5
    %v2087 = vperm.slane %v2079, 6
    %v2088 = vperm.slane %v2079, 7
    %v2353 = vunpack.c.l.b16 %v1823
    %v2354 = vunpack.c.h.b16 %v1823
    %v2355 = vunpack.c.l.b16 %v1824
    %v2356 = vunpack.c.h.b16 %v1824
    %v2357 = vunpack.c.l.b16 %v1825
    %v2358 = vunpack.c.h.b16 %v1825
    %v2359 = vunpack.c.l.b16 %v1826
    %v2360 = vunpack.c.h.b16 %v1826
    %v2361 = vunpack.c.l.b16 %v1827
    %v2362 = vunpack.c.h.b16 %v1827
    %v2363 = vunpack.c.l.b16 %v1828
    %v2364 = vunpack.c.h.b16 %v1828
    %v2365 = vunpack.c.l.b16 %v1829
    %v2366 = vunpack.c.h.b16 %v1829
    %v2367 = vunpack.c.l.b16 %v1830
    %v2368 = vunpack.c.h.b16 %v1830
    %v2369 = vunpack.c.l.b16 %v1831
    %v2370 = vunpack.c.h.b16 %v1831
    %v2371 = vunpack.c.l.b16 %v1832
    %v2372 = vunpack.c.h.b16 %v1832
    %v2373 = vunpack.c.l.b16 %v1833
    %v2374 = vunpack.c.h.b16 %v1833
    %v2375 = vunpack.c.l.b16 %v1834
    %v2376 = vunpack.c.h.b16 %v1834
    %v2377 = vunpack.c.l.b16 %v1835
    %v2378 = vunpack.c.h.b16 %v1835
    %v2379 = vunpack.c.l.b16 %v1836
    %v2380 = vunpack.c.h.b16 %v1836
    %v2381 = vunpack.c.l.b16 %v1837
    %v2382 = vunpack.c.h.b16 %v1837
    %v2383 = vunpack.c.l.b16 %v1838
    %v2384 = vunpack.c.h.b16 %v1838
    %v2385 = vunpack.c.l.b16 %v1839
    %v2386 = vunpack.c.h.b16 %v1839
    %v2387 = vunpack.c.l.b16 %v1840
    %v2388 = vunpack.c.h.b16 %v1840
    %v2389 = vunpack.c.l.b16 %v1841
    %v2390 = vunpack.c.h.b16 %v1841
    %v2391 = vunpack.c.l.b16 %v1842
    %v2392 = vunpack.c.h.b16 %v1842
    %v2393 = vunpack.c.l.b16 %v1843
    %v2394 = vunpack.c.h.b16 %v1843
    %v2395 = vunpack.c.l.b16 %v1844
    %v2396 = vunpack.c.h.b16 %v1844
    %v2397 = vunpack.c.l.b16 %v1845
    %v2398 = vunpack.c.h.b16 %v1845
    %v2399 = vunpack.c.l.b16 %v1846
    %v2400 = vunpack.c.h.b16 %v1846
    %v2401 = vunpack.c.l.b16 %v1847
    %v2402 = vunpack.c.h.b16 %v1847
    %v2403 = vunpack.c.l.b16 %v1848
    %v2404 = vunpack.c.h.b16 %v1848
    %v2405 = vunpack.c.l.b16 %v1849
    %v2406 = vunpack.c.h.b16 %v1849
    %v2407 = vunpack.c.l.b16 %v1850
    %v2408 = vunpack.c.h.b16 %v1850
    %v2409 = vunpack.c.l.b16 %v1851
    %v2410 = vunpack.c.h.b16 %v1851
    %v2411 = vunpack.c.l.b16 %v1852
    %v2412 = vunpack.c.h.b16 %v1852
    %v2413 = vunpack.c.l.b16 %v1853
    %v2414 = vunpack.c.h.b16 %v1853
    %v2415 = vunpack.c.l.b16 %v1854
    %v2416 = vunpack.c.h.b16 %v1854
    %v2417 = vunpack.c.l.b16 %v1855
    %v2418 = vunpack.c.h.b16 %v1855
    %v2419 = vunpack.c.l.b16 %v1856
    %v2420 = vunpack.c.h.b16 %v1856
    %v2421 = vunpack.c.l.b16 %v1857
    %v2422 = vunpack.c.h.b16 %v1857
    %v2423 = vunpack.c.l.b16 %v1858
    %v2424 = vunpack.c.h.b16 %v1858
    %v2425 = vunpack.c.l.b16 %v1859
    %v2426 = vunpack.c.h.b16 %v1859
    %v2427 = vunpack.c.l.b16 %v1860
    %v2428 = vunpack.c.h.b16 %v1860
    %v2429 = vunpack.c.l.b16 %v1861
    %v2430 = vunpack.c.h.b16 %v1861
    %v2431 = vunpack.c.l.b16 %v1862
    %v2432 = vunpack.c.h.b16 %v1862
    %v2433 = vunpack.c.l.b16 %v1863
    %v2434 = vunpack.c.h.b16 %v1863
    %v2435 = vunpack.c.l.b16 %v1864
    %v2436 = vunpack.c.h.b16 %v1864
    %v2437 = vunpack.c.l.b16 %v1865
    %v2438 = vunpack.c.h.b16 %v1865
    %v2439 = vunpack.c.l.b16 %v1866
    %v2440 = vunpack.c.h.b16 %v1866
    %v2441 = vunpack.c.l.b16 %v1867
    %v2442 = vunpack.c.h.b16 %v1867
    %v2443 = vunpack.c.l.b16 %v1868
    %v2444 = vunpack.c.h.b16 %v1868
    %v2445 = vunpack.c.l.b16 %v1869
    %v2446 = vunpack.c.h.b16 %v1869
    %v2447 = vunpack.c.l.b16 %v1870
    %v2448 = vunpack.c.h.b16 %v1870
    %v2449 = vunpack.c.l.b16 %v1871
    %v2450 = vunpack.c.h.b16 %v1871
    %v2451 = vunpack.c.l.b16 %v1872
    %v2452 = vunpack.c.h.b16 %v1872
    %v2453 = vunpack.c.l.b16 %v1873
    %v2454 = vunpack.c.h.b16 %v1873
    %v2455 = vunpack.c.l.b16 %v1874
    %v2456 = vunpack.c.h.b16 %v1874
    %v2457 = vunpack.c.l.b16 %v1875
    %v2458 = vunpack.c.h.b16 %v1875
    %v2459 = vunpack.c.l.b16 %v1876
    %v2460 = vunpack.c.h.b16 %v1876
    %v2461 = vunpack.c.l.b16 %v1877
    %v2462 = vunpack.c.h.b16 %v1877
    %v2463 = vunpack.c.l.b16 %v1878
    %v2464 = vunpack.c.h.b16 %v1878
    %v2465 = vunpack.c.l.b16 %v1879
    %v2466 = vunpack.c.h.b16 %v1879
    %v2467 = vunpack.c.l.b16 %v1880
    %v2468 = vunpack.c.h.b16 %v1880
    %v2469 = vunpack.c.l.b16 %v1881
    %v2470 = vunpack.c.h.b16 %v1881
    %v2471 = vunpack.c.l.b16 %v1882
    %v2472 = vunpack.c.h.b16 %v1882
    %v2473 = vunpack.c.l.b16 %v1883
    %v2474 = vunpack.c.h.b16 %v1883
    %v2475 = vunpack.c.l.b16 %v1884
    %v2476 = vunpack.c.h.b16 %v1884
    %v2477 = vunpack.c.l.b16 %v1885
    %v2478 = vunpack.c.h.b16 %v1885
    %v2479 = vunpack.c.l.b16 %v1886
    %v2480 = vunpack.c.h.b16 %v1886
    %v2481 = vunpack.c.l.b16 %v1887
    %v2482 = vunpack.c.h.b16 %v1887
    %v2483 = vunpack.c.l.b16 %v1888
    %v2484 = vunpack.c.h.b16 %v1888
    %v2485 = vunpack.c.l.b16 %v1889
    %v2486 = vunpack.c.h.b16 %v1889
    %v2487 = vunpack.c.l.b16 %v1890
    %v2488 = vunpack.c.h.b16 %v1890
    %v2489 = vunpack.c.l.b16 %v1891
    %v2490 = vunpack.c.h.b16 %v1891
    %v2491 = vunpack.c.l.b16 %v1892
    %v2492 = vunpack.c.h.b16 %v1892
    %v2493 = vunpack.c.l.b16 %v1893
    %v2494 = vunpack.c.h.b16 %v1893
    %v2495 = vunpack.c.l.b16 %v1894
    %v2496 = vunpack.c.h.b16 %v1894
    %v2497 = vunpack.c.l.b16 %v1895
    %v2498 = vunpack.c.h.b16 %v1895
    %v2499 = vunpack.c.l.b16 %v1896
    %v2500 = vunpack.c.h.b16 %v1896
    %v2501 = vunpack.c.l.b16 %v1897
    %v2502 = vunpack.c.h.b16 %v1897
    %v2503 = vunpack.c.l.b16 %v1898
    %v2504 = vunpack.c.h.b16 %v1898
    %v2505 = vunpack.c.l.b16 %v1899
    %v2506 = vunpack.c.h.b16 %v1899
    %v2507 = vunpack.c.l.b16 %v1900
    %v2508 = vunpack.c.h.b16 %v1900
    %v2509 = vunpack.c.l.b16 %v1901
    %v2510 = vunpack.c.h.b16 %v1901
    %v2511 = vunpack.c.l.b16 %v1902
    %v2512 = vunpack.c.h.b16 %v1902
    %v2513 = vunpack.c.l.b16 %v1903
    %v2514 = vunpack.c.h.b16 %v1903
    %v2515 = vunpack.c.l.b16 %v1904
    %v2516 = vunpack.c.h.b16 %v1904
    %v2517 = vunpack.c.l.b16 %v1905
    %v2518 = vunpack.c.h.b16 %v1905
    %v2519 = vunpack.c.l.b16 %v1906
    %v2520 = vunpack.c.h.b16 %v1906
    %v2521 = vunpack.c.l.b16 %v1907
    %v2522 = vunpack.c.h.b16 %v1907
    %v2523 = vunpack.c.l.b16 %v1908
    %v2524 = vunpack.c.h.b16 %v1908
    %v2525 = vunpack.c.l.b16 %v1909
    %v2526 = vunpack.c.h.b16 %v1909
    %v2527 = vunpack.c.l.b16 %v1910
    %v2528 = vunpack.c.h.b16 %v1910
    %v2529 = vunpack.c.l.b16 %v1911
    %v2530 = vunpack.c.h.b16 %v1911
    %v2531 = vunpack.c.l.b16 %v1912
    %v2532 = vunpack.c.h.b16 %v1912
    %v2533 = vunpack.c.l.b16 %v1913
    %v2534 = vunpack.c.h.b16 %v1913
    %v2535 = vunpack.c.l.b16 %v1914
    %v2536 = vunpack.c.h.b16 %v1914
    %v2537 = vunpack.c.l.b16 %v1915
    %v2538 = vunpack.c.h.b16 %v1915
    %v2539 = vunpack.c.l.b16 %v1916
    %v2540 = vunpack.c.h.b16 %v1916
    %v2541 = vunpack.c.l.b16 %v1917
    %v2542 = vunpack.c.h.b16 %v1917
    %v2543 = vunpack.c.l.b16 %v1918
    %v2544 = vunpack.c.h.b16 %v1918
    %v2545 = vunpack.c.l.b16 %v1919
    %v2546 = vunpack.c.h.b16 %v1919
    %v2547 = vunpack.c.l.b16 %v1920
    %v2548 = vunpack.c.h.b16 %v1920
    %v2549 = vunpack.c.l.b16 %v1921
    %v2550 = vunpack.c.h.b16 %v1921
    %v2551 = vunpack.c.l.b16 %v1922
    %v2552 = vunpack.c.h.b16 %v1922
    %v2553 = vunpack.c.l.b16 %v1923
    %v2554 = vunpack.c.h.b16 %v1923
    %v2555 = vunpack.c.l.b16 %v1924
    %v2556 = vunpack.c.h.b16 %v1924
    %v2557 = vunpack.c.l.b16 %v1925
    %v2558 = vunpack.c.h.b16 %v1925
    %v2559 = vunpack.c.l.b16 %v1926
    %v2560 = vunpack.c.h.b16 %v1926
    %v2561 = vunpack.c.l.b16 %v1927
    %v2562 = vunpack.c.h.b16 %v1927
    %v2563 = vunpack.c.l.b16 %v1928
    %v2564 = vunpack.c.h.b16 %v1928
    %v2565 = vunpack.c.l.b16 %v1929
    %v2566 = vunpack.c.h.b16 %v1929
    %v2567 = vunpack.c.l.b16 %v1930
    %v2568 = vunpack.c.h.b16 %v1930
    %v2569 = vunpack.c.l.b16 %v1931
    %v2570 = vunpack.c.h.b16 %v1931
    %v2571 = vunpack.c.l.b16 %v1932
    %v2572 = vunpack.c.h.b16 %v1932
    %v2573 = vunpack.c.l.b16 %v1933
    %v2574 = vunpack.c.h.b16 %v1933
    %v2575 = vunpack.c.l.b16 %v1934
    %v2576 = vunpack.c.h.b16 %v1934
    %v2577 = vunpack.c.l.b16 %v1935
    %v2578 = vunpack.c.h.b16 %v1935
    %v2579 = vunpack.c.l.b16 %v1936
    %v2580 = vunpack.c.h.b16 %v1936
    %v2581 = vunpack.c.l.b16 %v1937
    %v2582 = vunpack.c.h.b16 %v1937
    %v2583 = vunpack.c.l.b16 %v1938
    %v2584 = vunpack.c.h.b16 %v1938
    %v2585 = vunpack.c.l.b16 %v1939
    %v2586 = vunpack.c.h.b16 %v1939
    %v2587 = vunpack.c.l.b16 %v1940
    %v2588 = vunpack.c.h.b16 %v1940
    %v2589 = vunpack.c.l.b16 %v1941
    %v2590 = vunpack.c.h.b16 %v1941
    %v2591 = vunpack.c.l.b16 %v1942
    %v2592 = vunpack.c.h.b16 %v1942
    %v2593 = vunpack.c.l.b16 %v1943
    %v2594 = vunpack.c.h.b16 %v1943
    %v2595 = vunpack.c.l.b16 %v1944
    %v2596 = vunpack.c.h.b16 %v1944
    %v2597 = vunpack.c.l.b16 %v1945
    %v2598 = vunpack.c.h.b16 %v1945
    %v2599 = vunpack.c.l.b16 %v1946
    %v2600 = vunpack.c.h.b16 %v1946
    %v2601 = vunpack.c.l.b16 %v1947
    %v2602 = vunpack.c.h.b16 %v1947
    %v2603 = vunpack.c.l.b16 %v1948
    %v2604 = vunpack.c.h.b16 %v1948
    %v2605 = vunpack.c.l.b16 %v1949
    %v2606 = vunpack.c.h.b16 %v1949
    %v2607 = vunpack.c.l.b16 %v1950
    %v2608 = vunpack.c.h.b16 %v1950
    %v2609 = vunpack.c.l.b16 %v1951
    %v2610 = vunpack.c.h.b16 %v1951
    %v2611 = vunpack.c.l.b16 %v1952
    %v2612 = vunpack.c.h.b16 %v1952
    %v2613 = vunpack.c.l.b16 %v1953
    %v2614 = vunpack.c.h.b16 %v1953
    %v2615 = vunpack.c.l.b16 %v1954
    %v2616 = vunpack.c.h.b16 %v1954
    %v2617 = vunpack.c.l.b16 %v1955
    %v2618 = vunpack.c.h.b16 %v1955
    %v2619 = vunpack.c.l.b16 %v1956
    %v2620 = vunpack.c.h.b16 %v1956
    %v2621 = vunpack.c.l.b16 %v1957
    %v2622 = vunpack.c.h.b16 %v1957
    %v2623 = vunpack.c.l.b16 %v1958
    %v2624 = vunpack.c.h.b16 %v1958
    %v2625 = vunpack.c.l.b16 %v1959
    %v2626 = vunpack.c.h.b16 %v1959
    %v2627 = vunpack.c.l.b16 %v1960
    %v2628 = vunpack.c.h.b16 %v1960
    %v2629 = vunpack.c.l.b16 %v1961
    %v2630 = vunpack.c.h.b16 %v1961
    %v2631 = vunpack.c.l.b16 %v1962
    %v2632 = vunpack.c.h.b16 %v1962
    %v2633 = vunpack.c.l.b16 %v1963
    %v2634 = vunpack.c.h.b16 %v1963
    %v2635 = vunpack.c.l.b16 %v1964
    %v2636 = vunpack.c.h.b16 %v1964
    %v2637 = vunpack.c.l.b16 %v1965
    %v2638 = vunpack.c.h.b16 %v1965
    %v2639 = vunpack.c.l.b16 %v1966
    %v2640 = vunpack.c.h.b16 %v1966
    %v2641 = vunpack.c.l.b16 %v1967
    %v2642 = vunpack.c.h.b16 %v1967
    %v2643 = vunpack.c.l.b16 %v1968
    %v2644 = vunpack.c.h.b16 %v1968
    %v2645 = vunpack.c.l.b16 %v1969
    %v2646 = vunpack.c.h.b16 %v1969
    %v2647 = vunpack.c.l.b16 %v1970
    %v2648 = vunpack.c.h.b16 %v1970
    %v2649 = vunpack.c.l.b16 %v1971
    %v2650 = vunpack.c.h.b16 %v1971
    %v2651 = vunpack.c.l.b16 %v1972
    %v2652 = vunpack.c.h.b16 %v1972
    %v2653 = vunpack.c.l.b16 %v1973
    %v2654 = vunpack.c.h.b16 %v1973
    %v2655 = vunpack.c.l.b16 %v1974
    %v2656 = vunpack.c.h.b16 %v1974
    %v2657 = vunpack.c.l.b16 %v1975
    %v2658 = vunpack.c.h.b16 %v1975
    %v2659 = vunpack.c.l.b16 %v1976
    %v2660 = vunpack.c.h.b16 %v1976
    %v2661 = vunpack.c.l.b16 %v1977
    %v2662 = vunpack.c.h.b16 %v1977
    %v2663 = vunpack.c.l.b16 %v1978
    %v2664 = vunpack.c.h.b16 %v1978
    %v2665 = vunpack.c.l.b16 %v1979
    %v2666 = vunpack.c.h.b16 %v1979
    %v2667 = vunpack.c.l.b16 %v1980
    %v2668 = vunpack.c.h.b16 %v1980
    %v2669 = vunpack.c.l.b16 %v1981
    %v2670 = vunpack.c.h.b16 %v1981
    %v2671 = vunpack.c.l.b16 %v1982
    %v2672 = vunpack.c.h.b16 %v1982
    %v2673 = vunpack.c.l.b16 %v1983
    %v2674 = vunpack.c.h.b16 %v1983
    %v2675 = vunpack.c.l.b16 %v1984
    %v2676 = vunpack.c.h.b16 %v1984
    %v2677 = vunpack.c.l.b16 %v1985
    %v2678 = vunpack.c.h.b16 %v1985
    %v2679 = vunpack.c.l.b16 %v1986
    %v2680 = vunpack.c.h.b16 %v1986
    %v2681 = vunpack.c.l.b16 %v1987
    %v2682 = vunpack.c.h.b16 %v1987
    %v2683 = vunpack.c.l.b16 %v1988
    %v2684 = vunpack.c.h.b16 %v1988
    %v2685 = vunpack.c.l.b16 %v1989
    %v2686 = vunpack.c.h.b16 %v1989
    %v2687 = vunpack.c.l.b16 %v1990
    %v2688 = vunpack.c.h.b16 %v1990
    %v2689 = vunpack.c.l.b16 %v1991
    %v2690 = vunpack.c.h.b16 %v1991
    %v2691 = vunpack.c.l.b16 %v1992
    %v2692 = vunpack.c.h.b16 %v1992
    %v2693 = vunpack.c.l.b16 %v1993
    %v2694 = vunpack.c.h.b16 %v1993
    %v2695 = vunpack.c.l.b16 %v1994
    %v2696 = vunpack.c.h.b16 %v1994
    %v2697 = vunpack.c.l.b16 %v1995
    %v2698 = vunpack.c.h.b16 %v1995
    %v2699 = vunpack.c.l.b16 %v1996
    %v2700 = vunpack.c.h.b16 %v1996
    %v2701 = vunpack.c.l.b16 %v1997
    %v2702 = vunpack.c.h.b16 %v1997
    %v2703 = vunpack.c.l.b16 %v1998
    %v2704 = vunpack.c.h.b16 %v1998
    %v2705 = vunpack.c.l.b16 %v1999
    %v2706 = vunpack.c.h.b16 %v1999
    %v2707 = vunpack.c.l.b16 %v2000
    %v2708 = vunpack.c.h.b16 %v2000
    %v2709 = vunpack.c.l.b16 %v2001
    %v2710 = vunpack.c.h.b16 %v2001
    %v2711 = vunpack.c.l.b16 %v2002
    %v2712 = vunpack.c.h.b16 %v2002
    %v2713 = vunpack.c.l.b16 %v2003
    %v2714 = vunpack.c.h.b16 %v2003
    %v2715 = vunpack.c.l.b16 %v2004
    %v2716 = vunpack.c.h.b16 %v2004
    %v2717 = vunpack.c.l.b16 %v2005
    %v2718 = vunpack.c.h.b16 %v2005
    %v2719 = vunpack.c.l.b16 %v2006
    %v2720 = vunpack.c.h.b16 %v2006
    %v2721 = vunpack.c.l.b16 %v2007
    %v2722 = vunpack.c.h.b16 %v2007
    %v2723 = vunpack.c.l.b16 %v2008
    %v2724 = vunpack.c.h.b16 %v2008
    %v2725 = vunpack.c.l.b16 %v2009
    %v2726 = vunpack.c.h.b16 %v2009
    %v2727 = vunpack.c.l.b16 %v2010
    %v2728 = vunpack.c.h.b16 %v2010
    %v2729 = vunpack.c.l.b16 %v2011
    %v2730 = vunpack.c.h.b16 %v2011
    %v2731 = vunpack.c.l.b16 %v2012
    %v2732 = vunpack.c.h.b16 %v2012
    %v2733 = vunpack.c.l.b16 %v2013
    %v2734 = vunpack.c.h.b16 %v2013
    %v2735 = vunpack.c.l.b16 %v2014
    %v2736 = vunpack.c.h.b16 %v2014
    %v2737 = vunpack.c.l.b16 %v2015
    %v2738 = vunpack.c.h.b16 %v2015
    %v2739 = vunpack.c.l.b16 %v2016
    %v2740 = vunpack.c.h.b16 %v2016
    %v2741 = vunpack.c.l.b16 %v2017
    %v2742 = vunpack.c.h.b16 %v2017
    %v2743 = vunpack.c.l.b16 %v2018
    %v2744 = vunpack.c.h.b16 %v2018
    %v2745 = vunpack.c.l.b16 %v2019
    %v2746 = vunpack.c.h.b16 %v2019
    %v2747 = vunpack.c.l.b16 %v2020
    %v2748 = vunpack.c.h.b16 %v2020
    %v2749 = vunpack.c.l.b16 %v2021
    %v2750 = vunpack.c.h.b16 %v2021
    %v2751 = vunpack.c.l.b16 %v2022
    %v2752 = vunpack.c.h.b16 %v2022
    %v2753 = vunpack.c.l.b16 %v2023
    %v2754 = vunpack.c.h.b16 %v2023
    %v2755 = vunpack.c.l.b16 %v2024
    %v2756 = vunpack.c.h.b16 %v2024
    %v2757 = vunpack.c.l.b16 %v2025
    %v2758 = vunpack.c.h.b16 %v2025
    %v2759 = vunpack.c.l.b16 %v2026
    %v2760 = vunpack.c.h.b16 %v2026
    %v2761 = vunpack.c.l.b16 %v2027
    %v2762 = vunpack.c.h.b16 %v2027
    %v2763 = vunpack.c.l.b16 %v2028
    %v2764 = vunpack.c.h.b16 %v2028
    %v2765 = vunpack.c.l.b16 %v2029
    %v2766 = vunpack.c.h.b16 %v2029
    %v2767 = vunpack.c.l.b16 %v2030
    %v2768 = vunpack.c.h.b16 %v2030
    %v2769 = vunpack.c.l.b16 %v2031
    %v2770 = vunpack.c.h.b16 %v2031
    %v2771 = vunpack.c.l.b16 %v2032
    %v2772 = vunpack.c.h.b16 %v2032
    %v2773 = vunpack.c.l.b16 %v2033
    %v2774 = vunpack.c.h.b16 %v2033
    %v2775 = vunpack.c.l.b16 %v2034
    %v2776 = vunpack.c.h.b16 %v2034
    %v2777 = vunpack.c.l.b16 %v2035
    %v2778 = vunpack.c.h.b16 %v2035
    %v2779 = vunpack.c.l.b16 %v2036
    %v2780 = vunpack.c.h.b16 %v2036
    %v2781 = vunpack.c.l.b16 %v2037
    %v2782 = vunpack.c.h.b16 %v2037
    %v2783 = vunpack.c.l.b16 %v2038
    %v2784 = vunpack.c.h.b16 %v2038
    %v2785 = vunpack.c.l.b16 %v2039
    %v2786 = vunpack.c.h.b16 %v2039
    %v2787 = vunpack.c.l.b16 %v2040
    %v2788 = vunpack.c.h.b16 %v2040
    %v2789 = vunpack.c.l.b16 %v2041
    %v2790 = vunpack.c.h.b16 %v2041
    %v2791 = vunpack.c.l.b16 %v2042
    %v2792 = vunpack.c.h.b16 %v2042
    %v2793 = vunpack.c.l.b16 %v2043
    %v2794 = vunpack.c.h.b16 %v2043
    %v2795 = vunpack.c.l.b16 %v2044
    %v2796 = vunpack.c.h.b16 %v2044
    %v2797 = vunpack.c.l.b16 %v2045
    %v2798 = vunpack.c.h.b16 %v2045
    %v2799 = vunpack.c.l.b16 %v2046
    %v2800 = vunpack.c.h.b16 %v2046
    %v2801 = vunpack.c.l.b16 %v2047
    %v2802 = vunpack.c.h.b16 %v2047
    %v2803 = vunpack.c.l.b16 %v2048
    %v2804 = vunpack.c.h.b16 %v2048
    %v2805 = vunpack.c.l.b16 %v2049
    %v2806 = vunpack.c.h.b16 %v2049
    %v2807 = vunpack.c.l.b16 %v2050
    %v2808 = vunpack.c.h.b16 %v2050
    %v2809 = vunpack.c.l.b16 %v2051
    %v2810 = vunpack.c.h.b16 %v2051
    %v2811 = vunpack.c.l.b16 %v2052
    %v2812 = vunpack.c.h.b16 %v2052
    %v2813 = vunpack.c.l.b16 %v2053
    %v2814 = vunpack.c.h.b16 %v2053
    %v2815 = vunpack.c.l.b16 %v2054
    %v2816 = vunpack.c.h.b16 %v2054
    %v2817 = vunpack.c.l.b16 %v2055
    %v2818 = vunpack.c.h.b16 %v2055
    %v2819 = vunpack.c.l.b16 %v2056
    %v2820 = vunpack.c.h.b16 %v2056
    %v2821 = vunpack.c.l.b16 %v2057
    %v2822 = vunpack.c.h.b16 %v2057
    %v2823 = vunpack.c.l.b16 %v2058
    %v2824 = vunpack.c.h.b16 %v2058
    %v2825 = vunpack.c.l.b16 %v2059
    %v2826 = vunpack.c.h.b16 %v2059
    %v2827 = vunpack.c.l.b16 %v2060
    %v2828 = vunpack.c.h.b16 %v2060
    %v2829 = vunpack.c.l.b16 %v2061
    %v2830 = vunpack.c.h.b16 %v2061
    %v2831 = vunpack.c.l.b16 %v2062
    %v2832 = vunpack.c.h.b16 %v2062
    %v2833 = vunpack.c.l.b16 %v2063
    %v2834 = vunpack.c.h.b16 %v2063
    %v2835 = vunpack.c.l.b16 %v2064
    %v2836 = vunpack.c.h.b16 %v2064
    %v2837 = vunpack.c.l.b16 %v2065
    %v2838 = vunpack.c.h.b16 %v2065
    %v2839 = vunpack.c.l.b16 %v2066
    %v2840 = vunpack.c.h.b16 %v2066
    %v2841 = vunpack.c.l.b16 %v2067
    %v2842 = vunpack.c.h.b16 %v2067
    %v2843 = vunpack.c.l.b16 %v2068
    %v2844 = vunpack.c.h.b16 %v2068
    %v2845 = vunpack.c.l.b16 %v2069
    %v2846 = vunpack.c.h.b16 %v2069
    %v2847 = vunpack.c.l.b16 %v2070
    %v2848 = vunpack.c.h.b16 %v2070
    %v2849 = vunpack.c.l.b16 %v2071
    %v2850 = vunpack.c.h.b16 %v2071
    %v2851 = vunpack.c.l.b16 %v2072
    %v2852 = vunpack.c.h.b16 %v2072
    %v2853 = vunpack.c.l.b16 %v2073
    %v2854 = vunpack.c.h.b16 %v2073
    %v2855 = vunpack.c.l.b16 %v2074
    %v2856 = vunpack.c.h.b16 %v2074
    %v2857 = vunpack.c.l.b16 %v2075
    %v2858 = vunpack.c.h.b16 %v2075
    %v2859 = vunpack.c.l.b16 %v2076
    %v2860 = vunpack.c.h.b16 %v2076
    %v2861 = vunpack.c.l.b16 %v2077
    %v2862 = vunpack.c.h.b16 %v2077
    %v2863 = vunpack.c.l.b16 %v2078
    %v2864 = vunpack.c.h.b16 %v2078
    %v2865 = vpack.c.b16 %v2361, %v2353
    %v2866 = vpack.c.b16 %v2362, %v2354
    %v2867 = vpack.c.b16 %v2363, %v2355
    %v2868 = vpack.c.b16 %v2364, %v2356
    %v2869 = vpack.c.b16 %v2365, %v2357
    %v2870 = vpack.c.b16 %v2366, %v2358
    %v2871 = vpack.c.b16 %v2367, %v2359
    %v2872 = vpack.c.b16 %v2368, %v2360
    %v2873 = vpack.c.b16 %v2377, %v2369
    %v2874 = vpack.c.b16 %v2378, %v2370
    %v2875 = vpack.c.b16 %v2379, %v2371
    %v2876 = vpack.c.b16 %v2380, %v2372
    %v2877 = vpack.c.b16 %v2381, %v2373
    %v2878 = vpack.c.b16 %v2382, %v2374
    %v2879 = vpack.c.b16 %v2383, %v2375
    %v2880 = vpack.c.b16 %v2384, %v2376
    %v2881 = vpack.c.b16 %v2393, %v2385
    %v2882 = vpack.c.b16 %v2394, %v2386
    %v2883 = vpack.c.b16 %v2395, %v2387
    %v2884 = vpack.c.b16 %v2396, %v2388
    %v2885 = vpack.c.b16 %v2397, %v2389
    %v2886 = vpack.c.b16 %v2398, %v2390
    %v2887 = vpack.c.b16 %v2399, %v2391
    %v2888 = vpack.c.b16 %v2400, %v2392
    %v2889 = vpack.c.b16 %v2409, %v2401
    %v2890 = vpack.c.b16 %v2410, %v2402
    %v2891 = vpack.c.b16 %v2411, %v2403
    %v2892 = vpack.c.b16 %v2412, %v2404
    %v2893 = vpack.c.b16 %v2413, %v2405
    %v2894 = vpack.c.b16 %v2414, %v2406
    %v2895 = vpack.c.b16 %v2415, %v2407
    %v2896 = vpack.c.b16 %v2416, %v2408
    %v2897 = vpack.c.b16 %v2425, %v2417
    %v2898 = vpack.c.b16 %v2426, %v2418
    %v2899 = vpack.c.b16 %v2427, %v2419
    %v2900 = vpack.c.b16 %v2428, %v2420
    %v2901 = vpack.c.b16 %v2429, %v2421
    %v2902 = vpack.c.b16 %v2430, %v2422
    %v2903 = vpack.c.b16 %v2431, %v2423
    %v2904 = vpack.c.b16 %v2432, %v2424
    %v2905 = vpack.c.b16 %v2441, %v2433
    %v2906 = vpack.c.b16 %v2442, %v2434
    %v2907 = vpack.c.b16 %v2443, %v2435
    %v2908 = vpack.c.b16 %v2444, %v2436
    %v2909 = vpack.c.b16 %v2445, %v2437
    %v2910 = vpack.c.b16 %v2446, %v2438
    %v2911 = vpack.c.b16 %v2447, %v2439
    %v2912 = vpack.c.b16 %v2448, %v2440
    %v2913 = vpack.c.b16 %v2457, %v2449
    %v2914 = vpack.c.b16 %v2458, %v2450
    %v2915 = vpack.c.b16 %v2459, %v2451
    %v2916 = vpack.c.b16 %v2460, %v2452
    %v2917 = vpack.c.b16 %v2461, %v2453
    %v2918 = vpack.c.b16 %v2462, %v2454
    %v2919 = vpack.c.b16 %v2463, %v2455
    %v2920 = vpack.c.b16 %v2464, %v2456
    %v2921 = vpack.c.b16 %v2473, %v2465
    %v2922 = vpack.c.b16 %v2474, %v2466
    %v2923 = vpack.c.b16 %v2475, %v2467
    %v2924 = vpack.c.b16 %v2476, %v2468
    %v2925 = vpack.c.b16 %v2477, %v2469
    %v2926 = vpack.c.b16 %v2478, %v2470
    %v2927 = vpack.c.b16 %v2479, %v2471
    %v2928 = vpack.c.b16 %v2480, %v2472
    %v2929 = vpack.c.b16 %v2489, %v2481
    %v2930 = vpack.c.b16 %v2490, %v2482
    %v2931 = vpack.c.b16 %v2491, %v2483
    %v2932 = vpack.c.b16 %v2492, %v2484
    %v2933 = vpack.c.b16 %v2493, %v2485
    %v2934 = vpack.c.b16 %v2494, %v2486
    %v2935 = vpack.c.b16 %v2495, %v2487
    %v2936 = vpack.c.b16 %v2496, %v2488
    %v2937 = vpack.c.b16 %v2505, %v2497
    %v2938 = vpack.c.b16 %v2506, %v2498
    %v2939 = vpack.c.b16 %v2507, %v2499
    %v2940 = vpack.c.b16 %v2508, %v2500
    %v2941 = vpack.c.b16 %v2509, %v2501
    %v2942 = vpack.c.b16 %v2510, %v2502
    %v2943 = vpack.c.b16 %v2511, %v2503
    %v2944 = vpack.c.b16 %v2512, %v2504
    %v2945 = vpack.c.b16 %v2521, %v2513
    %v2946 = vpack.c.b16 %v2522, %v2514
    %v2947 = vpack.c.b16 %v2523, %v2515
    %v2948 = vpack.c.b16 %v2524, %v2516
    %v2949 = vpack.c.b16 %v2525, %v2517
    %v2950 = vpack.c.b16 %v2526, %v2518
    %v2951 = vpack.c.b16 %v2527, %v2519
    %v2952 = vpack.c.b16 %v2528, %v2520
    %v2953 = vpack.c.b16 %v2537, %v2529
    %v2954 = vpack.c.b16 %v2538, %v2530
    %v2955 = vpack.c.b16 %v2539, %v2531
    %v2956 = vpack.c.b16 %v2540, %v2532
    %v2957 = vpack.c.b16 %v2541, %v2533
    %v2958 = vpack.c.b16 %v2542, %v2534
    %v2959 = vpack.c.b16 %v2543, %v2535
    %v2960 = vpack.c.b16 %v2544, %v2536
    %v2961 = vpack.c.b16 %v2553, %v2545
    %v2962 = vpack.c.b16 %v2554, %v2546
    %v2963 = vpack.c.b16 %v2555, %v2547
    %v2964 = vpack.c.b16 %v2556, %v2548
    %v2965 = vpack.c.b16 %v2557, %v2549
    %v2966 = vpack.c.b16 %v2558, %v2550
    %v2967 = vpack.c.b16 %v2559, %v2551
    %v2968 = vpack.c.b16 %v2560, %v2552
    %v2969 = vpack.c.b16 %v2569, %v2561
    %v2970 = vpack.c.b16 %v2570, %v2562
    %v2971 = vpack.c.b16 %v2571, %v2563
    %v2972 = vpack.c.b16 %v2572, %v2564
    %v2973 = vpack.c.b16 %v2573, %v2565
    %v2974 = vpack.c.b16 %v2574, %v2566
    %v2975 = vpack.c.b16 %v2575, %v2567
    %v2976 = vpack.c.b16 %v2576, %v2568
    %v2977 = vpack.c.b16 %v2585, %v2577
    %v2978 = vpack.c.b16 %v2586, %v2578
    %v2979 = vpack.c.b16 %v2587, %v2579
    %v2980 = vpack.c.b16 %v2588, %v2580
    %v2981 = vpack.c.b16 %v2589, %v2581
    %v2982 = vpack.c.b16 %v2590, %v2582
    %v2983 = vpack.c.b16 %v2591, %v2583
    %v2984 = vpack.c.b16 %v2592, %v2584
    %v2985 = vpack.c.b16 %v2601, %v2593
    %v2986 = vpack.c.b16 %v2602, %v2594
    %v2987 = vpack.c.b16 %v2603, %v2595
    %v2988 = vpack.c.b16 %v2604, %v2596
    %v2989 = vpack.c.b16 %v2605, %v2597
    %v2990 = vpack.c.b16 %v2606, %v2598
    %v2991 = vpack.c.b16 %v2607, %v2599
    %v2992 = vpack.c.b16 %v2608, %v2600
    %v2993 = vpack.c.b16 %v2617, %v2609
    %v2994 = vpack.c.b16 %v2618, %v2610
    %v2995 = vpack.c.b16 %v2619, %v2611
    %v2996 = vpack.c.b16 %v2620, %v2612
    %v2997 = vpack.c.b16 %v2621, %v2613
    %v2998 = vpack.c.b16 %v2622, %v2614
    %v2999 = vpack.c.b16 %v2623, %v2615
    %v3000 = vpack.c.b16 %v2624, %v2616
    %v3001 = vpack.c.b16 %v2633, %v2625
    %v3002 = vpack.c.b16 %v2634, %v2626
    %v3003 = vpack.c.b16 %v2635, %v2627
    %v3004 = vpack.c.b16 %v2636, %v2628
    %v3005 = vpack.c.b16 %v2637, %v2629
    %v3006 = vpack.c.b16 %v2638, %v2630
    %v3007 = vpack.c.b16 %v2639, %v2631
    %v3008 = vpack.c.b16 %v2640, %v2632
    %v3009 = vpack.c.b16 %v2649, %v2641
    %v3010 = vpack.c.b16 %v2650, %v2642
    %v3011 = vpack.c.b16 %v2651, %v2643
    %v3012 = vpack.c.b16 %v2652, %v2644
    %v3013 = vpack.c.b16 %v2653, %v2645
    %v3014 = vpack.c.b16 %v2654, %v2646
    %v3015 = vpack.c.b16 %v2655, %v2647
    %v3016 = vpack.c.b16 %v2656, %v2648
    %v3017 = vpack.c.b16 %v2665, %v2657
    %v3018 = vpack.c.b16 %v2666, %v2658
    %v3019 = vpack.c.b16 %v2667, %v2659
    %v3020 = vpack.c.b16 %v2668, %v2660
    %v3021 = vpack.c.b16 %v2669, %v2661
    %v3022 = vpack.c.b16 %v2670, %v2662
    %v3023 = vpack.c.b16 %v2671, %v2663
    %v3024 = vpack.c.b16 %v2672, %v2664
    %v3025 = vpack.c.b16 %v2681, %v2673
    %v3026 = vpack.c.b16 %v2682, %v2674
    %v3027 = vpack.c.b16 %v2683, %v2675
    %v3028 = vpack.c.b16 %v2684, %v2676
    %v3029 = vpack.c.b16 %v2685, %v2677
    %v3030 = vpack.c.b16 %v2686, %v2678
    %v3031 = vpack.c.b16 %v2687, %v2679
    %v3032 = vpack.c.b16 %v2688, %v2680
    %v3033 = vpack.c.b16 %v2697, %v2689
    %v3034 = vpack.c.b16 %v2698, %v2690
    %v3035 = vpack.c.b16 %v2699, %v2691
    %v3036 = vpack.c.b16 %v2700, %v2692
    %v3037 = vpack.c.b16 %v2701, %v2693
    %v3038 = vpack.c.b16 %v2702, %v2694
    %v3039 = vpack.c.b16 %v2703, %v2695
    %v3040 = vpack.c.b16 %v2704, %v2696
    %v3041 = vpack.c.b16 %v2713, %v2705
    %v3042 = vpack.c.b16 %v2714, %v2706
    %v3043 = vpack.c.b16 %v2715, %v2707
    %v3044 = vpack.c.b16 %v2716, %v2708
    %v3045 = vpack.c.b16 %v2717, %v2709
    %v3046 = vpack.c.b16 %v2718, %v2710
    %v3047 = vpack.c.b16 %v2719, %v2711
    %v3048 = vpack.c.b16 %v2720, %v2712
    %v3049 = vpack.c.b16 %v2729, %v2721
    %v3050 = vpack.c.b16 %v2730, %v2722
    %v3051 = vpack.c.b16 %v2731, %v2723
    %v3052 = vpack.c.b16 %v2732, %v2724
    %v3053 = vpack.c.b16 %v2733, %v2725
    %v3054 = vpack.c.b16 %v2734, %v2726
    %v3055 = vpack.c.b16 %v2735, %v2727
    %v3056 = vpack.c.b16 %v2736, %v2728
    %v3057 = vpack.c.b16 %v2745, %v2737
    %v3058 = vpack.c.b16 %v2746, %v2738
    %v3059 = vpack.c.b16 %v2747, %v2739
    %v3060 = vpack.c.b16 %v2748, %v2740
    %v3061 = vpack.c.b16 %v2749, %v2741
    %v3062 = vpack.c.b16 %v2750, %v2742
    %v3063 = vpack.c.b16 %v2751, %v2743
    %v3064 = vpack.c.b16 %v2752, %v2744
    %v3065 = vpack.c.b16 %v2761, %v2753
    %v3066 = vpack.c.b16 %v2762, %v2754
    %v3067 = vpack.c.b16 %v2763, %v2755
    %v3068 = vpack.c.b16 %v2764, %v2756
    %v3069 = vpack.c.b16 %v2765, %v2757
    %v3070 = vpack.c.b16 %v2766, %v2758
    %v3071 = vpack.c.b16 %v2767, %v2759
    %v3072 = vpack.c.b16 %v2768, %v2760
    %v3073 = vpack.c.b16 %v2777, %v2769
    %v3074 = vpack.c.b16 %v2778, %v2770
    %v3075 = vpack.c.b16 %v2779, %v2771
    %v3076 = vpack.c.b16 %v2780, %v2772
    %v3077 = vpack.c.b16 %v2781, %v2773
    %v3078 = vpack.c.b16 %v2782, %v2774
    %v3079 = vpack.c.b16 %v2783, %v2775
    %v3080 = vpack.c.b16 %v2784, %v2776
    %v3081 = vpack.c.b16 %v2793, %v2785
    %v3082 = vpack.c.b16 %v2794, %v2786
    %v3083 = vpack.c.b16 %v2795, %v2787
    %v3084 = vpack.c.b16 %v2796, %v2788
    %v3085 = vpack.c.b16 %v2797, %v2789
    %v3086 = vpack.c.b16 %v2798, %v2790
    %v3087 = vpack.c.b16 %v2799, %v2791
    %v3088 = vpack.c.b16 %v2800, %v2792
    %v3089 = vpack.c.b16 %v2809, %v2801
    %v3090 = vpack.c.b16 %v2810, %v2802
    %v3091 = vpack.c.b16 %v2811, %v2803
    %v3092 = vpack.c.b16 %v2812, %v2804
    %v3093 = vpack.c.b16 %v2813, %v2805
    %v3094 = vpack.c.b16 %v2814, %v2806
    %v3095 = vpack.c.b16 %v2815, %v2807
    %v3096 = vpack.c.b16 %v2816, %v2808
    %v3097 = vpack.c.b16 %v2825, %v2817
    %v3098 = vpack.c.b16 %v2826, %v2818
    %v3099 = vpack.c.b16 %v2827, %v2819
    %v3100 = vpack.c.b16 %v2828, %v2820
    %v3101 = vpack.c.b16 %v2829, %v2821
    %v3102 = vpack.c.b16 %v2830, %v2822
    %v3103 = vpack.c.b16 %v2831, %v2823
    %v3104 = vpack.c.b16 %v2832, %v2824
    %v3105 = vpack.c.b16 %v2841, %v2833
    %v3106 = vpack.c.b16 %v2842, %v2834
    %v3107 = vpack.c.b16 %v2843, %v2835
    %v3108 = vpack.c.b16 %v2844, %v2836
    %v3109 = vpack.c.b16 %v2845, %v2837
    %v3110 = vpack.c.b16 %v2846, %v2838
    %v3111 = vpack.c.b16 %v2847, %v2839
    %v3112 = vpack.c.b16 %v2848, %v2840
    %v3113 = vpack.c.b16 %v2857, %v2849
    %v3114 = vpack.c.b16 %v2858, %v2850
    %v3115 = vpack.c.b16 %v2859, %v2851
    %v3116 = vpack.c.b16 %v2860, %v2852
    %v3117 = vpack.c.b16 %v2861, %v2853
    %v3118 = vpack.c.b16 %v2862, %v2854
    %v3119 = vpack.c.b16 %v2863, %v2855
    %v3120 = vpack.c.b16 %v2864, %v2856
    %3377 = vmatpush.bf16.msra.mxu0 %v2921
    %3378 = vmatpush.bf16.msra.mxu0 %v2913
    %3379 = vmatpush.bf16.msra.mxu0 %v2905
    %3380 = vmatpush.bf16.msra.mxu0 %v2897
    %3381 = vmatpush.bf16.msra.mxu0 %v2889
    %3382 = vmatpush.bf16.msra.mxu0 %v2881
    %3383 = vmatpush.bf16.msra.mxu0 %v2873
    %3384 = vmatpush.bf16.msra.mxu0 %v2865
    %3385 = vmatmul.bf16.gmra.mxu0 %v1819
    %v3386 = vpop.f32.mrf.mxu0
    %v3387 = vadd.f32 %v2081, %v3386
    %v3388 = vpop.f32.mrf.mxu0
    %3389 = vdwg.mxu0
    %3390 = vmatpush.bf16.msra.mxu0 %v2985
    %3391 = vmatpush.bf16.msra.mxu0 %v2977
    %3392 = vmatpush.bf16.msra.mxu0 %v2969
    %3393 = vmatpush.bf16.msra.mxu0 %v2961
    %3394 = vmatpush.bf16.msra.mxu0 %v2953
    %3395 = vmatpush.bf16.msra.mxu0 %v2945
    %3396 = vmatpush.bf16.msra.mxu0 %v2937
    %3397 = vmatpush.bf16.msra.mxu0 %v2929
    %3398 = vmatmul.bf16.gmra.mxu0 %v1820
    %v3399 = vpop.f32.mrf.mxu0
    %v3400 = vadd.f32 %v3387, %v3399
    %v3401 = vpop.f32.mrf.mxu0
    %3402 = vdwg.mxu0
    %3403 = vmatpush.bf16.msra.mxu0 %v3049
    %3404 = vmatpush.bf16.msra.mxu0 %v3041
    %3405 = vmatpush.bf16.msra.mxu0 %v3033
    %3406 = vmatpush.bf16.msra.mxu0 %v3025
    %3407 = vmatpush.bf16.msra.mxu0 %v3017
    %3408 = vmatpush.bf16.msra.mxu0 %v3009
    %3409 = vmatpush.bf16.msra.mxu0 %v3001
    %3410 = vmatpush.bf16.msra.mxu0 %v2993
    %3411 = vmatmul.bf16.gmra.mxu0 %v1821
    %v3412 = vpop.f32.mrf.mxu0
    %v3413 = vadd.f32 %v3400, %v3412
    %v3414 = vpop.f32.mrf.mxu0
    %3415 = vdwg.mxu0
    %3416 = vmatpush.bf16.msra.mxu0 %v3113
    %3417 = vmatpush.bf16.msra.mxu0 %v3105
    %3418 = vmatpush.bf16.msra.mxu0 %v3097
    %3419 = vmatpush.bf16.msra.mxu0 %v3089
    %3420 = vmatpush.bf16.msra.mxu0 %v3081
    %3421 = vmatpush.bf16.msra.mxu0 %v3073
    %3422 = vmatpush.bf16.msra.mxu0 %v3065
    %3423 = vmatpush.bf16.msra.mxu0 %v3057
    %3424 = vmatmul.bf16.gmra.mxu0 %v1822
    %v3425 = vpop.f32.mrf.mxu0
    %v3426 = vadd.f32 %v3413, %v3425
    %v3427 = vpop.f32.mrf.mxu0
    %3428 = vdwg.mxu0
    %3429 = vmatpush.bf16.msra.mxu0 %v2922
    %3430 = vmatpush.bf16.msra.mxu0 %v2914
    %3431 = vmatpush.bf16.msra.mxu0 %v2906
    %3432 = vmatpush.bf16.msra.mxu0 %v2898
    %3433 = vmatpush.bf16.msra.mxu0 %v2890
    %3434 = vmatpush.bf16.msra.mxu0 %v2882
    %3435 = vmatpush.bf16.msra.mxu0 %v2874
    %3436 = vmatpush.bf16.msra.mxu0 %v2866
    %3437 = vmatmul.bf16.gmra.mxu0 %v1819
    %v3438 = vpop.f32.mrf.mxu0
    %v3439 = vadd.f32 %v2082, %v3438
    %v3440 = vpop.f32.mrf.mxu0
    %3441 = vdwg.mxu0
    %3442 = vmatpush.bf16.msra.mxu0 %v2986
    %3443 = vmatpush.bf16.msra.mxu0 %v2978
    %3444 = vmatpush.bf16.msra.mxu0 %v2970
    %3445 = vmatpush.bf16.msra.mxu0 %v2962
    %3446 = vmatpush.bf16.msra.mxu0 %v2954
    %3447 = vmatpush.bf16.msra.mxu0 %v2946
    %3448 = vmatpush.bf16.msra.mxu0 %v2938
    %3449 = vmatpush.bf16.msra.mxu0 %v2930
    %3450 = vmatmul.bf16.gmra.mxu0 %v1820
    %v3451 = vpop.f32.mrf.mxu0
    %v3452 = vadd.f32 %v3439, %v3451
    %v3453 = vpop.f32.mrf.mxu0
    %3454 = vdwg.mxu0
    %3455 = vmatpush.bf16.msra.mxu0 %v3050
    %3456 = vmatpush.bf16.msra.mxu0 %v3042
    %3457 = vmatpush.bf16.msra.mxu0 %v3034
    %3458 = vmatpush.bf16.msra.mxu0 %v3026
    %3459 = vmatpush.bf16.msra.mxu0 %v3018
    %3460 = vmatpush.bf16.msra.mxu0 %v3010
    %3461 = vmatpush.bf16.msra.mxu0 %v3002
    %3462 = vmatpush.bf16.msra.mxu0 %v2994
    %3463 = vmatmul.bf16.gmra.mxu0 %v1821
    %v3464 = vpop.f32.mrf.mxu0
    %v3465 = vadd.f32 %v3452, %v3464
    %v3466 = vpop.f32.mrf.mxu0
    %3467 = vdwg.mxu0
    %3468 = vmatpush.bf16.msra.mxu0 %v3114
    %3469 = vmatpush.bf16.msra.mxu0 %v3106
    %3470 = vmatpush.bf16.msra.mxu0 %v3098
    %3471 = vmatpush.bf16.msra.mxu0 %v3090
    %3472 = vmatpush.bf16.msra.mxu0 %v3082
    %3473 = vmatpush.bf16.msra.mxu0 %v3074
    %3474 = vmatpush.bf16.msra.mxu0 %v3066
    %3475 = vmatpush.bf16.msra.mxu0 %v3058
    %3476 = vmatmul.bf16.gmra.mxu0 %v1822
    %v3477 = vpop.f32.mrf.mxu0
    %v3478 = vadd.f32 %v3465, %v3477
    %v3479 = vpop.f32.mrf.mxu0
    %3480 = vdwg.mxu0
    %3481 = vmatpush.bf16.msra.mxu0 %v2923
    %3482 = vmatpush.bf16.msra.mxu0 %v2915
    %3483 = vmatpush.bf16.msra.mxu0 %v2907
    %3484 = vmatpush.bf16.msra.mxu0 %v2899
    %3485 = vmatpush.bf16.msra.mxu0 %v2891
    %3486 = vmatpush.bf16.msra.mxu0 %v2883
    %3487 = vmatpush.bf16.msra.mxu0 %v2875
    %3488 = vmatpush.bf16.msra.mxu0 %v2867
    %3489 = vmatmul.bf16.gmra.mxu0 %v1819
    %v3490 = vpop.f32.mrf.mxu0
    %v3491 = vadd.f32 %v2083, %v3490
    %v3492 = vpop.f32.mrf.mxu0
    %3493 = vdwg.mxu0
    %3494 = vmatpush.bf16.msra.mxu0 %v2987
    %3495 = vmatpush.bf16.msra.mxu0 %v2979
    %3496 = vmatpush.bf16.msra.mxu0 %v2971
    %3497 = vmatpush.bf16.msra.mxu0 %v2963
    %3498 = vmatpush.bf16.msra.mxu0 %v2955
    %3499 = vmatpush.bf16.msra.mxu0 %v2947
    %3500 = vmatpush.bf16.msra.mxu0 %v2939
    %3501 = vmatpush.bf16.msra.mxu0 %v2931
    %3502 = vmatmul.bf16.gmra.mxu0 %v1820
    %v3503 = vpop.f32.mrf.mxu0
    %v3504 = vadd.f32 %v3491, %v3503
    %v3505 = vpop.f32.mrf.mxu0
    %3506 = vdwg.mxu0
    %3507 = vmatpush.bf16.msra.mxu0 %v3051
    %3508 = vmatpush.bf16.msra.mxu0 %v3043
    %3509 = vmatpush.bf16.msra.mxu0 %v3035
    %3510 = vmatpush.bf16.msra.mxu0 %v3027
    %3511 = vmatpush.bf16.msra.mxu0 %v3019
    %3512 = vmatpush.bf16.msra.mxu0 %v3011
    %3513 = vmatpush.bf16.msra.mxu0 %v3003
    %3514 = vmatpush.bf16.msra.mxu0 %v2995
    %3515 = vmatmul.bf16.gmra.mxu0 %v1821
    %v3516 = vpop.f32.mrf.mxu0
    %v3517 = vadd.f32 %v3504, %v3516
    %v3518 = vpop.f32.mrf.mxu0
    %3519 = vdwg.mxu0
    %3520 = vmatpush.bf16.msra.mxu0 %v3115
    %3521 = vmatpush.bf16.msra.mxu0 %v3107
    %3522 = vmatpush.bf16.msra.mxu0 %v3099
    %3523 = vmatpush.bf16.msra.mxu0 %v3091
    %3524 = vmatpush.bf16.msra.mxu0 %v3083
    %3525 = vmatpush.bf16.msra.mxu0 %v3075
    %3526 = vmatpush.bf16.msra.mxu0 %v3067
    %3527 = vmatpush.bf16.msra.mxu0 %v3059
    %3528 = vmatmul.bf16.gmra.mxu0 %v1822
    %v3529 = vpop.f32.mrf.mxu0
    %v3530 = vadd.f32 %v3517, %v3529
    %v3531 = vpop.f32.mrf.mxu0
    %3532 = vdwg.mxu0
    %3533 = vmatpush.bf16.msra.mxu0 %v2924
    %3534 = vmatpush.bf16.msra.mxu0 %v2916
    %3535 = vmatpush.bf16.msra.mxu0 %v2908
    %3536 = vmatpush.bf16.msra.mxu0 %v2900
    %3537 = vmatpush.bf16.msra.mxu0 %v2892
    %3538 = vmatpush.bf16.msra.mxu0 %v2884
    %3539 = vmatpush.bf16.msra.mxu0 %v2876
    %3540 = vmatpush.bf16.msra.mxu0 %v2868
    %3541 = vmatmul.bf16.gmra.mxu0 %v1819
    %v3542 = vpop.f32.mrf.mxu0
    %v3543 = vadd.f32 %v2084, %v3542
    %v3544 = vpop.f32.mrf.mxu0
    %3545 = vdwg.mxu0
    %3546 = vmatpush.bf16.msra.mxu0 %v2988
    %3547 = vmatpush.bf16.msra.mxu0 %v2980
    %3548 = vmatpush.bf16.msra.mxu0 %v2972
    %3549 = vmatpush.bf16.msra.mxu0 %v2964
    %3550 = vmatpush.bf16.msra.mxu0 %v2956
    %3551 = vmatpush.bf16.msra.mxu0 %v2948
    %3552 = vmatpush.bf16.msra.mxu0 %v2940
    %3553 = vmatpush.bf16.msra.mxu0 %v2932
    %3554 = vmatmul.bf16.gmra.mxu0 %v1820
    %v3555 = vpop.f32.mrf.mxu0
    %v3556 = vadd.f32 %v3543, %v3555
    %v3557 = vpop.f32.mrf.mxu0
    %3558 = vdwg.mxu0
    %3559 = vmatpush.bf16.msra.mxu0 %v3052
    %3560 = vmatpush.bf16.msra.mxu0 %v3044
    %3561 = vmatpush.bf16.msra.mxu0 %v3036
    %3562 = vmatpush.bf16.msra.mxu0 %v3028
    %3563 = vmatpush.bf16.msra.mxu0 %v3020
    %3564 = vmatpush.bf16.msra.mxu0 %v3012
    %3565 = vmatpush.bf16.msra.mxu0 %v3004
    %3566 = vmatpush.bf16.msra.mxu0 %v2996
    %3567 = vmatmul.bf16.gmra.mxu0 %v1821
    %v3568 = vpop.f32.mrf.mxu0
    %v3569 = vadd.f32 %v3556, %v3568
    %v3570 = vpop.f32.mrf.mxu0
    %3571 = vdwg.mxu0
    %3572 = vmatpush.bf16.msra.mxu0 %v3116
    %3573 = vmatpush.bf16.msra.mxu0 %v3108
    %3574 = vmatpush.bf16.msra.mxu0 %v3100
    %3575 = vmatpush.bf16.msra.mxu0 %v3092
    %3576 = vmatpush.bf16.msra.mxu0 %v3084
    %3577 = vmatpush.bf16.msra.mxu0 %v3076
    %3578 = vmatpush.bf16.msra.mxu0 %v3068
    %3579 = vmatpush.bf16.msra.mxu0 %v3060
    %3580 = vmatmul.bf16.gmra.mxu0 %v1822
    %v3581 = vpop.f32.mrf.mxu0
    %v3582 = vadd.f32 %v3569, %v3581
    %v3583 = vpop.f32.mrf.mxu0
    %3584 = vdwg.mxu0
    %3585 = vmatpush.bf16.msra.mxu0 %v2925
    %3586 = vmatpush.bf16.msra.mxu0 %v2917
    %3587 = vmatpush.bf16.msra.mxu0 %v2909
    %3588 = vmatpush.bf16.msra.mxu0 %v2901
    %3589 = vmatpush.bf16.msra.mxu0 %v2893
    %3590 = vmatpush.bf16.msra.mxu0 %v2885
    %3591 = vmatpush.bf16.msra.mxu0 %v2877
    %3592 = vmatpush.bf16.msra.mxu0 %v2869
    %3593 = vmatmul.bf16.gmra.mxu0 %v1819
    %v3594 = vpop.f32.mrf.mxu0
    %v3595 = vadd.f32 %v2085, %v3594
    %v3596 = vpop.f32.mrf.mxu0
    %3597 = vdwg.mxu0
    %3598 = vmatpush.bf16.msra.mxu0 %v2989
    %3599 = vmatpush.bf16.msra.mxu0 %v2981
    %3600 = vmatpush.bf16.msra.mxu0 %v2973
    %3601 = vmatpush.bf16.msra.mxu0 %v2965
    %3602 = vmatpush.bf16.msra.mxu0 %v2957
    %3603 = vmatpush.bf16.msra.mxu0 %v2949
    %3604 = vmatpush.bf16.msra.mxu0 %v2941
    %3605 = vmatpush.bf16.msra.mxu0 %v2933
    %3606 = vmatmul.bf16.gmra.mxu0 %v1820
    %v3607 = vpop.f32.mrf.mxu0
    %v3608 = vadd.f32 %v3595, %v3607
    %v3609 = vpop.f32.mrf.mxu0
    %3610 = vdwg.mxu0
    %3611 = vmatpush.bf16.msra.mxu0 %v3053
    %3612 = vmatpush.bf16.msra.mxu0 %v3045
    %3613 = vmatpush.bf16.msra.mxu0 %v3037
    %3614 = vmatpush.bf16.msra.mxu0 %v3029
    %3615 = vmatpush.bf16.msra.mxu0 %v3021
    %3616 = vmatpush.bf16.msra.mxu0 %v3013
    %3617 = vmatpush.bf16.msra.mxu0 %v3005
    %3618 = vmatpush.bf16.msra.mxu0 %v2997
    %3619 = vmatmul.bf16.gmra.mxu0 %v1821
    %v3620 = vpop.f32.mrf.mxu0
    %v3621 = vadd.f32 %v3608, %v3620
    %v3622 = vpop.f32.mrf.mxu0
    %3623 = vdwg.mxu0
    %3624 = vmatpush.bf16.msra.mxu0 %v3117
    %3625 = vmatpush.bf16.msra.mxu0 %v3109
    %3626 = vmatpush.bf16.msra.mxu0 %v3101
    %3627 = vmatpush.bf16.msra.mxu0 %v3093
    %3628 = vmatpush.bf16.msra.mxu0 %v3085
    %3629 = vmatpush.bf16.msra.mxu0 %v3077
    %3630 = vmatpush.bf16.msra.mxu0 %v3069
    %3631 = vmatpush.bf16.msra.mxu0 %v3061
    %3632 = vmatmul.bf16.gmra.mxu0 %v1822
    %v3633 = vpop.f32.mrf.mxu0
    %v3634 = vadd.f32 %v3621, %v3633
    %v3635 = vpop.f32.mrf.mxu0
    %3636 = vdwg.mxu0
    %3637 = vmatpush.bf16.msra.mxu0 %v2926
    %3638 = vmatpush.bf16.msra.mxu0 %v2918
    %3639 = vmatpush.bf16.msra.mxu0 %v2910
    %3640 = vmatpush.bf16.msra.mxu0 %v2902
    %3641 = vmatpush.bf16.msra.mxu0 %v2894
    %3642 = vmatpush.bf16.msra.mxu0 %v2886
    %3643 = vmatpush.bf16.msra.mxu0 %v2878
    %3644 = vmatpush.bf16.msra.mxu0 %v2870
    %3645 = vmatmul.bf16.gmra.mxu0 %v1819
    %v3646 = vpop.f32.mrf.mxu0
    %v3647 = vadd.f32 %v2086, %v3646
    %v3648 = vpop.f32.mrf.mxu0
    %3649 = vdwg.mxu0
    %3650 = vmatpush.bf16.msra.mxu0 %v2990
    %3651 = vmatpush.bf16.msra.mxu0 %v2982
    %3652 = vmatpush.bf16.msra.mxu0 %v2974
    %3653 = vmatpush.bf16.msra.mxu0 %v2966
    %3654 = vmatpush.bf16.msra.mxu0 %v2958
    %3655 = vmatpush.bf16.msra.mxu0 %v2950
    %3656 = vmatpush.bf16.msra.mxu0 %v2942
    %3657 = vmatpush.bf16.msra.mxu0 %v2934
    %3658 = vmatmul.bf16.gmra.mxu0 %v1820
    %v3659 = vpop.f32.mrf.mxu0
    %v3660 = vadd.f32 %v3647, %v3659
    %v3661 = vpop.f32.mrf.mxu0
    %3662 = vdwg.mxu0
    %3663 = vmatpush.bf16.msra.mxu0 %v3054
    %3664 = vmatpush.bf16.msra.mxu0 %v3046
    %3665 = vmatpush.bf16.msra.mxu0 %v3038
    %3666 = vmatpush.bf16.msra.mxu0 %v3030
    %3667 = vmatpush.bf16.msra.mxu0 %v3022
    %3668 = vmatpush.bf16.msra.mxu0 %v3014
    %3669 = vmatpush.bf16.msra.mxu0 %v3006
    %3670 = vmatpush.bf16.msra.mxu0 %v2998
    %3671 = vmatmul.bf16.gmra.mxu0 %v1821
    %v3672 = vpop.f32.mrf.mxu0
    %v3673 = vadd.f32 %v3660, %v3672
    %v3674 = vpop.f32.mrf.mxu0
    %3675 = vdwg.mxu0
    %3676 = vmatpush.bf16.msra.mxu0 %v3118
    %3677 = vmatpush.bf16.msra.mxu0 %v3110
    %3678 = vmatpush.bf16.msra.mxu0 %v3102
    %3679 = vmatpush.bf16.msra.mxu0 %v3094
    %3680 = vmatpush.bf16.msra.mxu0 %v3086
    %3681 = vmatpush.bf16.msra.mxu0 %v3078
    %3682 = vmatpush.bf16.msra.mxu0 %v3070
    %3683 = vmatpush.bf16.msra.mxu0 %v3062
    %3684 = vmatmul.bf16.gmra.mxu0 %v1822
    %v3685 = vpop.f32.mrf.mxu0
    %v3686 = vadd.f32 %v3673, %v3685
    %v3687 = vpop.f32.mrf.mxu0
    %3688 = vdwg.mxu0
    %3689 = vmatpush.bf16.msra.mxu0 %v2927
    %3690 = vmatpush.bf16.msra.mxu0 %v2919
    %3691 = vmatpush.bf16.msra.mxu0 %v2911
    %3692 = vmatpush.bf16.msra.mxu0 %v2903
    %3693 = vmatpush.bf16.msra.mxu0 %v2895
    %3694 = vmatpush.bf16.msra.mxu0 %v2887
    %3695 = vmatpush.bf16.msra.mxu0 %v2879
    %3696 = vmatpush.bf16.msra.mxu0 %v2871
    %3697 = vmatmul.bf16.gmra.mxu0 %v1819
    %v3698 = vpop.f32.mrf.mxu0
    %v3699 = vadd.f32 %v2087, %v3698
    %v3700 = vpop.f32.mrf.mxu0
    %3701 = vdwg.mxu0
    %3702 = vmatpush.bf16.msra.mxu0 %v2991
    %3703 = vmatpush.bf16.msra.mxu0 %v2983
    %3704 = vmatpush.bf16.msra.mxu0 %v2975
    %3705 = vmatpush.bf16.msra.mxu0 %v2967
    %3706 = vmatpush.bf16.msra.mxu0 %v2959
    %3707 = vmatpush.bf16.msra.mxu0 %v2951
    %3708 = vmatpush.bf16.msra.mxu0 %v2943
    %3709 = vmatpush.bf16.msra.mxu0 %v2935
    %3710 = vmatmul.bf16.gmra.mxu0 %v1820
    %v3711 = vpop.f32.mrf.mxu0
    %v3712 = vadd.f32 %v3699, %v3711
    %v3713 = vpop.f32.mrf.mxu0
    %3714 = vdwg.mxu0
    %3715 = vmatpush.bf16.msra.mxu0 %v3055
    %3716 = vmatpush.bf16.msra.mxu0 %v3047
    %3717 = vmatpush.bf16.msra.mxu0 %v3039
    %3718 = vmatpush.bf16.msra.mxu0 %v3031
    %3719 = vmatpush.bf16.msra.mxu0 %v3023
    %3720 = vmatpush.bf16.msra.mxu0 %v3015
    %3721 = vmatpush.bf16.msra.mxu0 %v3007
    %3722 = vmatpush.bf16.msra.mxu0 %v2999
    %3723 = vmatmul.bf16.gmra.mxu0 %v1821
    %v3724 = vpop.f32.mrf.mxu0
    %v3725 = vadd.f32 %v3712, %v3724
    %v3726 = vpop.f32.mrf.mxu0
    %3727 = vdwg.mxu0
    %3728 = vmatpush.bf16.msra.mxu0 %v3119
    %3729 = vmatpush.bf16.msra.mxu0 %v3111
    %3730 = vmatpush.bf16.msra.mxu0 %v3103
    %3731 = vmatpush.bf16.msra.mxu0 %v3095
    %3732 = vmatpush.bf16.msra.mxu0 %v3087
    %3733 = vmatpush.bf16.msra.mxu0 %v3079
    %3734 = vmatpush.bf16.msra.mxu0 %v3071
    %3735 = vmatpush.bf16.msra.mxu0 %v3063
    %3736 = vmatmul.bf16.gmra.mxu0 %v1822
    %v3737 = vpop.f32.mrf.mxu0
    %v3738 = vadd.f32 %v3725, %v3737
    %v3739 = vpop.f32.mrf.mxu0
    %3740 = vdwg.mxu0
    %3741 = vmatpush.bf16.msra.mxu0 %v2928
    %3742 = vmatpush.bf16.msra.mxu0 %v2920
    %3743 = vmatpush.bf16.msra.mxu0 %v2912
    %3744 = vmatpush.bf16.msra.mxu0 %v2904
    %3745 = vmatpush.bf16.msra.mxu0 %v2896
    %3746 = vmatpush.bf16.msra.mxu0 %v2888
    %3747 = vmatpush.bf16.msra.mxu0 %v2880
    %3748 = vmatpush.bf16.msra.mxu0 %v2872
    %3749 = vmatmul.bf16.gmra.mxu0 %v1819
    %v3750 = vpop.f32.mrf.mxu0
    %v3751 = vadd.f32 %v2088, %v3750
    %v3752 = vpop.f32.mrf.mxu0
    %3753 = vdwg.mxu0
    %3754 = vmatpush.bf16.msra.mxu0 %v2992
    %3755 = vmatpush.bf16.msra.mxu0 %v2984
    %3756 = vmatpush.bf16.msra.mxu0 %v2976
    %3757 = vmatpush.bf16.msra.mxu0 %v2968
    %3758 = vmatpush.bf16.msra.mxu0 %v2960
    %3759 = vmatpush.bf16.msra.mxu0 %v2952
    %3760 = vmatpush.bf16.msra.mxu0 %v2944
    %3761 = vmatpush.bf16.msra.mxu0 %v2936
    %3762 = vmatmul.bf16.gmra.mxu0 %v1820
    %v3763 = vpop.f32.mrf.mxu0
    %v3764 = vadd.f32 %v3751, %v3763
    %v3765 = vpop.f32.mrf.mxu0
    %3766 = vdwg.mxu0
    %3767 = vmatpush.bf16.msra.mxu0 %v3056
    %3768 = vmatpush.bf16.msra.mxu0 %v3048
    %3769 = vmatpush.bf16.msra.mxu0 %v3040
    %3770 = vmatpush.bf16.msra.mxu0 %v3032
    %3771 = vmatpush.bf16.msra.mxu0 %v3024
    %3772 = vmatpush.bf16.msra.mxu0 %v3016
    %3773 = vmatpush.bf16.msra.mxu0 %v3008
    %3774 = vmatpush.bf16.msra.mxu0 %v3000
    %3775 = vmatmul.bf16.gmra.mxu0 %v1821
    %v3776 = vpop.f32.mrf.mxu0
    %v3777 = vadd.f32 %v3764, %v3776
    %v3778 = vpop.f32.mrf.mxu0
    %3779 = vdwg.mxu0
    %3780 = vmatpush.bf16.msra.mxu0 %v3120
    %3781 = vmatpush.bf16.msra.mxu0 %v3112
    %3782 = vmatpush.bf16.msra.mxu0 %v3104
    %3783 = vmatpush.bf16.msra.mxu0 %v3096
    %3784 = vmatpush.bf16.msra.mxu0 %v3088
    %3785 = vmatpush.bf16.msra.mxu0 %v3080
    %3786 = vmatpush.bf16.msra.mxu0 %v3072
    %3787 = vmatpush.bf16.msra.mxu0 %v3064
    %3788 = vmatmul.bf16.gmra.mxu0 %v1822
    %v3789 = vpop.f32.mrf.mxu0
    %v3790 = vadd.f32 %v3777, %v3789
    %v3791 = vpop.f32.mrf.mxu0
    %3792 = vdwg.mxu0
    %v3793 = vsub.f32 0.0, %v3426
    %v3794 = vsub.f32 0.0, %v3478
    %v3795 = vsub.f32 0.0, %v3530
    %v3796 = vsub.f32 0.0, %v3582
    %v3797 = vsub.f32 0.0, %v3634
    %v3798 = vsub.f32 0.0, %v3686
    %v3799 = vsub.f32 0.0, %v3738
    %v3800 = vsub.f32 0.0, %v3790
    %v3801 = vmul.f32 %v3793, 1.442695
    %v3802 = vpow.pop %v3801
    %v3803 = vmul.f32 %v3794, 1.442695
    %v3804 = vpow.pop %v3803
    %v3805 = vmul.f32 %v3795, 1.442695
    %v3806 = vpow.pop %v3805
    %v3807 = vmul.f32 %v3796, 1.442695
    %v3808 = vpow.pop %v3807
    %v3809 = vmul.f32 %v3797, 1.442695
    %v3810 = vpow.pop %v3809
    %v3811 = vmul.f32 %v3798, 1.442695
    %v3812 = vpow.pop %v3811
    %v3813 = vmul.f32 %v3799, 1.442695
    %v3814 = vpow.pop %v3813
    %v3815 = vmul.f32 %v3800, 1.442695
    %v3816 = vpow.pop %v3815
    %v3817 = vadd.f32 %v3802, 1.0
    %v3818 = vadd.f32 %v3804, 1.0
    %v3819 = vadd.f32 %v3806, 1.0
    %v3820 = vadd.f32 %v3808, 1.0
    %v3821 = vadd.f32 %v3810, 1.0
    %v3822 = vadd.f32 %v3812, 1.0
    %v3823 = vadd.f32 %v3814, 1.0
    %v3824 = vadd.f32 %v3816, 1.0
    %v3825 = vrcp.pop %v3817
    %v3826 = vrcp.pop %v3818
    %v3827 = vrcp.pop %v3819
    %v3828 = vrcp.pop %v3820
    %v3829 = vrcp.pop %v3821
    %v3830 = vrcp.pop %v3822
    %v3831 = vrcp.pop %v3823
    %v3832 = vrcp.pop %v3824
    %v3833 = vpack.c.bf16 %v3825, %v3825
    %v3834 = vpack.c.bf16 %v3826, %v3826
    %v3835 = vpack.c.bf16 %v3827, %v3827
    %v3836 = vpack.c.bf16 %v3828, %v3828
    %v3837 = vpack.c.bf16 %v3829, %v3829
    %v3838 = vpack.c.bf16 %v3830, %v3830
    %v3839 = vpack.c.bf16 %v3831, %v3831
    %v3840 = vpack.c.bf16 %v3832, %v3832
    %v3841 = vld [vmem:[%s15] sm:$0xf]
    %v3842 = vld [vmem:[%s15 + $0x4] sm:$0xf]
    %v3843 = vld [vmem:[%s15 + $0x8] sm:$0xf]
    %v3844 = vld [vmem:[%s15 + $0xc] sm:$0xf]
    %v3845 = vld [vmem:[%s15 + $0x10] sm:$0xf]
    %v3846 = vld [vmem:[%s15 + $0x14] sm:$0xf]
    %v3847 = vld [vmem:[%s15 + $0x18] sm:$0xf]
    %v3848 = vld [vmem:[%s15 + $0x1c] sm:$0xf]
    %v3849 = vld [vmem:[%s15 + $0x20] sm:$0xf]
    %v3850 = vld [vmem:[%s15 + $0x24] sm:$0xf]
    %v3851 = vld [vmem:[%s15 + $0x28] sm:$0xf]
    %v3852 = vld [vmem:[%s15 + $0x2c] sm:$0xf]
    %v3853 = vld [vmem:[%s15 + $0x30] sm:$0xf]
    %v3854 = vld [vmem:[%s15 + $0x34] sm:$0xf]
    %v3855 = vld [vmem:[%s15 + $0x38] sm:$0xf]
    %v3856 = vld [vmem:[%s15 + $0x3c] sm:$0xf]
    %v3857 = vld [vmem:[%s15 + $0x40] sm:$0xf]
    %v3858 = vld [vmem:[%s15 + $0x44] sm:$0xf]
    %v3859 = vld [vmem:[%s15 + $0x48] sm:$0xf]
    %v3860 = vld [vmem:[%s15 + $0x4c] sm:$0xf]
    %v3861 = vld [vmem:[%s15 + $0x50] sm:$0xf]
    %v3862 = vld [vmem:[%s15 + $0x54] sm:$0xf]
    %v3863 = vld [vmem:[%s15 + $0x58] sm:$0xf]
    %v3864 = vld [vmem:[%s15 + $0x5c] sm:$0xf]
    %v3865 = vld [vmem:[%s15 + $0x60] sm:$0xf]
    %v3866 = vld [vmem:[%s15 + $0x64] sm:$0xf]
    %v3867 = vld [vmem:[%s15 + $0x68] sm:$0xf]
    %v3868 = vld [vmem:[%s15 + $0x6c] sm:$0xf]
    %v3869 = vld [vmem:[%s15 + $0x70] sm:$0xf]
    %v3870 = vld [vmem:[%s15 + $0x74] sm:$0xf]
    %v3871 = vld [vmem:[%s15 + $0x78] sm:$0xf]
    %v3872 = vld [vmem:[%s15 + $0x7c] sm:$0xf]
    %v3873 = vld [vmem:[%s15 + $0x80] sm:$0xf]
    %v3874 = vld [vmem:[%s15 + $0x84] sm:$0xf]
    %v3875 = vld [vmem:[%s15 + $0x88] sm:$0xf]
    %v3876 = vld [vmem:[%s15 + $0x8c] sm:$0xf]
    %v3877 = vld [vmem:[%s15 + $0x90] sm:$0xf]
    %v3878 = vld [vmem:[%s15 + $0x94] sm:$0xf]
    %v3879 = vld [vmem:[%s15 + $0x98] sm:$0xf]
    %v3880 = vld [vmem:[%s15 + $0x9c] sm:$0xf]
    %v3881 = vld [vmem:[%s15 + $0xa0] sm:$0xf]
    %v3882 = vld [vmem:[%s15 + $0xa4] sm:$0xf]
    %v3883 = vld [vmem:[%s15 + $0xa8] sm:$0xf]
    %v3884 = vld [vmem:[%s15 + $0xac] sm:$0xf]
    %v3885 = vld [vmem:[%s15 + $0xb0] sm:$0xf]
    %v3886 = vld [vmem:[%s15 + $0xb4] sm:$0xf]
    %v3887 = vld [vmem:[%s15 + $0xb8] sm:$0xf]
    %v3888 = vld [vmem:[%s15 + $0xbc] sm:$0xf]
    %v3889 = vld [vmem:[%s15 + $0xc0] sm:$0xf]
    %v3890 = vld [vmem:[%s15 + $0xc4] sm:$0xf]
    %v3891 = vld [vmem:[%s15 + $0xc8] sm:$0xf]
    %v3892 = vld [vmem:[%s15 + $0xcc] sm:$0xf]
    %v3893 = vld [vmem:[%s15 + $0xd0] sm:$0xf]
    %v3894 = vld [vmem:[%s15 + $0xd4] sm:$0xf]
    %v3895 = vld [vmem:[%s15 + $0xd8] sm:$0xf]
    %v3896 = vld [vmem:[%s15 + $0xdc] sm:$0xf]
    %v3897 = vld [vmem:[%s15 + $0xe0] sm:$0xf]
    %v3898 = vld [vmem:[%s15 + $0xe4] sm:$0xf]
    %v3899 = vld [vmem:[%s15 + $0xe8] sm:$0xf]
    %v3900 = vld [vmem:[%s15 + $0xec] sm:$0xf]
    %v3901 = vld [vmem:[%s15 + $0xf0] sm:$0xf]
    %v3902 = vld [vmem:[%s15 + $0xf4] sm:$0xf]
    %v3903 = vld [vmem:[%s15 + $0xf8] sm:$0xf]
    %v3904 = vld [vmem:[%s15 + $0xfc] sm:$0xf]
    %v3905 = vld [vmem:[%s15 + $0x100] sm:$0xf]
    %v3906 = vld [vmem:[%s15 + $0x104] sm:$0xf]
    %v3907 = vld [vmem:[%s15 + $0x108] sm:$0xf]
    %v3908 = vld [vmem:[%s15 + $0x10c] sm:$0xf]
    %v3909 = vld [vmem:[%s15 + $0x110] sm:$0xf]
    %v3910 = vld [vmem:[%s15 + $0x114] sm:$0xf]
    %v3911 = vld [vmem:[%s15 + $0x118] sm:$0xf]
    %v3912 = vld [vmem:[%s15 + $0x11c] sm:$0xf]
    %v3913 = vld [vmem:[%s15 + $0x120] sm:$0xf]
    %v3914 = vld [vmem:[%s15 + $0x124] sm:$0xf]
    %v3915 = vld [vmem:[%s15 + $0x128] sm:$0xf]
    %v3916 = vld [vmem:[%s15 + $0x12c] sm:$0xf]
    %v3917 = vld [vmem:[%s15 + $0x130] sm:$0xf]
    %v3918 = vld [vmem:[%s15 + $0x134] sm:$0xf]
    %v3919 = vld [vmem:[%s15 + $0x138] sm:$0xf]
    %v3920 = vld [vmem:[%s15 + $0x13c] sm:$0xf]
    %v3921 = vld [vmem:[%s15 + $0x140] sm:$0xf]
    %v3922 = vld [vmem:[%s15 + $0x144] sm:$0xf]
    %v3923 = vld [vmem:[%s15 + $0x148] sm:$0xf]
    %v3924 = vld [vmem:[%s15 + $0x14c] sm:$0xf]
    %v3925 = vld [vmem:[%s15 + $0x150] sm:$0xf]
    %v3926 = vld [vmem:[%s15 + $0x154] sm:$0xf]
    %v3927 = vld [vmem:[%s15 + $0x158] sm:$0xf]
    %v3928 = vld [vmem:[%s15 + $0x15c] sm:$0xf]
    %v3929 = vld [vmem:[%s15 + $0x160] sm:$0xf]
    %v3930 = vld [vmem:[%s15 + $0x164] sm:$0xf]
    %v3931 = vld [vmem:[%s15 + $0x168] sm:$0xf]
    %v3932 = vld [vmem:[%s15 + $0x16c] sm:$0xf]
    %v3933 = vld [vmem:[%s15 + $0x170] sm:$0xf]
    %v3934 = vld [vmem:[%s15 + $0x174] sm:$0xf]
    %v3935 = vld [vmem:[%s15 + $0x178] sm:$0xf]
    %v3936 = vld [vmem:[%s15 + $0x17c] sm:$0xf]
    %v3937 = vld [vmem:[%s15 + $0x180] sm:$0xf]
    %v3938 = vld [vmem:[%s15 + $0x184] sm:$0xf]
    %v3939 = vld [vmem:[%s15 + $0x188] sm:$0xf]
    %v3940 = vld [vmem:[%s15 + $0x18c] sm:$0xf]
    %v3941 = vld [vmem:[%s15 + $0x190] sm:$0xf]
    %v3942 = vld [vmem:[%s15 + $0x194] sm:$0xf]
    %v3943 = vld [vmem:[%s15 + $0x198] sm:$0xf]
    %v3944 = vld [vmem:[%s15 + $0x19c] sm:$0xf]
    %v3945 = vld [vmem:[%s15 + $0x1a0] sm:$0xf]
    %v3946 = vld [vmem:[%s15 + $0x1a4] sm:$0xf]
    %v3947 = vld [vmem:[%s15 + $0x1a8] sm:$0xf]
    %v3948 = vld [vmem:[%s15 + $0x1ac] sm:$0xf]
    %v3949 = vld [vmem:[%s15 + $0x1b0] sm:$0xf]
    %v3950 = vld [vmem:[%s15 + $0x1b4] sm:$0xf]
    %v3951 = vld [vmem:[%s15 + $0x1b8] sm:$0xf]
    %v3952 = vld [vmem:[%s15 + $0x1bc] sm:$0xf]
    %v3953 = vld [vmem:[%s15 + $0x1c0] sm:$0xf]
    %v3954 = vld [vmem:[%s15 + $0x1c4] sm:$0xf]
    %v3955 = vld [vmem:[%s15 + $0x1c8] sm:$0xf]
    %v3956 = vld [vmem:[%s15 + $0x1cc] sm:$0xf]
    %v3957 = vld [vmem:[%s15 + $0x1d0] sm:$0xf]
    %v3958 = vld [vmem:[%s15 + $0x1d4] sm:$0xf]
    %v3959 = vld [vmem:[%s15 + $0x1d8] sm:$0xf]
    %v3960 = vld [vmem:[%s15 + $0x1dc] sm:$0xf]
    %v3961 = vld [vmem:[%s15 + $0x1e0] sm:$0xf]
    %v3962 = vld [vmem:[%s15 + $0x1e4] sm:$0xf]
    %v3963 = vld [vmem:[%s15 + $0x1e8] sm:$0xf]
    %v3964 = vld [vmem:[%s15 + $0x1ec] sm:$0xf]
    %v3965 = vld [vmem:[%s15 + $0x1f0] sm:$0xf]
    %v3966 = vld [vmem:[%s15 + $0x1f4] sm:$0xf]
    %v3967 = vld [vmem:[%s15 + $0x1f8] sm:$0xf]
    %v3968 = vld [vmem:[%s15 + $0x1fc] sm:$0xf]
    %v3969 = vld [vmem:[%s16] sm:$0x1]
    %v3971 = vperm.slane %v3969, 0
    %v4101 = vunpack.c.l.b16 %v3841
    %v4102 = vunpack.c.l.b16 %v3842
    %v4103 = vunpack.c.l.b16 %v3843
    %v4104 = vunpack.c.l.b16 %v3844
    %v4105 = vunpack.c.l.b16 %v3845
    %v4106 = vunpack.c.l.b16 %v3846
    %v4107 = vunpack.c.l.b16 %v3847
    %v4108 = vunpack.c.l.b16 %v3848
    %v4109 = vunpack.c.l.b16 %v3849
    %v4110 = vunpack.c.l.b16 %v3850
    %v4111 = vunpack.c.l.b16 %v3851
    %v4112 = vunpack.c.l.b16 %v3852
    %v4113 = vunpack.c.l.b16 %v3853
    %v4114 = vunpack.c.l.b16 %v3854
    %v4115 = vunpack.c.l.b16 %v3855
    %v4116 = vunpack.c.l.b16 %v3856
    %v4117 = vunpack.c.l.b16 %v3857
    %v4118 = vunpack.c.l.b16 %v3858
    %v4119 = vunpack.c.l.b16 %v3859
    %v4120 = vunpack.c.l.b16 %v3860
    %v4121 = vunpack.c.l.b16 %v3861
    %v4122 = vunpack.c.l.b16 %v3862
    %v4123 = vunpack.c.l.b16 %v3863
    %v4124 = vunpack.c.l.b16 %v3864
    %v4125 = vunpack.c.l.b16 %v3865
    %v4126 = vunpack.c.l.b16 %v3866
    %v4127 = vunpack.c.l.b16 %v3867
    %v4128 = vunpack.c.l.b16 %v3868
    %v4129 = vunpack.c.l.b16 %v3869
    %v4130 = vunpack.c.l.b16 %v3870
    %v4131 = vunpack.c.l.b16 %v3871
    %v4132 = vunpack.c.l.b16 %v3872
    %v4133 = vunpack.c.l.b16 %v3873
    %v4134 = vunpack.c.l.b16 %v3874
    %v4135 = vunpack.c.l.b16 %v3875
    %v4136 = vunpack.c.l.b16 %v3876
    %v4137 = vunpack.c.l.b16 %v3877
    %v4138 = vunpack.c.l.b16 %v3878
    %v4139 = vunpack.c.l.b16 %v3879
    %v4140 = vunpack.c.l.b16 %v3880
    %v4141 = vunpack.c.l.b16 %v3881
    %v4142 = vunpack.c.l.b16 %v3882
    %v4143 = vunpack.c.l.b16 %v3883
    %v4144 = vunpack.c.l.b16 %v3884
    %v4145 = vunpack.c.l.b16 %v3885
    %v4146 = vunpack.c.l.b16 %v3886
    %v4147 = vunpack.c.l.b16 %v3887
    %v4148 = vunpack.c.l.b16 %v3888
    %v4149 = vunpack.c.l.b16 %v3889
    %v4150 = vunpack.c.l.b16 %v3890
    %v4151 = vunpack.c.l.b16 %v3891
    %v4152 = vunpack.c.l.b16 %v3892
    %v4153 = vunpack.c.l.b16 %v3893
    %v4154 = vunpack.c.l.b16 %v3894
    %v4155 = vunpack.c.l.b16 %v3895
    %v4156 = vunpack.c.l.b16 %v3896
    %v4157 = vunpack.c.l.b16 %v3897
    %v4158 = vunpack.c.l.b16 %v3898
    %v4159 = vunpack.c.l.b16 %v3899
    %v4160 = vunpack.c.l.b16 %v3900
    %v4161 = vunpack.c.l.b16 %v3901
    %v4162 = vunpack.c.l.b16 %v3902
    %v4163 = vunpack.c.l.b16 %v3903
    %v4164 = vunpack.c.l.b16 %v3904
    %v4165 = vunpack.c.l.b16 %v3905
    %v4166 = vunpack.c.l.b16 %v3906
    %v4167 = vunpack.c.l.b16 %v3907
    %v4168 = vunpack.c.l.b16 %v3908
    %v4169 = vunpack.c.l.b16 %v3909
    %v4170 = vunpack.c.l.b16 %v3910
    %v4171 = vunpack.c.l.b16 %v3911
    %v4172 = vunpack.c.l.b16 %v3912
    %v4173 = vunpack.c.l.b16 %v3913
    %v4174 = vunpack.c.l.b16 %v3914
    %v4175 = vunpack.c.l.b16 %v3915
    %v4176 = vunpack.c.l.b16 %v3916
    %v4177 = vunpack.c.l.b16 %v3917
    %v4178 = vunpack.c.l.b16 %v3918
    %v4179 = vunpack.c.l.b16 %v3919
    %v4180 = vunpack.c.l.b16 %v3920
    %v4181 = vunpack.c.l.b16 %v3921
    %v4182 = vunpack.c.l.b16 %v3922
    %v4183 = vunpack.c.l.b16 %v3923
    %v4184 = vunpack.c.l.b16 %v3924
    %v4185 = vunpack.c.l.b16 %v3925
    %v4186 = vunpack.c.l.b16 %v3926
    %v4187 = vunpack.c.l.b16 %v3927
    %v4188 = vunpack.c.l.b16 %v3928
    %v4189 = vunpack.c.l.b16 %v3929
    %v4190 = vunpack.c.l.b16 %v3930
    %v4191 = vunpack.c.l.b16 %v3931
    %v4192 = vunpack.c.l.b16 %v3932
    %v4193 = vunpack.c.l.b16 %v3933
    %v4194 = vunpack.c.l.b16 %v3934
    %v4195 = vunpack.c.l.b16 %v3935
    %v4196 = vunpack.c.l.b16 %v3936
    %v4197 = vunpack.c.l.b16 %v3937
    %v4198 = vunpack.c.l.b16 %v3938
    %v4199 = vunpack.c.l.b16 %v3939
    %v4200 = vunpack.c.l.b16 %v3940
    %v4201 = vunpack.c.l.b16 %v3941
    %v4202 = vunpack.c.l.b16 %v3942
    %v4203 = vunpack.c.l.b16 %v3943
    %v4204 = vunpack.c.l.b16 %v3944
    %v4205 = vunpack.c.l.b16 %v3945
    %v4206 = vunpack.c.l.b16 %v3946
    %v4207 = vunpack.c.l.b16 %v3947
    %v4208 = vunpack.c.l.b16 %v3948
    %v4209 = vunpack.c.l.b16 %v3949
    %v4210 = vunpack.c.l.b16 %v3950
    %v4211 = vunpack.c.l.b16 %v3951
    %v4212 = vunpack.c.l.b16 %v3952
    %v4213 = vunpack.c.l.b16 %v3953
    %v4214 = vunpack.c.l.b16 %v3954
    %v4215 = vunpack.c.l.b16 %v3955
    %v4216 = vunpack.c.l.b16 %v3956
    %v4217 = vunpack.c.l.b16 %v3957
    %v4218 = vunpack.c.l.b16 %v3958
    %v4219 = vunpack.c.l.b16 %v3959
    %v4220 = vunpack.c.l.b16 %v3960
    %v4221 = vunpack.c.l.b16 %v3961
    %v4222 = vunpack.c.l.b16 %v3962
    %v4223 = vunpack.c.l.b16 %v3963
    %v4224 = vunpack.c.l.b16 %v3964
    %v4225 = vunpack.c.l.b16 %v3965
    %v4226 = vunpack.c.l.b16 %v3966
    %v4227 = vunpack.c.l.b16 %v3967
    %v4228 = vunpack.c.l.b16 %v3968
    %v4229 = vpack.c.b16 %v4102, %v4101
    %v4230 = vpack.c.b16 %v4104, %v4103
    %v4231 = vpack.c.b16 %v4106, %v4105
    %v4232 = vpack.c.b16 %v4108, %v4107
    %v4233 = vpack.c.b16 %v4110, %v4109
    %v4234 = vpack.c.b16 %v4112, %v4111
    %v4235 = vpack.c.b16 %v4114, %v4113
    %v4236 = vpack.c.b16 %v4116, %v4115
    %v4237 = vpack.c.b16 %v4118, %v4117
    %v4238 = vpack.c.b16 %v4120, %v4119
    %v4239 = vpack.c.b16 %v4122, %v4121
    %v4240 = vpack.c.b16 %v4124, %v4123
    %v4241 = vpack.c.b16 %v4126, %v4125
    %v4242 = vpack.c.b16 %v4128, %v4127
    %v4243 = vpack.c.b16 %v4130, %v4129
    %v4244 = vpack.c.b16 %v4132, %v4131
    %v4245 = vpack.c.b16 %v4134, %v4133
    %v4246 = vpack.c.b16 %v4136, %v4135
    %v4247 = vpack.c.b16 %v4138, %v4137
    %v4248 = vpack.c.b16 %v4140, %v4139
    %v4249 = vpack.c.b16 %v4142, %v4141
    %v4250 = vpack.c.b16 %v4144, %v4143
    %v4251 = vpack.c.b16 %v4146, %v4145
    %v4252 = vpack.c.b16 %v4148, %v4147
    %v4253 = vpack.c.b16 %v4150, %v4149
    %v4254 = vpack.c.b16 %v4152, %v4151
    %v4255 = vpack.c.b16 %v4154, %v4153
    %v4256 = vpack.c.b16 %v4156, %v4155
    %v4257 = vpack.c.b16 %v4158, %v4157
    %v4258 = vpack.c.b16 %v4160, %v4159
    %v4259 = vpack.c.b16 %v4162, %v4161
    %v4260 = vpack.c.b16 %v4164, %v4163
    %v4261 = vpack.c.b16 %v4166, %v4165
    %v4262 = vpack.c.b16 %v4168, %v4167
    %v4263 = vpack.c.b16 %v4170, %v4169
    %v4264 = vpack.c.b16 %v4172, %v4171
    %v4265 = vpack.c.b16 %v4174, %v4173
    %v4266 = vpack.c.b16 %v4176, %v4175
    %v4267 = vpack.c.b16 %v4178, %v4177
    %v4268 = vpack.c.b16 %v4180, %v4179
    %v4269 = vpack.c.b16 %v4182, %v4181
    %v4270 = vpack.c.b16 %v4184, %v4183
    %v4271 = vpack.c.b16 %v4186, %v4185
    %v4272 = vpack.c.b16 %v4188, %v4187
    %v4273 = vpack.c.b16 %v4190, %v4189
    %v4274 = vpack.c.b16 %v4192, %v4191
    %v4275 = vpack.c.b16 %v4194, %v4193
    %v4276 = vpack.c.b16 %v4196, %v4195
    %v4277 = vpack.c.b16 %v4198, %v4197
    %v4278 = vpack.c.b16 %v4200, %v4199
    %v4279 = vpack.c.b16 %v4202, %v4201
    %v4280 = vpack.c.b16 %v4204, %v4203
    %v4281 = vpack.c.b16 %v4206, %v4205
    %v4282 = vpack.c.b16 %v4208, %v4207
    %v4283 = vpack.c.b16 %v4210, %v4209
    %v4284 = vpack.c.b16 %v4212, %v4211
    %v4285 = vpack.c.b16 %v4214, %v4213
    %v4286 = vpack.c.b16 %v4216, %v4215
    %v4287 = vpack.c.b16 %v4218, %v4217
    %v4288 = vpack.c.b16 %v4220, %v4219
    %v4289 = vpack.c.b16 %v4222, %v4221
    %v4290 = vpack.c.b16 %v4224, %v4223
    %v4291 = vpack.c.b16 %v4226, %v4225
    %v4292 = vpack.c.b16 %v4228, %v4227
    %4357 = vmatpush.bf16.msra.mxu0 %v4236
    %4358 = vmatpush.bf16.msra.mxu0 %v4235
    %4359 = vmatpush.bf16.msra.mxu0 %v4234
    %4360 = vmatpush.bf16.msra.mxu0 %v4233
    %4361 = vmatpush.bf16.msra.mxu0 %v4232
    %4362 = vmatpush.bf16.msra.mxu0 %v4231
    %4363 = vmatpush.bf16.msra.mxu0 %v4230
    %4364 = vmatpush.bf16.msra.mxu0 %v4229
    %4365 = vmatmul.bf16.gmra.mxu0 %v3833
    %v4366 = vpop.f32.mrf.mxu0
    %v4367 = vadd.f32 %v3971, %v4366
    %v4368 = vpop.f32.mrf.mxu0
    %4369 = vdwg.mxu0
    %4370 = vmatpush.bf16.msra.mxu0 %v4244
    %4371 = vmatpush.bf16.msra.mxu0 %v4243
    %4372 = vmatpush.bf16.msra.mxu0 %v4242
    %4373 = vmatpush.bf16.msra.mxu0 %v4241
    %4374 = vmatpush.bf16.msra.mxu0 %v4240
    %4375 = vmatpush.bf16.msra.mxu0 %v4239
    %4376 = vmatpush.bf16.msra.mxu0 %v4238
    %4377 = vmatpush.bf16.msra.mxu0 %v4237
    %4378 = vmatmul.bf16.gmra.mxu0 %v3834
    %v4379 = vpop.f32.mrf.mxu0
    %v4380 = vadd.f32 %v4367, %v4379
    %v4381 = vpop.f32.mrf.mxu0
    %4382 = vdwg.mxu0
    %4383 = vmatpush.bf16.msra.mxu0 %v4252
    %4384 = vmatpush.bf16.msra.mxu0 %v4251
    %4385 = vmatpush.bf16.msra.mxu0 %v4250
    %4386 = vmatpush.bf16.msra.mxu0 %v4249
    %4387 = vmatpush.bf16.msra.mxu0 %v4248
    %4388 = vmatpush.bf16.msra.mxu0 %v4247
    %4389 = vmatpush.bf16.msra.mxu0 %v4246
    %4390 = vmatpush.bf16.msra.mxu0 %v4245
    %4391 = vmatmul.bf16.gmra.mxu0 %v3835
    %v4392 = vpop.f32.mrf.mxu0
    %v4393 = vadd.f32 %v4380, %v4392
    %v4394 = vpop.f32.mrf.mxu0
    %4395 = vdwg.mxu0
    %4396 = vmatpush.bf16.msra.mxu0 %v4260
    %4397 = vmatpush.bf16.msra.mxu0 %v4259
    %4398 = vmatpush.bf16.msra.mxu0 %v4258
    %4399 = vmatpush.bf16.msra.mxu0 %v4257
    %4400 = vmatpush.bf16.msra.mxu0 %v4256
    %4401 = vmatpush.bf16.msra.mxu0 %v4255
    %4402 = vmatpush.bf16.msra.mxu0 %v4254
    %4403 = vmatpush.bf16.msra.mxu0 %v4253
    %4404 = vmatmul.bf16.gmra.mxu0 %v3836
    %v4405 = vpop.f32.mrf.mxu0
    %v4406 = vadd.f32 %v4393, %v4405
    %v4407 = vpop.f32.mrf.mxu0
    %4408 = vdwg.mxu0
    %4409 = vmatpush.bf16.msra.mxu0 %v4268
    %4410 = vmatpush.bf16.msra.mxu0 %v4267
    %4411 = vmatpush.bf16.msra.mxu0 %v4266
    %4412 = vmatpush.bf16.msra.mxu0 %v4265
    %4413 = vmatpush.bf16.msra.mxu0 %v4264
    %4414 = vmatpush.bf16.msra.mxu0 %v4263
    %4415 = vmatpush.bf16.msra.mxu0 %v4262
    %4416 = vmatpush.bf16.msra.mxu0 %v4261
    %4417 = vmatmul.bf16.gmra.mxu0 %v3837
    %v4418 = vpop.f32.mrf.mxu0
    %v4419 = vadd.f32 %v4406, %v4418
    %v4420 = vpop.f32.mrf.mxu0
    %4421 = vdwg.mxu0
    %4422 = vmatpush.bf16.msra.mxu0 %v4276
    %4423 = vmatpush.bf16.msra.mxu0 %v4275
    %4424 = vmatpush.bf16.msra.mxu0 %v4274
    %4425 = vmatpush.bf16.msra.mxu0 %v4273
    %4426 = vmatpush.bf16.msra.mxu0 %v4272
    %4427 = vmatpush.bf16.msra.mxu0 %v4271
    %4428 = vmatpush.bf16.msra.mxu0 %v4270
    %4429 = vmatpush.bf16.msra.mxu0 %v4269
    %4430 = vmatmul.bf16.gmra.mxu0 %v3838
    %v4431 = vpop.f32.mrf.mxu0
    %v4432 = vadd.f32 %v4419, %v4431
    %v4433 = vpop.f32.mrf.mxu0
    %4434 = vdwg.mxu0
    %4435 = vmatpush.bf16.msra.mxu0 %v4284
    %4436 = vmatpush.bf16.msra.mxu0 %v4283
    %4437 = vmatpush.bf16.msra.mxu0 %v4282
    %4438 = vmatpush.bf16.msra.mxu0 %v4281
    %4439 = vmatpush.bf16.msra.mxu0 %v4280
    %4440 = vmatpush.bf16.msra.mxu0 %v4279
    %4441 = vmatpush.bf16.msra.mxu0 %v4278
    %4442 = vmatpush.bf16.msra.mxu0 %v4277
    %4443 = vmatmul.bf16.gmra.mxu0 %v3839
    %v4444 = vpop.f32.mrf.mxu0
    %v4445 = vadd.f32 %v4432, %v4444
    %v4446 = vpop.f32.mrf.mxu0
    %4447 = vdwg.mxu0
    %4448 = vmatpush.bf16.msra.mxu0 %v4292
    %4449 = vmatpush.bf16.msra.mxu0 %v4291
    %4450 = vmatpush.bf16.msra.mxu0 %v4290
    %4451 = vmatpush.bf16.msra.mxu0 %v4289
    %4452 = vmatpush.bf16.msra.mxu0 %v4288
    %4453 = vmatpush.bf16.msra.mxu0 %v4287
    %4454 = vmatpush.bf16.msra.mxu0 %v4286
    %4455 = vmatpush.bf16.msra.mxu0 %v4285
    %4456 = vmatmul.bf16.gmra.mxu0 %v3840
    %v4457 = vpop.f32.mrf.mxu0
    %v4458 = vadd.f32 %v4445, %v4457
    %v4459 = vpop.f32.mrf.mxu0
    %4460 = vdwg.mxu0
    %v4461 = vld [vmem:[%s17] sm:$0x3]
    %v4462 = vmul.f32 %v4458, 0.5
    %v4463 = vmul.f32 %v4462, 1.442695
    %v4464 = vpow.pop %v4463
    %4466 = vrot.lane.b32.xlu0 %v4464, 120
    %v4467 = vpop.permute.xlu0 %4466
    %v4469 = vmul.f32 %v4461, %v4467
    %v4470 = vadd.f32 %v4469, %v4458
    %vm4471 = vcmask 58368
    %4472 = vst.msk [vmem:[#allocation17] sm:$0x3] %vm4471, %v4470
    %4474 = vrot.lane.b32.xlu0 %v4458, 8
    %v4475 = vpop.permute.xlu0 %4474
    %vm4477 = vcmask 189504
    %4478 = vst.msk [vmem:[#allocation17] sm:$0x3] %vm4477, %v4475
    // Predicated region
    $region110: #{tpu_custom_call.1} parent=1 // pred_check
      _
    $region111: #{tpu_custom_call.1} parent=1 // pred_check_branch
      %4480 = sbr.rel (0) target = $region113
    $region112: #{tpu_custom_call.1} parent=1 // pred_region
      %4482 = vsyncadd [#allocation4], 0
      %s4484 = sshll.u32 [#allocation17], 4
      %s4485 = int_to_ptr.vmem [resolvable:$true] %s4484
      %s4486 = sshll.u32 %s18, 4
      %s4487 = int_to_ptr.hbm [resolvable:$true] %s4486
      %4489 = dma.vmem_to_hbm [thread:$0]  %s4485, 32, %s4487, [#allocation4]
    $region113: #{tpu_custom_call.1} parent=1 // pred_fallthru
      _
    // Predicated region
    $region114: #{tpu_custom_call.1} parent=1 // pred_check
      _
    $region115: #{tpu_custom_call.1} parent=1 // pred_check_branch
      %4491 = sbr.rel (0) target = $region117
    $region116: #{tpu_custom_call.1} parent=1 // pred_region
      %4493 = dma.done [#allocation4], 32
    $region117: #{tpu_custom_call.1} parent=1 // pred_fallthru
      _
    %4494 = vsyncpa [#allocation3], 1
    %4495 = vsyncpa [#allocation6], 1
    %4496 = vsyncpa [#allocation9], 1
    %4497 = vsyncpa [#allocation12], 1
    %4498 = vsyncpa [#allocation15], 1
    %4499 = vsyncpa [#allocation4], 1

</llo_original>
